<compile_context>
chip_gen: v7x
topology: tpu7x:2x2x1
jax: 0.10.0
libtpu: 0.0.40
codegen_flags: <defaults>
</compile_context>

<pallas_src>
import numpy as np

import jax
import jax.numpy as jnp
from jax.experimental import pallas as pl
from jax.experimental.pallas import tpu as pltpu


def _round_up(n, m):
    return ((n + m - 1) // m) * m


def _pad_to(x, shape):
    return jnp.pad(x, [(0, s - d) for d, s in zip(x.shape, shape)])


# ----------------------------------------------------------------------------
# Fused kernel: one grid step == TT packed-sequence timesteps.
# ----------------------------------------------------------------------------
def _fused_rnn_head_kernel(ids_ref, xr_ref, xi_ref,
                           wu_r_ref, wu_i_ref, et_ref, bias_ref,
                           h0_r_ref, h0_i_ref,
                           probs_ref,
                           xh_r_sc, xh_i_sc):
    B_pad, two_H = xh_r_sc.shape
    H_pad = two_H // 2
    TT = ids_ref.shape[0]

    # states = model.initial_states() expanded to the (padded) batch; carried in the
    # h-half of the persistent bf16 [x | h] scratch across the whole sequence.
    @pl.when(pl.program_id(0) == 0)
    def _():
        xh_r_sc[:, H_pad:] = jnp.broadcast_to(
            h0_r_ref[...], (B_pad, H_pad)).astype(jnp.bfloat16)
        xh_i_sc[:, H_pad:] = jnp.broadcast_to(
            h0_i_ref[...], (B_pad, H_pad)).astype(jnp.bfloat16)

    def step(tt, carry):
        ids = ids_ref[tt]                        # [B_pad, 1] int32, -1 = inactive row
        active = ids >= 0                        # row < batch_sizes[t+1]

        # Overwrite the x-half of the persistent cell input in place (already bf16
        # from the wrapper gather); the h-half is the carried state.
        xh_r_sc[:, :H_pad] = xr_ref[tt]
        xh_i_sc[:, :H_pad] = xi_ref[tt]
        h_r_old = xh_r_sc[:, H_pad:]
        h_i_old = xh_i_sc[:, H_pad:]

        # Merged RNN-cell matmul: tanh([x | h] @ [W ; U])  (bf16 MXU, f32 accum/tanh).
        z_r = jnp.tanh(jnp.dot(xh_r_sc[...], wu_r_ref[...],
                               preferred_element_type=jnp.float32))
        z_i = jnp.tanh(jnp.dot(xh_i_sc[...], wu_i_ref[...],
                               preferred_element_type=jnp.float32))

        # Packed-sequence semantics: only rows active at this step carry new state.
        new_r = jnp.where(active, z_r.astype(jnp.bfloat16), h_r_old)
        new_i = jnp.where(active, z_i.astype(jnp.bfloat16), h_i_old)
        xh_r_sc[:, H_pad:] = new_r
        xh_i_sc[:, H_pad:] = new_i

        # Weight-tied head, real/imag merged into ONE K=2*H_pad matmul:
        # pmi = [Re(h) | Im(h)] @ [Re(E)^T ; Im(E)^T]  (+ bias, padded cols = -1e30).
        ri = jnp.concatenate([new_r, new_i], axis=1)            # [B_pad, 2*H_pad] bf16
        logits = jnp.dot(ri, et_ref[...],
                         preferred_element_type=jnp.float32) + bias_ref[...]

        # Numerically-stable softmax over vocab (padded columns -> exp = 0).
        m = jnp.max(logits, axis=-1, keepdims=True)
        e = jnp.exp(logits - m)
        s = jnp.sum(e, axis=-1, keepdims=True)
        r = pl.reciprocal(s, approx=True)        # EUP slot, ~free next to the exp
        r = r * (2.0 - s * r)                    # one Newton step -> ~f32-exact 1/s
        probs_ref[tt] = (e * r).astype(probs_ref.dtype)
        return carry

    jax.lax.fori_loop(0, TT, step, 0, unroll=True)


# ----------------------------------------------------------------------------
# Synthetic inner `model`: minimal complex-valued RNN with complex embeddings.
# (The original repo's model class is not given; shapes follow the usage in
#  RNN_with_bias.forward: complex predicts [B, H], embeddings [V, H].)
# ----------------------------------------------------------------------------
class SimpleComplexRNN:
    def __init__(self, key, vocab_size, hidden_size):
        self.vocab_size = vocab_size
        self.hidden_size = hidden_size
        ks = jax.random.split(key, 8)
        s = 0.1
        self.E_real = s * jax.random.normal(ks[0], (vocab_size, hidden_size), jnp.float32)
        self.E_imag = s * jax.random.normal(ks[1], (vocab_size, hidden_size), jnp.float32)
        self.W_real = s * jax.random.normal(ks[2], (hidden_size, hidden_size), jnp.float32)
        self.W_imag = s * jax.random.normal(ks[3], (hidden_size, hidden_size), jnp.float32)
        self.U_real = s * jax.random.normal(ks[4], (hidden_size, hidden_size), jnp.float32)
        self.U_imag = s * jax.random.normal(ks[5], (hidden_size, hidden_size), jnp.float32)
        self.h0_real = s * jax.random.normal(ks[6], (1, hidden_size), jnp.float32)
        self.h0_imag = s * jax.random.normal(ks[7], (1, hidden_size), jnp.float32)

    def initial_states(self):
        return {"h": [self.h0_real, self.h0_imag]}

    def all_word_embeddings(self):
        return self.E_real, self.E_imag


# ----------------------------------------------------------------------------
# RNN_with_bias.forward (weight_tying=True branch), packed-sequence semantics.
# Whole time loop runs inside a single gridded pallas_call; the generator's
# `yield`s become a returned list of (softmax(pmi+bias), one_hot(labels)).
# ----------------------------------------------------------------------------
def rnn_with_bias_forward(model, bias, data, batch_sizes, time_block=4):
    V, H = model.vocab_size, model.hidden_size
    assert all(b >= nb for b, nb in zip(batch_sizes, batch_sizes[1:])), \
        "packed-sequence batch_sizes must be non-increasing"
    T = len(batch_sizes) - 1
    TT = max(1, min(time_block, T))              # timesteps per grid step
    T_pad = _round_up(T, TT)
    B_pad = max(8, _round_up(max(batch_sizes[1:]), 8))   # sublane-aligned batch
    H_pad = _round_up(H, 128)                            # lane-aligned hidden
    V_pad = _round_up(V, 128)                            # lane-aligned vocab

    # ---- packed-sequence bookkeeping (host glue, done once) ----
    data_np = np.asarray(jax.device_get(data)).astype(np.int32)
    in_ids = np.full((T_pad, B_pad, 1), -1, np.int32)
    nbs_list = []
    acc = 0
    for t in range(T):
        bs, nbs = batch_sizes[t], batch_sizes[t + 1]
        in_ids[t, :nbs, 0] = data_np[acc:acc + nbs]
        nbs_list.append(nbs)
        acc += bs
    in_ids_j = jnp.asarray(in_ids)

    # ---- parameters: pad / cast / pre-transform once (wrapper layout plumbing) ----
    # Embedding gather done here (trivial XLA gather) -> no one-hot matmul in-kernel.
    e_r_tab = _pad_to(model.E_real, (V, H_pad)).astype(jnp.bfloat16)
    e_i_tab = _pad_to(model.E_imag, (V, H_pad)).astype(jnp.bfloat16)
    safe_ids = jnp.maximum(in_ids_j[..., 0], 0)                  # [T_pad, B_pad]
    x_r = jnp.take(e_r_tab, safe_ids, axis=0)                    # [T_pad, B_pad, H_pad]
    x_i = jnp.take(e_i_tab, safe_ids, axis=0)

    # Stacked, pre-transposed tied head weights: [Re(E)^T ; Im(E)^T] -> [2H_pad, V_pad]
    et = jnp.concatenate([_pad_to(model.E_real, (V_pad, H_pad)).T,
                          _pad_to(model.E_imag, (V_pad, H_pad)).T],
                         axis=0).astype(jnp.bfloat16)
    wu_r = jnp.concatenate([_pad_to(model.W_real, (H_pad, H_pad)),
                            _pad_to(model.U_real, (H_pad, H_pad))],
                           axis=0).astype(jnp.bfloat16)           # [2H_pad, H_pad]
    wu_i = jnp.concatenate([_pad_to(model.W_imag, (H_pad, H_pad)),
                            _pad_to(model.U_imag, (H_pad, H_pad))],
                           axis=0).astype(jnp.bfloat16)
    bias_p = jnp.full((1, V_pad), -1e30, jnp.float32).at[0, :V].set(
        bias.astype(jnp.float32))
    h0_r = _pad_to(model.h0_real, (1, H_pad)).astype(jnp.float32)
    h0_i = _pad_to(model.h0_imag, (1, H_pad)).astype(jnp.float32)

    flops = T_pad * (8 * B_pad * H_pad * H_pad + 4 * B_pad * H_pad * V_pad)
    transcendentals = T_pad * (2 * B_pad * H_pad + B_pad * V_pad + B_pad)
    bytes_accessed = (2 * H_pad * V_pad * 2                  # stacked E^T (bf16)
                      + 2 * 2 * H_pad * H_pad * 2            # [W;U] real+imag (bf16)
                      + V_pad * 4 + 2 * H_pad * 4            # bias + h0
                      + T_pad * (B_pad * 4                   # ids
                                 + 2 * B_pad * H_pad * 2     # gathered x (bf16)
                                 + B_pad * V_pad * 2))       # probs out (bf16)

    def run(single_buffer_weights):
        def resident(shape):
            # constant index_map -> DMA'd HBM->VMEM once, stays resident every step;
            # Buffered(1): no point double-buffering a block that never changes.
            if single_buffer_weights:
                return pl.BlockSpec(shape, lambda tb: (0, 0),
                                    pipeline_mode=pl.Buffered(1))
            return pl.BlockSpec(shape, lambda tb: (0, 0))

        grid_spec = pltpu.PrefetchScalarGridSpec(
            num_scalar_prefetch=0,
            grid=(T_pad // TT,),
            in_specs=[
                pl.BlockSpec((TT, B_pad, 1), lambda tb: (tb, 0, 0)),       # ids
                pl.BlockSpec((TT, B_pad, H_pad), lambda tb: (tb, 0, 0)),   # x real
                pl.BlockSpec((TT, B_pad, H_pad), lambda tb: (tb, 0, 0)),   # x imag
                resident((2 * H_pad, H_pad)),                              # [W;U] real
                resident((2 * H_pad, H_pad)),                              # [W;U] imag
                resident((2 * H_pad, V_pad)),                              # [E_r;E_i]^T
                resident((1, V_pad)),                                      # bias
                resident((1, H_pad)),                                      # h0 real
                resident((1, H_pad)),                                      # h0 imag
            ],
            out_specs=pl.BlockSpec((TT, B_pad, V_pad), lambda tb: (tb, 0, 0)),
            scratch_shapes=[pltpu.VMEM((B_pad, 2 * H_pad), jnp.bfloat16),  # [x|h] real
                            pltpu.VMEM((B_pad, 2 * H_pad), jnp.bfloat16)], # [x|h] imag
        )

        probs = pl.pallas_call(
            _fused_rnn_head_kernel,
            out_shape=jax.ShapeDtypeStruct((T_pad, B_pad, V_pad), jnp.bfloat16),
            grid_spec=grid_spec,
            compiler_params=pltpu.CompilerParams(
                # Time carries the recurrent state -> must stay sequential.
                dimension_semantics=("arbitrary",),
                vmem_limit_bytes=48 * 1024 * 1024),
            cost_estimate=pl.CostEstimate(flops=flops,
                                          transcendentals=transcendentals,
                                          bytes_accessed=bytes_accessed),
        )(in_ids_j, x_r, x_i, wu_r, wu_i, et, bias_p, h0_r, h0_i)
        return jax.block_until_ready(probs)

    try:
        probs_all = run(single_buffer_weights=True)
    except Exception:
        # Installed jax may not accept Buffered(1) on a pallas_call BlockSpec.
        probs_all = run(single_buffer_weights=False)

    # one_hot(labels) is independent of the RNN -> trivial XLA op outside the kernel.
    outputs = []
    acc = 0
    for t in range(T):
        bs, nbs = batch_sizes[t], batch_sizes[t + 1]
        labels_t = data[acc + bs:acc + bs + nbs]
        onehot = jax.nn.one_hot(labels_t, V, dtype=jnp.float32)
        outputs.append((probs_all[t, :nbs, :V], onehot))
        acc += bs
    return outputs


# ----------------------------------------------------------------------------
# Pure-JAX f32 reference (mirrors the PyTorch loop exactly) for validation.
# ----------------------------------------------------------------------------
def reference_forward(model, bias, data, batch_sizes):
    T = len(batch_sizes) - 1
    h_r = jnp.broadcast_to(model.h0_real, (batch_sizes[1], model.hidden_size))
    h_i = jnp.broadcast_to(model.h0_imag, (batch_sizes[1], model.hidden_size))
    outs = []
    acc = 0
    for t in range(T):
        bs, nbs = batch_sizes[t], batch_sizes[t + 1]
        batch = data[acc:acc + nbs]
        h_r, h_i = h_r[:nbs], h_i[:nbs]
        x_r = model.E_real[batch]
        x_i = model.E_imag[batch]
        h_r = jnp.tanh(x_r @ model.W_real + h_r @ model.U_real)
        h_i = jnp.tanh(x_i @ model.W_imag + h_i @ model.U_imag)
        labels = data[acc + bs:acc + bs + nbs]
        pmi = h_r @ model.E_real.T + h_i @ model.E_imag.T
        probs = jax.nn.softmax(pmi + bias, axis=-1)
        onehot = jax.nn.one_hot(labels, model.vocab_size, dtype=jnp.float32)
        outs.append((probs, onehot))
        acc += bs
    return outs


if __name__ == "__main__":
    key = jax.random.PRNGKey(0)
    k_model, k_bias, k_data = jax.random.split(key, 3)

    vocab_size = 64
    hidden_size = 32
    batch_sizes = [4, 4, 3, 2]                 # packed-sequence batch sizes (non-increasing)
    total = sum(batch_sizes)                   # 13 packed tokens

    model = SimpleComplexRNN(k_model, vocab_size, hidden_size)
    bias = jax.random.normal(k_bias, (vocab_size,), jnp.float32)   # nn.Parameter(randn[V])
    data = jax.random.randint(k_data, (total,), 0, vocab_size, jnp.int32)

    outs = rnn_with_bias_forward(model, bias, data, batch_sizes)
    for probs, onehot in outs:
        jax.block_until_ready(probs)
        jax.block_until_ready(onehot)

    # validate against the pure-JAX f32 reference of the same forward pass
    refs = reference_forward(model, bias, data, batch_sizes)
    for (p, o), (rp, ro) in zip(outs, refs):
        assert p.shape == rp.shape and o.shape == ro.shape
        p32 = p.astype(jnp.float32)
        assert bool(jnp.allclose(jnp.sum(p32, axis=-1), 1.0, atol=1e-2))
        assert bool(jnp.array_equal(o, ro))                       # one-hot exact
        assert float(jnp.max(jnp.abs(p32 - rp))) < 2e-2           # bf16 MXU/output tolerance

    print("KERNEL_OK")
</pallas_src>

<mosaic_0001>
module attributes {stable_mosaic.version = 11 : i64} {
  func.func @_fused_rnn_head_kernel(%arg0: i32, %arg1: memref<3x8x1xi32, #tpu.memory_space<vmem>>, %arg2: memref<3x8x128xbf16, #tpu.memory_space<vmem>>, %arg3: memref<3x8x128xbf16, #tpu.memory_space<vmem>>, %arg4: memref<256x128xbf16, #tpu.memory_space<vmem>>, %arg5: memref<256x128xbf16, #tpu.memory_space<vmem>>, %arg6: memref<256x128xbf16, #tpu.memory_space<vmem>>, %arg7: memref<1x128xf32, #tpu.memory_space<vmem>>, %arg8: memref<1x128xf32, #tpu.memory_space<vmem>>, %arg9: memref<1x128xf32, #tpu.memory_space<vmem>>, %arg10: memref<3x8x128xbf16, #tpu.memory_space<vmem>>, %arg11: memref<8x256xbf16, #tpu.memory_space<vmem>>, %arg12: memref<8x256xbf16, #tpu.memory_space<vmem>>) attributes {dimension_semantics = [#tpu.dimension_semantics<arbitrary>], iteration_bounds = array<i64: 1>, scalar_prefetch = 0 : i64, scratch_operands = 2 : i64, tpu.core_type = #tpu.core_type<tc>, window_params = [{transform_indices = @transform_0, window_bounds = array<i64: 3, 8, 1>}, {transform_indices = @transform_1, window_bounds = array<i64: 3, 8, 128>}, {transform_indices = @transform_2, window_bounds = array<i64: 3, 8, 128>}, {pipeline_mode = #tpu.pipeline_mode<synchronous>, transform_indices = @transform_3, window_bounds = array<i64: 256, 128>}, {pipeline_mode = #tpu.pipeline_mode<synchronous>, transform_indices = @transform_4, window_bounds = array<i64: 256, 128>}, {pipeline_mode = #tpu.pipeline_mode<synchronous>, transform_indices = @transform_5, window_bounds = array<i64: 256, 128>}, {pipeline_mode = #tpu.pipeline_mode<synchronous>, transform_indices = @transform_6, window_bounds = array<i64: 1, 128>}, {pipeline_mode = #tpu.pipeline_mode<synchronous>, transform_indices = @transform_7, window_bounds = array<i64: 1, 128>}, {pipeline_mode = #tpu.pipeline_mode<synchronous>, transform_indices = @transform_8, window_bounds = array<i64: 1, 128>}, {transform_indices = @transform_9, window_bounds = array<i64: 3, 8, 128>}]} {
    %c0_i32 = arith.constant 0 : i32
    %0 = arith.cmpi eq, %arg0, %c0_i32 : i32
    %1 = arith.extui %0 : i1 to i32
    %c0_i32_0 = arith.constant 0 : i32
    %2 = arith.cmpi ne, %1, %c0_i32_0 : i32
    scf.if %2 {
      %c0_116 = arith.constant 0 : index
      %c0_117 = arith.constant 0 : index
      %177 = vector.load %arg8[%c0_116, %c0_117] : memref<1x128xf32, #tpu.memory_space<vmem>>, vector<1x128xf32>
      %178 = vector.shape_cast %177 : vector<1x128xf32> to vector<1x128xf32>
      %179 = vector.broadcast %178 : vector<1x128xf32> to vector<8x128xf32>
      %180 = arith.truncf %179 : vector<8x128xf32> to vector<8x128xbf16>
      %c0_118 = arith.constant 0 : index
      %c128_119 = arith.constant 128 : index
      %181 = vector.load %arg11[%c0_118, %c128_119] : memref<8x256xbf16, #tpu.memory_space<vmem>>, vector<8x128xbf16>
      tpu.vector_store %arg11[%c0_118, %c128_119], %180 {strides = array<i32>} : memref<8x256xbf16, #tpu.memory_space<vmem>>, vector<8x128xbf16>,
      %c0_120 = arith.constant 0 : index
      %c0_121 = arith.constant 0 : index
      %182 = vector.load %arg9[%c0_120, %c0_121] : memref<1x128xf32, #tpu.memory_space<vmem>>, vector<1x128xf32>
      %183 = vector.shape_cast %182 : vector<1x128xf32> to vector<1x128xf32>
      %184 = vector.broadcast %183 : vector<1x128xf32> to vector<8x128xf32>
      %185 = arith.truncf %184 : vector<8x128xf32> to vector<8x128xbf16>
      %c0_122 = arith.constant 0 : index
      %c128_123 = arith.constant 128 : index
      %186 = vector.load %arg12[%c0_122, %c128_123] : memref<8x256xbf16, #tpu.memory_space<vmem>>, vector<8x128xbf16>
      tpu.vector_store %arg12[%c0_122, %c128_123], %185 {strides = array<i32>} : memref<8x256xbf16, #tpu.memory_space<vmem>>, vector<8x128xbf16>,
    } else {
    }
    %c0_i32_1 = arith.constant 0 : i32
    %3 = arith.index_cast %c0_i32_1 : i32 to index
    %c0 = arith.constant 0 : index
    %c0_2 = arith.constant 0 : index
    %4 = vector.load %arg1[%3, %c0, %c0_2] : memref<3x8x1xi32, #tpu.memory_space<vmem>>, vector<1x8x1xi32>
    %5 = vector.shape_cast %4 : vector<1x8x1xi32> to vector<8x1xi32>
    %c0_i32_3 = arith.constant 0 : i32
    %6 = vector.broadcast %c0_i32_3 : i32 to vector<8x1xi32>
    %7 = arith.cmpi sge, %5, %6 : vector<8x1xi32>
    %8 = arith.index_cast %c0_i32_1 : i32 to index
    %c0_4 = arith.constant 0 : index
    %c0_5 = arith.constant 0 : index
    %9 = vector.load %arg2[%8, %c0_4, %c0_5] : memref<3x8x128xbf16, #tpu.memory_space<vmem>>, vector<1x8x128xbf16>
    %10 = vector.shape_cast %9 : vector<1x8x128xbf16> to vector<8x128xbf16>
    %c0_6 = arith.constant 0 : index
    %c0_7 = arith.constant 0 : index
    %11 = vector.load %arg11[%c0_6, %c0_7] : memref<8x256xbf16, #tpu.memory_space<vmem>>, vector<8x128xbf16>
    tpu.vector_store %arg11[%c0_6, %c0_7], %10 {strides = array<i32>} : memref<8x256xbf16, #tpu.memory_space<vmem>>, vector<8x128xbf16>,
    %12 = arith.index_cast %c0_i32_1 : i32 to index
    %c0_8 = arith.constant 0 : index
    %c0_9 = arith.constant 0 : index
    %13 = vector.load %arg3[%12, %c0_8, %c0_9] : memref<3x8x128xbf16, #tpu.memory_space<vmem>>, vector<1x8x128xbf16>
    %14 = vector.shape_cast %13 : vector<1x8x128xbf16> to vector<8x128xbf16>
    %c0_10 = arith.constant 0 : index
    %c0_11 = arith.constant 0 : index
    %15 = vector.load %arg12[%c0_10, %c0_11] : memref<8x256xbf16, #tpu.memory_space<vmem>>, vector<8x128xbf16>
    tpu.vector_store %arg12[%c0_10, %c0_11], %14 {strides = array<i32>} : memref<8x256xbf16, #tpu.memory_space<vmem>>, vector<8x128xbf16>,
    %c0_12 = arith.constant 0 : index
    %c128 = arith.constant 128 : index
    %16 = vector.load %arg11[%c0_12, %c128] : memref<8x256xbf16, #tpu.memory_space<vmem>>, vector<8x128xbf16>
    %c0_13 = arith.constant 0 : index
    %c128_14 = arith.constant 128 : index
    %17 = vector.load %arg12[%c0_13, %c128_14] : memref<8x256xbf16, #tpu.memory_space<vmem>>, vector<8x128xbf16>
    %c0_15 = arith.constant 0 : index
    %c0_16 = arith.constant 0 : index
    %18 = vector.load %arg11[%c0_15, %c0_16] : memref<8x256xbf16, #tpu.memory_space<vmem>>, vector<8x256xbf16>
    %c0_17 = arith.constant 0 : index
    %c0_18 = arith.constant 0 : index
    %19 = vector.load %arg4[%c0_17, %c0_18] : memref<256x128xbf16, #tpu.memory_space<vmem>>, vector<256x128xbf16>
    %cst = arith.constant dense<0.000000e+00> : vector<8x128xf32>
    %20 = tpu.matmul %18, %19, %cst {dimension_numbers = #tpu.dot_dimension_numbers<[1], [0], [0], [1], [0, 0, 1, 1], [], []>} : vector<8x256xbf16>, vector<256x128xbf16>, vector<8x128xf32> -> vector<8x128xf32>
    %21 = math.tanh %20 : vector<8x128xf32>
    %c0_19 = arith.constant 0 : index
    %c0_20 = arith.constant 0 : index
    %22 = vector.load %arg12[%c0_19, %c0_20] : memref<8x256xbf16, #tpu.memory_space<vmem>>, vector<8x256xbf16>
    %c0_21 = arith.constant 0 : index
    %c0_22 = arith.constant 0 : index
    %23 = vector.load %arg5[%c0_21, %c0_22] : memref<256x128xbf16, #tpu.memory_space<vmem>>, vector<256x128xbf16>
    %cst_23 = arith.constant dense<0.000000e+00> : vector<8x128xf32>
    %24 = tpu.matmul %22, %23, %cst_23 {dimension_numbers = #tpu.dot_dimension_numbers<[1], [0], [0], [1], [0, 0, 1, 1], [], []>} : vector<8x256xbf16>, vector<256x128xbf16>, vector<8x128xf32> -> vector<8x128xf32>
    %25 = math.tanh %24 : vector<8x128xf32>
    %26 = arith.truncf %21 : vector<8x128xf32> to vector<8x128xbf16>
    %27 = vector.shape_cast %7 : vector<8x1xi1> to vector<8x1xi1>
    %28 = vector.broadcast %27 : vector<8x1xi1> to vector<8x128xi1>
    %29 = arith.select %28, %26, %16 : vector<8x128xi1>, vector<8x128xbf16>
    %30 = arith.truncf %25 : vector<8x128xf32> to vector<8x128xbf16>
    %31 = vector.shape_cast %7 : vector<8x1xi1> to vector<8x1xi1>
    %32 = vector.broadcast %31 : vector<8x1xi1> to vector<8x128xi1>
    %33 = arith.select %32, %30, %17 : vector<8x128xi1>, vector<8x128xbf16>
    %c0_24 = arith.constant 0 : index
    %c128_25 = arith.constant 128 : index
    %34 = vector.load %arg11[%c0_24, %c128_25] : memref<8x256xbf16, #tpu.memory_space<vmem>>, vector<8x128xbf16>
    tpu.vector_store %arg11[%c0_24, %c128_25], %29 {strides = array<i32>} : memref<8x256xbf16, #tpu.memory_space<vmem>>, vector<8x128xbf16>,
    %c0_26 = arith.constant 0 : index
    %c128_27 = arith.constant 128 : index
    %35 = vector.load %arg12[%c0_26, %c128_27] : memref<8x256xbf16, #tpu.memory_space<vmem>>, vector<8x128xbf16>
    tpu.vector_store %arg12[%c0_26, %c128_27], %33 {strides = array<i32>} : memref<8x256xbf16, #tpu.memory_space<vmem>>, vector<8x128xbf16>,
    %36 = tpu.concatenate %29, %33 in 1 : vector<8x128xbf16>, vector<8x128xbf16> -> vector<8x256xbf16>
    %c0_28 = arith.constant 0 : index
    %c0_29 = arith.constant 0 : index
    %37 = vector.load %arg6[%c0_28, %c0_29] : memref<256x128xbf16, #tpu.memory_space<vmem>>, vector<256x128xbf16>
    %cst_30 = arith.constant dense<0.000000e+00> : vector<8x128xf32>
    %38 = tpu.matmul %36, %37, %cst_30 {dimension_numbers = #tpu.dot_dimension_numbers<[1], [0], [0], [1], [0, 0, 1, 1], [], []>} : vector<8x256xbf16>, vector<256x128xbf16>, vector<8x128xf32> -> vector<8x128xf32>
    %c0_31 = arith.constant 0 : index
    %c0_32 = arith.constant 0 : index
    %39 = vector.load %arg7[%c0_31, %c0_32] : memref<1x128xf32, #tpu.memory_space<vmem>>, vector<1x128xf32>
    %40 = vector.broadcast %39 : vector<1x128xf32> to vector<8x128xf32>
    %41 = arith.addf %38, %40 : vector<8x128xf32>
    %cst_33 = arith.constant dense<0xFF800000> : vector<8xf32>
    %42 = vector.multi_reduction <maximumf>, %41, %cst_33 [1] : vector<8x128xf32> to vector<8xf32>
    %43 = vector.shape_cast %42 : vector<8xf32> to vector<8x1xf32>
    %44 = vector.broadcast %43 : vector<8x1xf32> to vector<8x128xf32>
    %45 = arith.subf %41, %44 : vector<8x128xf32>
    %46 = math.exp %45 : vector<8x128xf32>
    %cst_34 = arith.constant dense<0.000000e+00> : vector<8xf32>
    %47 = vector.multi_reduction <add>, %46, %cst_34 [1] : vector<8x128xf32> to vector<8xf32>
    %48 = vector.shape_cast %47 : vector<8xf32> to vector<8x1xf32>
    %49 = tpu.reciprocal %48 {approx = true} : vector<8x1xf32> -> vector<8x1xf32>
    %50 = arith.mulf %48, %49 : vector<8x1xf32>
    %cst_35 = arith.constant 2.000000e+00 : f32
    %51 = vector.broadcast %cst_35 : f32 to vector<8x1xf32>
    %52 = arith.subf %51, %50 : vector<8x1xf32>
    %53 = arith.mulf %49, %52 : vector<8x1xf32>
    %54 = vector.broadcast %53 : vector<8x1xf32> to vector<8x128xf32>
    %55 = arith.mulf %46, %54 : vector<8x128xf32>
    %56 = arith.truncf %55 : vector<8x128xf32> to vector<8x128xbf16>
    %57 = arith.index_cast %c0_i32_1 : i32 to index
    %c0_36 = arith.constant 0 : index
    %c0_37 = arith.constant 0 : index
    %58 = vector.load %arg10[%57, %c0_36, %c0_37] : memref<3x8x128xbf16, #tpu.memory_space<vmem>>, vector<1x8x128xbf16>
    %59 = vector.shape_cast %58 : vector<1x8x128xbf16> to vector<8x128xbf16>
    %60 = vector.shape_cast %56 : vector<8x128xbf16> to vector<1x8x128xbf16>
    tpu.vector_store %arg10[%57, %c0_36, %c0_37], %60 {strides = array<i32>} : memref<3x8x128xbf16, #tpu.memory_space<vmem>>, vector<1x8x128xbf16>,
    %c1_i32 = arith.constant 1 : i32
    %61 = arith.index_cast %c1_i32 : i32 to index
    %c0_38 = arith.constant 0 : index
    %c0_39 = arith.constant 0 : index
    %62 = vector.load %arg1[%61, %c0_38, %c0_39] : memref<3x8x1xi32, #tpu.memory_space<vmem>>, vector<1x8x1xi32>
    %63 = vector.shape_cast %62 : vector<1x8x1xi32> to vector<8x1xi32>
    %c0_i32_40 = arith.constant 0 : i32
    %64 = vector.broadcast %c0_i32_40 : i32 to vector<8x1xi32>
    %65 = arith.cmpi sge, %63, %64 : vector<8x1xi32>
    %66 = arith.index_cast %c1_i32 : i32 to index
    %c0_41 = arith.constant 0 : index
    %c0_42 = arith.constant 0 : index
    %67 = vector.load %arg2[%66, %c0_41, %c0_42] : memref<3x8x128xbf16, #tpu.memory_space<vmem>>, vector<1x8x128xbf16>
    %68 = vector.shape_cast %67 : vector<1x8x128xbf16> to vector<8x128xbf16>
    %c0_43 = arith.constant 0 : index
    %c0_44 = arith.constant 0 : index
    %69 = vector.load %arg11[%c0_43, %c0_44] : memref<8x256xbf16, #tpu.memory_space<vmem>>, vector<8x128xbf16>
    tpu.vector_store %arg11[%c0_43, %c0_44], %68 {strides = array<i32>} : memref<8x256xbf16, #tpu.memory_space<vmem>>, vector<8x128xbf16>,
    %70 = arith.index_cast %c1_i32 : i32 to index
    %c0_45 = arith.constant 0 : index
    %c0_46 = arith.constant 0 : index
    %71 = vector.load %arg3[%70, %c0_45, %c0_46] : memref<3x8x128xbf16, #tpu.memory_space<vmem>>, vector<1x8x128xbf16>
    %72 = vector.shape_cast %71 : vector<1x8x128xbf16> to vector<8x128xbf16>
    %c0_47 = arith.constant 0 : index
    %c0_48 = arith.constant 0 : index
    %73 = vector.load %arg12[%c0_47, %c0_48] : memref<8x256xbf16, #tpu.memory_space<vmem>>, vector<8x128xbf16>
    tpu.vector_store %arg12[%c0_47, %c0_48], %72 {strides = array<i32>} : memref<8x256xbf16, #tpu.memory_space<vmem>>, vector<8x128xbf16>,
    %c0_49 = arith.constant 0 : index
    %c128_50 = arith.constant 128 : index
    %74 = vector.load %arg11[%c0_49, %c128_50] : memref<8x256xbf16, #tpu.memory_space<vmem>>, vector<8x128xbf16>
    %c0_51 = arith.constant 0 : index
    %c128_52 = arith.constant 128 : index
    %75 = vector.load %arg12[%c0_51, %c128_52] : memref<8x256xbf16, #tpu.memory_space<vmem>>, vector<8x128xbf16>
    %c0_53 = arith.constant 0 : index
    %c0_54 = arith.constant 0 : index
    %76 = vector.load %arg11[%c0_53, %c0_54] : memref<8x256xbf16, #tpu.memory_space<vmem>>, vector<8x256xbf16>
    %c0_55 = arith.constant 0 : index
    %c0_56 = arith.constant 0 : index
    %77 = vector.load %arg4[%c0_55, %c0_56] : memref<256x128xbf16, #tpu.memory_space<vmem>>, vector<256x128xbf16>
    %cst_57 = arith.constant dense<0.000000e+00> : vector<8x128xf32>
    %78 = tpu.matmul %76, %77, %cst_57 {dimension_numbers = #tpu.dot_dimension_numbers<[1], [0], [0], [1], [0, 0, 1, 1], [], []>} : vector<8x256xbf16>, vector<256x128xbf16>, vector<8x128xf32> -> vector<8x128xf32>
    %79 = math.tanh %78 : vector<8x128xf32>
    %c0_58 = arith.constant 0 : index
    %c0_59 = arith.constant 0 : index
    %80 = vector.load %arg12[%c0_58, %c0_59] : memref<8x256xbf16, #tpu.memory_space<vmem>>, vector<8x256xbf16>
    %c0_60 = arith.constant 0 : index
    %c0_61 = arith.constant 0 : index
    %81 = vector.load %arg5[%c0_60, %c0_61] : memref<256x128xbf16, #tpu.memory_space<vmem>>, vector<256x128xbf16>
    %cst_62 = arith.constant dense<0.000000e+00> : vector<8x128xf32>
    %82 = tpu.matmul %80, %81, %cst_62 {dimension_numbers = #tpu.dot_dimension_numbers<[1], [0], [0], [1], [0, 0, 1, 1], [], []>} : vector<8x256xbf16>, vector<256x128xbf16>, vector<8x128xf32> -> vector<8x128xf32>
    %83 = math.tanh %82 : vector<8x128xf32>
    %84 = arith.truncf %79 : vector<8x128xf32> to vector<8x128xbf16>
    %85 = vector.shape_cast %65 : vector<8x1xi1> to vector<8x1xi1>
    %86 = vector.broadcast %85 : vector<8x1xi1> to vector<8x128xi1>
    %87 = arith.select %86, %84, %74 : vector<8x128xi1>, vector<8x128xbf16>
    %88 = arith.truncf %83 : vector<8x128xf32> to vector<8x128xbf16>
    %89 = vector.shape_cast %65 : vector<8x1xi1> to vector<8x1xi1>
    %90 = vector.broadcast %89 : vector<8x1xi1> to vector<8x128xi1>
    %91 = arith.select %90, %88, %75 : vector<8x128xi1>, vector<8x128xbf16>
    %c0_63 = arith.constant 0 : index
    %c128_64 = arith.constant 128 : index
    %92 = vector.load %arg11[%c0_63, %c128_64] : memref<8x256xbf16, #tpu.memory_space<vmem>>, vector<8x128xbf16>
    tpu.vector_store %arg11[%c0_63, %c128_64], %87 {strides = array<i32>} : memref<8x256xbf16, #tpu.memory_space<vmem>>, vector<8x128xbf16>,
    %c0_65 = arith.constant 0 : index
    %c128_66 = arith.constant 128 : index
    %93 = vector.load %arg12[%c0_65, %c128_66] : memref<8x256xbf16, #tpu.memory_space<vmem>>, vector<8x128xbf16>
    tpu.vector_store %arg12[%c0_65, %c128_66], %91 {strides = array<i32>} : memref<8x256xbf16, #tpu.memory_space<vmem>>, vector<8x128xbf16>,
    %94 = tpu.concatenate %87, %91 in 1 : vector<8x128xbf16>, vector<8x128xbf16> -> vector<8x256xbf16>
    %c0_67 = arith.constant 0 : index
    %c0_68 = arith.constant 0 : index
    %95 = vector.load %arg6[%c0_67, %c0_68] : memref<256x128xbf16, #tpu.memory_space<vmem>>, vector<256x128xbf16>
    %cst_69 = arith.constant dense<0.000000e+00> : vector<8x128xf32>
    %96 = tpu.matmul %94, %95, %cst_69 {dimension_numbers = #tpu.dot_dimension_numbers<[1], [0], [0], [1], [0, 0, 1, 1], [], []>} : vector<8x256xbf16>, vector<256x128xbf16>, vector<8x128xf32> -> vector<8x128xf32>
    %c0_70 = arith.constant 0 : index
    %c0_71 = arith.constant 0 : index
    %97 = vector.load %arg7[%c0_70, %c0_71] : memref<1x128xf32, #tpu.memory_space<vmem>>, vector<1x128xf32>
    %98 = vector.broadcast %97 : vector<1x128xf32> to vector<8x128xf32>
    %99 = arith.addf %96, %98 : vector<8x128xf32>
    %cst_72 = arith.constant dense<0xFF800000> : vector<8xf32>
    %100 = vector.multi_reduction <maximumf>, %99, %cst_72 [1] : vector<8x128xf32> to vector<8xf32>
    %101 = vector.shape_cast %100 : vector<8xf32> to vector<8x1xf32>
    %102 = vector.broadcast %101 : vector<8x1xf32> to vector<8x128xf32>
    %103 = arith.subf %99, %102 : vector<8x128xf32>
    %104 = math.exp %103 : vector<8x128xf32>
    %cst_73 = arith.constant dense<0.000000e+00> : vector<8xf32>
    %105 = vector.multi_reduction <add>, %104, %cst_73 [1] : vector<8x128xf32> to vector<8xf32>
    %106 = vector.shape_cast %105 : vector<8xf32> to vector<8x1xf32>
    %107 = tpu.reciprocal %106 {approx = true} : vector<8x1xf32> -> vector<8x1xf32>
    %108 = arith.mulf %106, %107 : vector<8x1xf32>
    %cst_74 = arith.constant 2.000000e+00 : f32
    %109 = vector.broadcast %cst_74 : f32 to vector<8x1xf32>
    %110 = arith.subf %109, %108 : vector<8x1xf32>
    %111 = arith.mulf %107, %110 : vector<8x1xf32>
    %112 = vector.broadcast %111 : vector<8x1xf32> to vector<8x128xf32>
    %113 = arith.mulf %104, %112 : vector<8x128xf32>
    %114 = arith.truncf %113 : vector<8x128xf32> to vector<8x128xbf16>
    %115 = arith.index_cast %c1_i32 : i32 to index
    %c0_75 = arith.constant 0 : index
    %c0_76 = arith.constant 0 : index
    %116 = vector.load %arg10[%115, %c0_75, %c0_76] : memref<3x8x128xbf16, #tpu.memory_space<vmem>>, vector<1x8x128xbf16>
    %117 = vector.shape_cast %116 : vector<1x8x128xbf16> to vector<8x128xbf16>
    %118 = vector.shape_cast %114 : vector<8x128xbf16> to vector<1x8x128xbf16>
    tpu.vector_store %arg10[%115, %c0_75, %c0_76], %118 {strides = array<i32>} : memref<3x8x128xbf16, #tpu.memory_space<vmem>>, vector<1x8x128xbf16>,
    %c2_i32 = arith.constant 2 : i32
    %119 = arith.index_cast %c2_i32 : i32 to index
    %c0_77 = arith.constant 0 : index
    %c0_78 = arith.constant 0 : index
    %120 = vector.load %arg1[%119, %c0_77, %c0_78] : memref<3x8x1xi32, #tpu.memory_space<vmem>>, vector<1x8x1xi32>
    %121 = vector.shape_cast %120 : vector<1x8x1xi32> to vector<8x1xi32>
    %c0_i32_79 = arith.constant 0 : i32
    %122 = vector.broadcast %c0_i32_79 : i32 to vector<8x1xi32>
    %123 = arith.cmpi sge, %121, %122 : vector<8x1xi32>
    %124 = arith.index_cast %c2_i32 : i32 to index
    %c0_80 = arith.constant 0 : index
    %c0_81 = arith.constant 0 : index
    %125 = vector.load %arg2[%124, %c0_80, %c0_81] : memref<3x8x128xbf16, #tpu.memory_space<vmem>>, vector<1x8x128xbf16>
    %126 = vector.shape_cast %125 : vector<1x8x128xbf16> to vector<8x128xbf16>
    %c0_82 = arith.constant 0 : index
    %c0_83 = arith.constant 0 : index
    %127 = vector.load %arg11[%c0_82, %c0_83] : memref<8x256xbf16, #tpu.memory_space<vmem>>, vector<8x128xbf16>
    tpu.vector_store %arg11[%c0_82, %c0_83], %126 {strides = array<i32>} : memref<8x256xbf16, #tpu.memory_space<vmem>>, vector<8x128xbf16>,
    %128 = arith.index_cast %c2_i32 : i32 to index
    %c0_84 = arith.constant 0 : index
    %c0_85 = arith.constant 0 : index
    %129 = vector.load %arg3[%128, %c0_84, %c0_85] : memref<3x8x128xbf16, #tpu.memory_space<vmem>>, vector<1x8x128xbf16>
    %130 = vector.shape_cast %129 : vector<1x8x128xbf16> to vector<8x128xbf16>
    %c0_86 = arith.constant 0 : index
    %c0_87 = arith.constant 0 : index
    %131 = vector.load %arg12[%c0_86, %c0_87] : memref<8x256xbf16, #tpu.memory_space<vmem>>, vector<8x128xbf16>
    tpu.vector_store %arg12[%c0_86, %c0_87], %130 {strides = array<i32>} : memref<8x256xbf16, #tpu.memory_space<vmem>>, vector<8x128xbf16>,
    %c0_88 = arith.constant 0 : index
    %c128_89 = arith.constant 128 : index
    %132 = vector.load %arg11[%c0_88, %c128_89] : memref<8x256xbf16, #tpu.memory_space<vmem>>, vector<8x128xbf16>
    %c0_90 = arith.constant 0 : index
    %c128_91 = arith.constant 128 : index
    %133 = vector.load %arg12[%c0_90, %c128_91] : memref<8x256xbf16, #tpu.memory_space<vmem>>, vector<8x128xbf16>
    %c0_92 = arith.constant 0 : index
    %c0_93 = arith.constant 0 : index
    %134 = vector.load %arg11[%c0_92, %c0_93] : memref<8x256xbf16, #tpu.memory_space<vmem>>, vector<8x256xbf16>
    %c0_94 = arith.constant 0 : index
    %c0_95 = arith.constant 0 : index
    %135 = vector.load %arg4[%c0_94, %c0_95] : memref<256x128xbf16, #tpu.memory_space<vmem>>, vector<256x128xbf16>
    %cst_96 = arith.constant dense<0.000000e+00> : vector<8x128xf32>
    %136 = tpu.matmul %134, %135, %cst_96 {dimension_numbers = #tpu.dot_dimension_numbers<[1], [0], [0], [1], [0, 0, 1, 1], [], []>} : vector<8x256xbf16>, vector<256x128xbf16>, vector<8x128xf32> -> vector<8x128xf32>
    %137 = math.tanh %136 : vector<8x128xf32>
    %c0_97 = arith.constant 0 : index
    %c0_98 = arith.constant 0 : index
    %138 = vector.load %arg12[%c0_97, %c0_98] : memref<8x256xbf16, #tpu.memory_space<vmem>>, vector<8x256xbf16>
    %c0_99 = arith.constant 0 : index
    %c0_100 = arith.constant 0 : index
    %139 = vector.load %arg5[%c0_99, %c0_100] : memref<256x128xbf16, #tpu.memory_space<vmem>>, vector<256x128xbf16>
    %cst_101 = arith.constant dense<0.000000e+00> : vector<8x128xf32>
    %140 = tpu.matmul %138, %139, %cst_101 {dimension_numbers = #tpu.dot_dimension_numbers<[1], [0], [0], [1], [0, 0, 1, 1], [], []>} : vector<8x256xbf16>, vector<256x128xbf16>, vector<8x128xf32> -> vector<8x128xf32>
    %141 = math.tanh %140 : vector<8x128xf32>
    %142 = arith.truncf %137 : vector<8x128xf32> to vector<8x128xbf16>
    %143 = vector.shape_cast %123 : vector<8x1xi1> to vector<8x1xi1>
    %144 = vector.broadcast %143 : vector<8x1xi1> to vector<8x128xi1>
    %145 = arith.select %144, %142, %132 : vector<8x128xi1>, vector<8x128xbf16>
    %146 = arith.truncf %141 : vector<8x128xf32> to vector<8x128xbf16>
    %147 = vector.shape_cast %123 : vector<8x1xi1> to vector<8x1xi1>
    %148 = vector.broadcast %147 : vector<8x1xi1> to vector<8x128xi1>
    %149 = arith.select %148, %146, %133 : vector<8x128xi1>, vector<8x128xbf16>
    %c0_102 = arith.constant 0 : index
    %c128_103 = arith.constant 128 : index
    %150 = vector.load %arg11[%c0_102, %c128_103] : memref<8x256xbf16, #tpu.memory_space<vmem>>, vector<8x128xbf16>
    tpu.vector_store %arg11[%c0_102, %c128_103], %145 {strides = array<i32>} : memref<8x256xbf16, #tpu.memory_space<vmem>>, vector<8x128xbf16>,
    %c0_104 = arith.constant 0 : index
    %c128_105 = arith.constant 128 : index
    %151 = vector.load %arg12[%c0_104, %c128_105] : memref<8x256xbf16, #tpu.memory_space<vmem>>, vector<8x128xbf16>
    tpu.vector_store %arg12[%c0_104, %c128_105], %149 {strides = array<i32>} : memref<8x256xbf16, #tpu.memory_space<vmem>>, vector<8x128xbf16>,
    %152 = tpu.concatenate %145, %149 in 1 : vector<8x128xbf16>, vector<8x128xbf16> -> vector<8x256xbf16>
    %c0_106 = arith.constant 0 : index
    %c0_107 = arith.constant 0 : index
    %153 = vector.load %arg6[%c0_106, %c0_107] : memref<256x128xbf16, #tpu.memory_space<vmem>>, vector<256x128xbf16>
    %cst_108 = arith.constant dense<0.000000e+00> : vector<8x128xf32>
    %154 = tpu.matmul %152, %153, %cst_108 {dimension_numbers = #tpu.dot_dimension_numbers<[1], [0], [0], [1], [0, 0, 1, 1], [], []>} : vector<8x256xbf16>, vector<256x128xbf16>, vector<8x128xf32> -> vector<8x128xf32>
    %c0_109 = arith.constant 0 : index
    %c0_110 = arith.constant 0 : index
    %155 = vector.load %arg7[%c0_109, %c0_110] : memref<1x128xf32, #tpu.memory_space<vmem>>, vector<1x128xf32>
    %156 = vector.broadcast %155 : vector<1x128xf32> to vector<8x128xf32>
    %157 = arith.addf %154, %156 : vector<8x128xf32>
    %cst_111 = arith.constant dense<0xFF800000> : vector<8xf32>
    %158 = vector.multi_reduction <maximumf>, %157, %cst_111 [1] : vector<8x128xf32> to vector<8xf32>
    %159 = vector.shape_cast %158 : vector<8xf32> to vector<8x1xf32>
    %160 = vector.broadcast %159 : vector<8x1xf32> to vector<8x128xf32>
    %161 = arith.subf %157, %160 : vector<8x128xf32>
    %162 = math.exp %161 : vector<8x128xf32>
    %cst_112 = arith.constant dense<0.000000e+00> : vector<8xf32>
    %163 = vector.multi_reduction <add>, %162, %cst_112 [1] : vector<8x128xf32> to vector<8xf32>
    %164 = vector.shape_cast %163 : vector<8xf32> to vector<8x1xf32>
    %165 = tpu.reciprocal %164 {approx = true} : vector<8x1xf32> -> vector<8x1xf32>
    %166 = arith.mulf %164, %165 : vector<8x1xf32>
    %cst_113 = arith.constant 2.000000e+00 : f32
    %167 = vector.broadcast %cst_113 : f32 to vector<8x1xf32>
    %168 = arith.subf %167, %166 : vector<8x1xf32>
    %169 = arith.mulf %165, %168 : vector<8x1xf32>
    %170 = vector.broadcast %169 : vector<8x1xf32> to vector<8x128xf32>
    %171 = arith.mulf %162, %170 : vector<8x128xf32>
    %172 = arith.truncf %171 : vector<8x128xf32> to vector<8x128xbf16>
    %173 = arith.index_cast %c2_i32 : i32 to index
    %c0_114 = arith.constant 0 : index
    %c0_115 = arith.constant 0 : index
    %174 = vector.load %arg10[%173, %c0_114, %c0_115] : memref<3x8x128xbf16, #tpu.memory_space<vmem>>, vector<1x8x128xbf16>
    %175 = vector.shape_cast %174 : vector<1x8x128xbf16> to vector<8x128xbf16>
    %176 = vector.shape_cast %172 : vector<8x128xbf16> to vector<1x8x128xbf16>
    tpu.vector_store %arg10[%173, %c0_114, %c0_115], %176 {strides = array<i32>} : memref<3x8x128xbf16, #tpu.memory_space<vmem>>, vector<1x8x128xbf16>,
    %c3_i32 = arith.constant 3 : i32
    return
  }
  func.func @transform_0(%arg0: i32) -> (i32, i32, i32) {
    %c0_i32 = arith.constant 0 : i32
    %c0_i32_0 = arith.constant 0 : i32
    %c0_i32_1 = arith.constant 0 : i32
    return %arg0, %c0_i32, %c0_i32_0 : i32, i32, i32
  }
  func.func @transform_1(%arg0: i32) -> (i32, i32, i32) {
    %c0_i32 = arith.constant 0 : i32
    %c0_i32_0 = arith.constant 0 : i32
    %c0_i32_1 = arith.constant 0 : i32
    return %arg0, %c0_i32, %c0_i32_0 : i32, i32, i32
  }
  func.func @transform_2(%arg0: i32) -> (i32, i32, i32) {
    %c0_i32 = arith.constant 0 : i32
    %c0_i32_0 = arith.constant 0 : i32
    %c0_i32_1 = arith.constant 0 : i32
    return %arg0, %c0_i32, %c0_i32_0 : i32, i32, i32
  }
  func.func @transform_3(%arg0: i32) -> (i32, i32) {
    %c0_i32 = arith.constant 0 : i32
    %c0_i32_0 = arith.constant 0 : i32
    %c0_i32_1 = arith.constant 0 : i32
    return %c0_i32, %c0_i32_0 : i32, i32
  }
  func.func @transform_4(%arg0: i32) -> (i32, i32) {
    %c0_i32 = arith.constant 0 : i32
    %c0_i32_0 = arith.constant 0 : i32
    %c0_i32_1 = arith.constant 0 : i32
    return %c0_i32, %c0_i32_0 : i32, i32
  }
  func.func @transform_5(%arg0: i32) -> (i32, i32) {
    %c0_i32 = arith.constant 0 : i32
    %c0_i32_0 = arith.constant 0 : i32
    %c0_i32_1 = arith.constant 0 : i32
    return %c0_i32, %c0_i32_0 : i32, i32
  }
  func.func @transform_6(%arg0: i32) -> (i32, i32) {
    %c0_i32 = arith.constant 0 : i32
    %c0_i32_0 = arith.constant 0 : i32
    %c0_i32_1 = arith.constant 0 : i32
    return %c0_i32, %c0_i32_0 : i32, i32
  }
  func.func @transform_7(%arg0: i32) -> (i32, i32) {
    %c0_i32 = arith.constant 0 : i32
    %c0_i32_0 = arith.constant 0 : i32
    %c0_i32_1 = arith.constant 0 : i32
    return %c0_i32, %c0_i32_0 : i32, i32
  }
  func.func @transform_8(%arg0: i32) -> (i32, i32) {
    %c0_i32 = arith.constant 0 : i32
    %c0_i32_0 = arith.constant 0 : i32
    %c0_i32_1 = arith.constant 0 : i32
    return %c0_i32, %c0_i32_0 : i32, i32
  }
  func.func @transform_9(%arg0: i32) -> (i32, i32, i32) {
    %c0_i32 = arith.constant 0 : i32
    %c0_i32_0 = arith.constant 0 : i32
    %c0_i32_1 = arith.constant 0 : i32
    return %arg0, %c0_i32, %c0_i32_0 : i32, i32, i32
  }
}

module attributes {stable_mosaic.version = 11 : i64} {
  func.func @_fused_rnn_head_kernel(%arg0: i32, %arg1: memref<3x8x1xi32, #tpu.memory_space<vmem>>, %arg2: memref<3x8x128xbf16, #tpu.memory_space<vmem>>, %arg3: memref<3x8x128xbf16, #tpu.memory_space<vmem>>, %arg4: memref<256x128xbf16, #tpu.memory_space<vmem>>, %arg5: memref<256x128xbf16, #tpu.memory_space<vmem>>, %arg6: memref<256x128xbf16, #tpu.memory_space<vmem>>, %arg7: memref<1x128xf32, #tpu.memory_space<vmem>>, %arg8: memref<1x128xf32, #tpu.memory_space<vmem>>, %arg9: memref<1x128xf32, #tpu.memory_space<vmem>>, %arg10: memref<3x8x128xbf16, #tpu.memory_space<vmem>>, %arg11: memref<8x256xbf16, #tpu.memory_space<vmem>>, %arg12: memref<8x256xbf16, #tpu.memory_space<vmem>>) attributes {dimension_semantics = [#tpu.dimension_semantics<arbitrary>], iteration_bounds = array<i64: 1>, scalar_prefetch = 0 : i64, scratch_operands = 2 : i64, tpu.core_type = #tpu.core_type<tc>, window_params = [{transform_indices = @transform_0, window_bounds = array<i64: 3, 8, 1>}, {transform_indices = @transform_1, window_bounds = array<i64: 3, 8, 128>}, {transform_indices = @transform_2, window_bounds = array<i64: 3, 8, 128>}, {pipeline_mode = #tpu.pipeline_mode<synchronous>, transform_indices = @transform_3, window_bounds = array<i64: 256, 128>}, {pipeline_mode = #tpu.pipeline_mode<synchronous>, transform_indices = @transform_4, window_bounds = array<i64: 256, 128>}, {pipeline_mode = #tpu.pipeline_mode<synchronous>, transform_indices = @transform_5, window_bounds = array<i64: 256, 128>}, {pipeline_mode = #tpu.pipeline_mode<synchronous>, transform_indices = @transform_6, window_bounds = array<i64: 1, 128>}, {pipeline_mode = #tpu.pipeline_mode<synchronous>, transform_indices = @transform_7, window_bounds = array<i64: 1, 128>}, {pipeline_mode = #tpu.pipeline_mode<synchronous>, transform_indices = @transform_8, window_bounds = array<i64: 1, 128>}, {transform_indices = @transform_9, window_bounds = array<i64: 3, 8, 128>}]} {
    %c0_i32 = arith.constant 0 : i32
    %0 = arith.cmpi eq, %arg0, %c0_i32 : i32
    %1 = arith.extui %0 : i1 to i32
    %c0_i32_0 = arith.constant 0 : i32
    %2 = arith.cmpi ne, %1, %c0_i32_0 : i32
    scf.if %2 {
      %c0_116 = arith.constant 0 : index
      %c0_117 = arith.constant 0 : index
      %177 = vector.load %arg8[%c0_116, %c0_117] : memref<1x128xf32, #tpu.memory_space<vmem>>, vector<1x128xf32>
      %178 = vector.shape_cast %177 : vector<1x128xf32> to vector<1x128xf32>
      %179 = vector.broadcast %178 : vector<1x128xf32> to vector<8x128xf32>
      %180 = arith.truncf %179 : vector<8x128xf32> to vector<8x128xbf16>
      %c0_118 = arith.constant 0 : index
      %c128_119 = arith.constant 128 : index
      %181 = vector.load %arg11[%c0_118, %c128_119] : memref<8x256xbf16, #tpu.memory_space<vmem>>, vector<8x128xbf16>
      tpu.vector_store %arg11[%c0_118, %c128_119], %180 {strides = array<i32>} : memref<8x256xbf16, #tpu.memory_space<vmem>>, vector<8x128xbf16>,
      %c0_120 = arith.constant 0 : index
      %c0_121 = arith.constant 0 : index
      %182 = vector.load %arg9[%c0_120, %c0_121] : memref<1x128xf32, #tpu.memory_space<vmem>>, vector<1x128xf32>
      %183 = vector.shape_cast %182 : vector<1x128xf32> to vector<1x128xf32>
      %184 = vector.broadcast %183 : vector<1x128xf32> to vector<8x128xf32>
      %185 = arith.truncf %184 : vector<8x128xf32> to vector<8x128xbf16>
      %c0_122 = arith.constant 0 : index
      %c128_123 = arith.constant 128 : index
      %186 = vector.load %arg12[%c0_122, %c128_123] : memref<8x256xbf16, #tpu.memory_space<vmem>>, vector<8x128xbf16>
      tpu.vector_store %arg12[%c0_122, %c128_123], %185 {strides = array<i32>} : memref<8x256xbf16, #tpu.memory_space<vmem>>, vector<8x128xbf16>,
    } else {
    }
    %c0_i32_1 = arith.constant 0 : i32
    %3 = arith.index_cast %c0_i32_1 : i32 to index
    %c0 = arith.constant 0 : index
    %c0_2 = arith.constant 0 : index
    %4 = vector.load %arg1[%3, %c0, %c0_2] : memref<3x8x1xi32, #tpu.memory_space<vmem>>, vector<1x8x1xi32>
    %5 = vector.shape_cast %4 : vector<1x8x1xi32> to vector<8x1xi32>
    %c0_i32_3 = arith.constant 0 : i32
    %6 = vector.broadcast %c0_i32_3 : i32 to vector<8x1xi32>
    %7 = arith.cmpi sge, %5, %6 : vector<8x1xi32>
    %8 = arith.index_cast %c0_i32_1 : i32 to index
    %c0_4 = arith.constant 0 : index
    %c0_5 = arith.constant 0 : index
    %9 = vector.load %arg2[%8, %c0_4, %c0_5] : memref<3x8x128xbf16, #tpu.memory_space<vmem>>, vector<1x8x128xbf16>
    %10 = vector.shape_cast %9 : vector<1x8x128xbf16> to vector<8x128xbf16>
    %c0_6 = arith.constant 0 : index
    %c0_7 = arith.constant 0 : index
    %11 = vector.load %arg11[%c0_6, %c0_7] : memref<8x256xbf16, #tpu.memory_space<vmem>>, vector<8x128xbf16>
    tpu.vector_store %arg11[%c0_6, %c0_7], %10 {strides = array<i32>} : memref<8x256xbf16, #tpu.memory_space<vmem>>, vector<8x128xbf16>,
    %12 = arith.index_cast %c0_i32_1 : i32 to index
    %c0_8 = arith.constant 0 : index
    %c0_9 = arith.constant 0 : index
    %13 = vector.load %arg3[%12, %c0_8, %c0_9] : memref<3x8x128xbf16, #tpu.memory_space<vmem>>, vector<1x8x128xbf16>
    %14 = vector.shape_cast %13 : vector<1x8x128xbf16> to vector<8x128xbf16>
    %c0_10 = arith.constant 0 : index
    %c0_11 = arith.constant 0 : index
    %15 = vector.load %arg12[%c0_10, %c0_11] : memref<8x256xbf16, #tpu.memory_space<vmem>>, vector<8x128xbf16>
    tpu.vector_store %arg12[%c0_10, %c0_11], %14 {strides = array<i32>} : memref<8x256xbf16, #tpu.memory_space<vmem>>, vector<8x128xbf16>,
    %c0_12 = arith.constant 0 : index
    %c128 = arith.constant 128 : index
    %16 = vector.load %arg11[%c0_12, %c128] : memref<8x256xbf16, #tpu.memory_space<vmem>>, vector<8x128xbf16>
    %c0_13 = arith.constant 0 : index
    %c128_14 = arith.constant 128 : index
    %17 = vector.load %arg12[%c0_13, %c128_14] : memref<8x256xbf16, #tpu.memory_space<vmem>>, vector<8x128xbf16>
    %c0_15 = arith.constant 0 : index
    %c0_16 = arith.constant 0 : index
    %18 = vector.load %arg11[%c0_15, %c0_16] : memref<8x256xbf16, #tpu.memory_space<vmem>>, vector<8x256xbf16>
    %c0_17 = arith.constant 0 : index
    %c0_18 = arith.constant 0 : index
    %19 = vector.load %arg4[%c0_17, %c0_18] : memref<256x128xbf16, #tpu.memory_space<vmem>>, vector<256x128xbf16>
    %cst = arith.constant dense<0.000000e+00> : vector<8x128xf32>
    %20 = tpu.matmul %18, %19, %cst {dimension_numbers = #tpu.dot_dimension_numbers<[1], [0], [0], [1], [0, 0, 1, 1], [], []>} : vector<8x256xbf16>, vector<256x128xbf16>, vector<8x128xf32> -> vector<8x128xf32>
    %21 = math.tanh %20 : vector<8x128xf32>
    %c0_19 = arith.constant 0 : index
    %c0_20 = arith.constant 0 : index
    %22 = vector.load %arg12[%c0_19, %c0_20] : memref<8x256xbf16, #tpu.memory_space<vmem>>, vector<8x256xbf16>
    %c0_21 = arith.constant 0 : index
    %c0_22 = arith.constant 0 : index
    %23 = vector.load %arg5[%c0_21, %c0_22] : memref<256x128xbf16, #tpu.memory_space<vmem>>, vector<256x128xbf16>
    %cst_23 = arith.constant dense<0.000000e+00> : vector<8x128xf32>
    %24 = tpu.matmul %22, %23, %cst_23 {dimension_numbers = #tpu.dot_dimension_numbers<[1], [0], [0], [1], [0, 0, 1, 1], [], []>} : vector<8x256xbf16>, vector<256x128xbf16>, vector<8x128xf32> -> vector<8x128xf32>
    %25 = math.tanh %24 : vector<8x128xf32>
    %26 = arith.truncf %21 : vector<8x128xf32> to vector<8x128xbf16>
    %27 = vector.shape_cast %7 : vector<8x1xi1> to vector<8x1xi1>
    %28 = vector.broadcast %27 : vector<8x1xi1> to vector<8x128xi1>
    %29 = arith.select %28, %26, %16 : vector<8x128xi1>, vector<8x128xbf16>
    %30 = arith.truncf %25 : vector<8x128xf32> to vector<8x128xbf16>
    %31 = vector.shape_cast %7 : vector<8x1xi1> to vector<8x1xi1>
    %32 = vector.broadcast %31 : vector<8x1xi1> to vector<8x128xi1>
    %33 = arith.select %32, %30, %17 : vector<8x128xi1>, vector<8x128xbf16>
    %c0_24 = arith.constant 0 : index
    %c128_25 = arith.constant 128 : index
    %34 = vector.load %arg11[%c0_24, %c128_25] : memref<8x256xbf16, #tpu.memory_space<vmem>>, vector<8x128xbf16>
    tpu.vector_store %arg11[%c0_24, %c128_25], %29 {strides = array<i32>} : memref<8x256xbf16, #tpu.memory_space<vmem>>, vector<8x128xbf16>,
    %c0_26 = arith.constant 0 : index
    %c128_27 = arith.constant 128 : index
    %35 = vector.load %arg12[%c0_26, %c128_27] : memref<8x256xbf16, #tpu.memory_space<vmem>>, vector<8x128xbf16>
    tpu.vector_store %arg12[%c0_26, %c128_27], %33 {strides = array<i32>} : memref<8x256xbf16, #tpu.memory_space<vmem>>, vector<8x128xbf16>,
    %36 = tpu.concatenate %29, %33 in 1 : vector<8x128xbf16>, vector<8x128xbf16> -> vector<8x256xbf16>
    %c0_28 = arith.constant 0 : index
    %c0_29 = arith.constant 0 : index
    %37 = vector.load %arg6[%c0_28, %c0_29] : memref<256x128xbf16, #tpu.memory_space<vmem>>, vector<256x128xbf16>
    %cst_30 = arith.constant dense<0.000000e+00> : vector<8x128xf32>
    %38 = tpu.matmul %36, %37, %cst_30 {dimension_numbers = #tpu.dot_dimension_numbers<[1], [0], [0], [1], [0, 0, 1, 1], [], []>} : vector<8x256xbf16>, vector<256x128xbf16>, vector<8x128xf32> -> vector<8x128xf32>
    %c0_31 = arith.constant 0 : index
    %c0_32 = arith.constant 0 : index
    %39 = vector.load %arg7[%c0_31, %c0_32] : memref<1x128xf32, #tpu.memory_space<vmem>>, vector<1x128xf32>
    %40 = vector.broadcast %39 : vector<1x128xf32> to vector<8x128xf32>
    %41 = arith.addf %38, %40 : vector<8x128xf32>
    %cst_33 = arith.constant dense<0xFF800000> : vector<8xf32>
    %42 = vector.multi_reduction <maximumf>, %41, %cst_33 [1] : vector<8x128xf32> to vector<8xf32>
    %43 = vector.shape_cast %42 : vector<8xf32> to vector<8x1xf32>
    %44 = vector.broadcast %43 : vector<8x1xf32> to vector<8x128xf32>
    %45 = arith.subf %41, %44 : vector<8x128xf32>
    %46 = math.exp %45 : vector<8x128xf32>
    %cst_34 = arith.constant dense<0.000000e+00> : vector<8xf32>
    %47 = vector.multi_reduction <add>, %46, %cst_34 [1] : vector<8x128xf32> to vector<8xf32>
    %48 = vector.shape_cast %47 : vector<8xf32> to vector<8x1xf32>
    %49 = tpu.reciprocal %48 {approx = true} : vector<8x1xf32> -> vector<8x1xf32>
    %50 = arith.mulf %48, %49 : vector<8x1xf32>
    %cst_35 = arith.constant 2.000000e+00 : f32
    %51 = vector.broadcast %cst_35 : f32 to vector<8x1xf32>
    %52 = arith.subf %51, %50 : vector<8x1xf32>
    %53 = arith.mulf %49, %52 : vector<8x1xf32>
    %54 = vector.broadcast %53 : vector<8x1xf32> to vector<8x128xf32>
    %55 = arith.mulf %46, %54 : vector<8x128xf32>
    %56 = arith.truncf %55 : vector<8x128xf32> to vector<8x128xbf16>
    %57 = arith.index_cast %c0_i32_1 : i32 to index
    %c0_36 = arith.constant 0 : index
    %c0_37 = arith.constant 0 : index
    %58 = vector.load %arg10[%57, %c0_36, %c0_37] : memref<3x8x128xbf16, #tpu.memory_space<vmem>>, vector<1x8x128xbf16>
    %59 = vector.shape_cast %58 : vector<1x8x128xbf16> to vector<8x128xbf16>
    %60 = vector.shape_cast %56 : vector<8x128xbf16> to vector<1x8x128xbf16>
    tpu.vector_store %arg10[%57, %c0_36, %c0_37], %60 {strides = array<i32>} : memref<3x8x128xbf16, #tpu.memory_space<vmem>>, vector<1x8x128xbf16>,
    %c1_i32 = arith.constant 1 : i32
    %61 = arith.index_cast %c1_i32 : i32 to index
    %c0_38 = arith.constant 0 : index
    %c0_39 = arith.constant 0 : index
    %62 = vector.load %arg1[%61, %c0_38, %c0_39] : memref<3x8x1xi32, #tpu.memory_space<vmem>>, vector<1x8x1xi32>
    %63 = vector.shape_cast %62 : vector<1x8x1xi32> to vector<8x1xi32>
    %c0_i32_40 = arith.constant 0 : i32
    %64 = vector.broadcast %c0_i32_40 : i32 to vector<8x1xi32>
    %65 = arith.cmpi sge, %63, %64 : vector<8x1xi32>
    %66 = arith.index_cast %c1_i32 : i32 to index
    %c0_41 = arith.constant 0 : index
    %c0_42 = arith.constant 0 : index
    %67 = vector.load %arg2[%66, %c0_41, %c0_42] : memref<3x8x128xbf16, #tpu.memory_space<vmem>>, vector<1x8x128xbf16>
    %68 = vector.shape_cast %67 : vector<1x8x128xbf16> to vector<8x128xbf16>
    %c0_43 = arith.constant 0 : index
    %c0_44 = arith.constant 0 : index
    %69 = vector.load %arg11[%c0_43, %c0_44] : memref<8x256xbf16, #tpu.memory_space<vmem>>, vector<8x128xbf16>
    tpu.vector_store %arg11[%c0_43, %c0_44], %68 {strides = array<i32>} : memref<8x256xbf16, #tpu.memory_space<vmem>>, vector<8x128xbf16>,
    %70 = arith.index_cast %c1_i32 : i32 to index
    %c0_45 = arith.constant 0 : index
    %c0_46 = arith.constant 0 : index
    %71 = vector.load %arg3[%70, %c0_45, %c0_46] : memref<3x8x128xbf16, #tpu.memory_space<vmem>>, vector<1x8x128xbf16>
    %72 = vector.shape_cast %71 : vector<1x8x128xbf16> to vector<8x128xbf16>
    %c0_47 = arith.constant 0 : index
    %c0_48 = arith.constant 0 : index
    %73 = vector.load %arg12[%c0_47, %c0_48] : memref<8x256xbf16, #tpu.memory_space<vmem>>, vector<8x128xbf16>
    tpu.vector_store %arg12[%c0_47, %c0_48], %72 {strides = array<i32>} : memref<8x256xbf16, #tpu.memory_space<vmem>>, vector<8x128xbf16>,
    %c0_49 = arith.constant 0 : index
    %c128_50 = arith.constant 128 : index
    %74 = vector.load %arg11[%c0_49, %c128_50] : memref<8x256xbf16, #tpu.memory_space<vmem>>, vector<8x128xbf16>
    %c0_51 = arith.constant 0 : index
    %c128_52 = arith.constant 128 : index
    %75 = vector.load %arg12[%c0_51, %c128_52] : memref<8x256xbf16, #tpu.memory_space<vmem>>, vector<8x128xbf16>
    %c0_53 = arith.constant 0 : index
    %c0_54 = arith.constant 0 : index
    %76 = vector.load %arg11[%c0_53, %c0_54] : memref<8x256xbf16, #tpu.memory_space<vmem>>, vector<8x256xbf16>
    %c0_55 = arith.constant 0 : index
    %c0_56 = arith.constant 0 : index
    %77 = vector.load %arg4[%c0_55, %c0_56] : memref<256x128xbf16, #tpu.memory_space<vmem>>, vector<256x128xbf16>
    %cst_57 = arith.constant dense<0.000000e+00> : vector<8x128xf32>
    %78 = tpu.matmul %76, %77, %cst_57 {dimension_numbers = #tpu.dot_dimension_numbers<[1], [0], [0], [1], [0, 0, 1, 1], [], []>} : vector<8x256xbf16>, vector<256x128xbf16>, vector<8x128xf32> -> vector<8x128xf32>
    %79 = math.tanh %78 : vector<8x128xf32>
    %c0_58 = arith.constant 0 : index
    %c0_59 = arith.constant 0 : index
    %80 = vector.load %arg12[%c0_58, %c0_59] : memref<8x256xbf16, #tpu.memory_space<vmem>>, vector<8x256xbf16>
    %c0_60 = arith.constant 0 : index
    %c0_61 = arith.constant 0 : index
    %81 = vector.load %arg5[%c0_60, %c0_61] : memref<256x128xbf16, #tpu.memory_space<vmem>>, vector<256x128xbf16>
    %cst_62 = arith.constant dense<0.000000e+00> : vector<8x128xf32>
    %82 = tpu.matmul %80, %81, %cst_62 {dimension_numbers = #tpu.dot_dimension_numbers<[1], [0], [0], [1], [0, 0, 1, 1], [], []>} : vector<8x256xbf16>, vector<256x128xbf16>, vector<8x128xf32> -> vector<8x128xf32>
    %83 = math.tanh %82 : vector<8x128xf32>
    %84 = arith.truncf %79 : vector<8x128xf32> to vector<8x128xbf16>
    %85 = vector.shape_cast %65 : vector<8x1xi1> to vector<8x1xi1>
    %86 = vector.broadcast %85 : vector<8x1xi1> to vector<8x128xi1>
    %87 = arith.select %86, %84, %74 : vector<8x128xi1>, vector<8x128xbf16>
    %88 = arith.truncf %83 : vector<8x128xf32> to vector<8x128xbf16>
    %89 = vector.shape_cast %65 : vector<8x1xi1> to vector<8x1xi1>
    %90 = vector.broadcast %89 : vector<8x1xi1> to vector<8x128xi1>
    %91 = arith.select %90, %88, %75 : vector<8x128xi1>, vector<8x128xbf16>
    %c0_63 = arith.constant 0 : index
    %c128_64 = arith.constant 128 : index
    %92 = vector.load %arg11[%c0_63, %c128_64] : memref<8x256xbf16, #tpu.memory_space<vmem>>, vector<8x128xbf16>
    tpu.vector_store %arg11[%c0_63, %c128_64], %87 {strides = array<i32>} : memref<8x256xbf16, #tpu.memory_space<vmem>>, vector<8x128xbf16>,
    %c0_65 = arith.constant 0 : index
    %c128_66 = arith.constant 128 : index
    %93 = vector.load %arg12[%c0_65, %c128_66] : memref<8x256xbf16, #tpu.memory_space<vmem>>, vector<8x128xbf16>
    tpu.vector_store %arg12[%c0_65, %c128_66], %91 {strides = array<i32>} : memref<8x256xbf16, #tpu.memory_space<vmem>>, vector<8x128xbf16>,
    %94 = tpu.concatenate %87, %91 in 1 : vector<8x128xbf16>, vector<8x128xbf16> -> vector<8x256xbf16>
    %c0_67 = arith.constant 0 : index
    %c0_68 = arith.constant 0 : index
    %95 = vector.load %arg6[%c0_67, %c0_68] : memref<256x128xbf16, #tpu.memory_space<vmem>>, vector<256x128xbf16>
    %cst_69 = arith.constant dense<0.000000e+00> : vector<8x128xf32>
    %96 = tpu.matmul %94, %95, %cst_69 {dimension_numbers = #tpu.dot_dimension_numbers<[1], [0], [0], [1], [0, 0, 1, 1], [], []>} : vector<8x256xbf16>, vector<256x128xbf16>, vector<8x128xf32> -> vector<8x128xf32>
    %c0_70 = arith.constant 0 : index
    %c0_71 = arith.constant 0 : index
    %97 = vector.load %arg7[%c0_70, %c0_71] : memref<1x128xf32, #tpu.memory_space<vmem>>, vector<1x128xf32>
    %98 = vector.broadcast %97 : vector<1x128xf32> to vector<8x128xf32>
    %99 = arith.addf %96, %98 : vector<8x128xf32>
    %cst_72 = arith.constant dense<0xFF800000> : vector<8xf32>
    %100 = vector.multi_reduction <maximumf>, %99, %cst_72 [1] : vector<8x128xf32> to vector<8xf32>
    %101 = vector.shape_cast %100 : vector<8xf32> to vector<8x1xf32>
    %102 = vector.broadcast %101 : vector<8x1xf32> to vector<8x128xf32>
    %103 = arith.subf %99, %102 : vector<8x128xf32>
    %104 = math.exp %103 : vector<8x128xf32>
    %cst_73 = arith.constant dense<0.000000e+00> : vector<8xf32>
    %105 = vector.multi_reduction <add>, %104, %cst_73 [1] : vector<8x128xf32> to vector<8xf32>
    %106 = vector.shape_cast %105 : vector<8xf32> to vector<8x1xf32>
    %107 = tpu.reciprocal %106 {approx = true} : vector<8x1xf32> -> vector<8x1xf32>
    %108 = arith.mulf %106, %107 : vector<8x1xf32>
    %cst_74 = arith.constant 2.000000e+00 : f32
    %109 = vector.broadcast %cst_74 : f32 to vector<8x1xf32>
    %110 = arith.subf %109, %108 : vector<8x1xf32>
    %111 = arith.mulf %107, %110 : vector<8x1xf32>
    %112 = vector.broadcast %111 : vector<8x1xf32> to vector<8x128xf32>
    %113 = arith.mulf %104, %112 : vector<8x128xf32>
    %114 = arith.truncf %113 : vector<8x128xf32> to vector<8x128xbf16>
    %115 = arith.index_cast %c1_i32 : i32 to index
    %c0_75 = arith.constant 0 : index
    %c0_76 = arith.constant 0 : index
    %116 = vector.load %arg10[%115, %c0_75, %c0_76] : memref<3x8x128xbf16, #tpu.memory_space<vmem>>, vector<1x8x128xbf16>
    %117 = vector.shape_cast %116 : vector<1x8x128xbf16> to vector<8x128xbf16>
    %118 = vector.shape_cast %114 : vector<8x128xbf16> to vector<1x8x128xbf16>
    tpu.vector_store %arg10[%115, %c0_75, %c0_76], %118 {strides = array<i32>} : memref<3x8x128xbf16, #tpu.memory_space<vmem>>, vector<1x8x128xbf16>,
    %c2_i32 = arith.constant 2 : i32
    %119 = arith.index_cast %c2_i32 : i32 to index
    %c0_77 = arith.constant 0 : index
    %c0_78 = arith.constant 0 : index
    %120 = vector.load %arg1[%119, %c0_77, %c0_78] : memref<3x8x1xi32, #tpu.memory_space<vmem>>, vector<1x8x1xi32>
    %121 = vector.shape_cast %120 : vector<1x8x1xi32> to vector<8x1xi32>
    %c0_i32_79 = arith.constant 0 : i32
    %122 = vector.broadcast %c0_i32_79 : i32 to vector<8x1xi32>
    %123 = arith.cmpi sge, %121, %122 : vector<8x1xi32>
    %124 = arith.index_cast %c2_i32 : i32 to index
    %c0_80 = arith.constant 0 : index
    %c0_81 = arith.constant 0 : index
    %125 = vector.load %arg2[%124, %c0_80, %c0_81] : memref<3x8x128xbf16, #tpu.memory_space<vmem>>, vector<1x8x128xbf16>
    %126 = vector.shape_cast %125 : vector<1x8x128xbf16> to vector<8x128xbf16>
    %c0_82 = arith.constant 0 : index
    %c0_83 = arith.constant 0 : index
    %127 = vector.load %arg11[%c0_82, %c0_83] : memref<8x256xbf16, #tpu.memory_space<vmem>>, vector<8x128xbf16>
    tpu.vector_store %arg11[%c0_82, %c0_83], %126 {strides = array<i32>} : memref<8x256xbf16, #tpu.memory_space<vmem>>, vector<8x128xbf16>,
    %128 = arith.index_cast %c2_i32 : i32 to index
    %c0_84 = arith.constant 0 : index
    %c0_85 = arith.constant 0 : index
    %129 = vector.load %arg3[%128, %c0_84, %c0_85] : memref<3x8x128xbf16, #tpu.memory_space<vmem>>, vector<1x8x128xbf16>
    %130 = vector.shape_cast %129 : vector<1x8x128xbf16> to vector<8x128xbf16>
    %c0_86 = arith.constant 0 : index
    %c0_87 = arith.constant 0 : index
    %131 = vector.load %arg12[%c0_86, %c0_87] : memref<8x256xbf16, #tpu.memory_space<vmem>>, vector<8x128xbf16>
    tpu.vector_store %arg12[%c0_86, %c0_87], %130 {strides = array<i32>} : memref<8x256xbf16, #tpu.memory_space<vmem>>, vector<8x128xbf16>,
    %c0_88 = arith.constant 0 : index
    %c128_89 = arith.constant 128 : index
    %132 = vector.load %arg11[%c0_88, %c128_89] : memref<8x256xbf16, #tpu.memory_space<vmem>>, vector<8x128xbf16>
    %c0_90 = arith.constant 0 : index
    %c128_91 = arith.constant 128 : index
    %133 = vector.load %arg12[%c0_90, %c128_91] : memref<8x256xbf16, #tpu.memory_space<vmem>>, vector<8x128xbf16>
    %c0_92 = arith.constant 0 : index
    %c0_93 = arith.constant 0 : index
    %134 = vector.load %arg11[%c0_92, %c0_93] : memref<8x256xbf16, #tpu.memory_space<vmem>>, vector<8x256xbf16>
    %c0_94 = arith.constant 0 : index
    %c0_95 = arith.constant 0 : index
    %135 = vector.load %arg4[%c0_94, %c0_95] : memref<256x128xbf16, #tpu.memory_space<vmem>>, vector<256x128xbf16>
    %cst_96 = arith.constant dense<0.000000e+00> : vector<8x128xf32>
    %136 = tpu.matmul %134, %135, %cst_96 {dimension_numbers = #tpu.dot_dimension_numbers<[1], [0], [0], [1], [0, 0, 1, 1], [], []>} : vector<8x256xbf16>, vector<256x128xbf16>, vector<8x128xf32> -> vector<8x128xf32>
    %137 = math.tanh %136 : vector<8x128xf32>
    %c0_97 = arith.constant 0 : index
    %c0_98 = arith.constant 0 : index
    %138 = vector.load %arg12[%c0_97, %c0_98] : memref<8x256xbf16, #tpu.memory_space<vmem>>, vector<8x256xbf16>
    %c0_99 = arith.constant 0 : index
    %c0_100 = arith.constant 0 : index
    %139 = vector.load %arg5[%c0_99, %c0_100] : memref<256x128xbf16, #tpu.memory_space<vmem>>, vector<256x128xbf16>
    %cst_101 = arith.constant dense<0.000000e+00> : vector<8x128xf32>
    %140 = tpu.matmul %138, %139, %cst_101 {dimension_numbers = #tpu.dot_dimension_numbers<[1], [0], [0], [1], [0, 0, 1, 1], [], []>} : vector<8x256xbf16>, vector<256x128xbf16>, vector<8x128xf32> -> vector<8x128xf32>
    %141 = math.tanh %140 : vector<8x128xf32>
    %142 = arith.truncf %137 : vector<8x128xf32> to vector<8x128xbf16>
    %143 = vector.shape_cast %123 : vector<8x1xi1> to vector<8x1xi1>
    %144 = vector.broadcast %143 : vector<8x1xi1> to vector<8x128xi1>
    %145 = arith.select %144, %142, %132 : vector<8x128xi1>, vector<8x128xbf16>
    %146 = arith.truncf %141 : vector<8x128xf32> to vector<8x128xbf16>
    %147 = vector.shape_cast %123 : vector<8x1xi1> to vector<8x1xi1>
    %148 = vector.broadcast %147 : vector<8x1xi1> to vector<8x128xi1>
    %149 = arith.select %148, %146, %133 : vector<8x128xi1>, vector<8x128xbf16>
    %c0_102 = arith.constant 0 : index
    %c128_103 = arith.constant 128 : index
    %150 = vector.load %arg11[%c0_102, %c128_103] : memref<8x256xbf16, #tpu.memory_space<vmem>>, vector<8x128xbf16>
    tpu.vector_store %arg11[%c0_102, %c128_103], %145 {strides = array<i32>} : memref<8x256xbf16, #tpu.memory_space<vmem>>, vector<8x128xbf16>,
    %c0_104 = arith.constant 0 : index
    %c128_105 = arith.constant 128 : index
    %151 = vector.load %arg12[%c0_104, %c128_105] : memref<8x256xbf16, #tpu.memory_space<vmem>>, vector<8x128xbf16>
    tpu.vector_store %arg12[%c0_104, %c128_105], %149 {strides = array<i32>} : memref<8x256xbf16, #tpu.memory_space<vmem>>, vector<8x128xbf16>,
    %152 = tpu.concatenate %145, %149 in 1 : vector<8x128xbf16>, vector<8x128xbf16> -> vector<8x256xbf16>
    %c0_106 = arith.constant 0 : index
    %c0_107 = arith.constant 0 : index
    %153 = vector.load %arg6[%c0_106, %c0_107] : memref<256x128xbf16, #tpu.memory_space<vmem>>, vector<256x128xbf16>
    %cst_108 = arith.constant dense<0.000000e+00> : vector<8x128xf32>
    %154 = tpu.matmul %152, %153, %cst_108 {dimension_numbers = #tpu.dot_dimension_numbers<[1], [0], [0], [1], [0, 0, 1, 1], [], []>} : vector<8x256xbf16>, vector<256x128xbf16>, vector<8x128xf32> -> vector<8x128xf32>
    %c0_109 = arith.constant 0 : index
    %c0_110 = arith.constant 0 : index
    %155 = vector.load %arg7[%c0_109, %c0_110] : memref<1x128xf32, #tpu.memory_space<vmem>>, vector<1x128xf32>
    %156 = vector.broadcast %155 : vector<1x128xf32> to vector<8x128xf32>
    %157 = arith.addf %154, %156 : vector<8x128xf32>
    %cst_111 = arith.constant dense<0xFF800000> : vector<8xf32>
    %158 = vector.multi_reduction <maximumf>, %157, %cst_111 [1] : vector<8x128xf32> to vector<8xf32>
    %159 = vector.shape_cast %158 : vector<8xf32> to vector<8x1xf32>
    %160 = vector.broadcast %159 : vector<8x1xf32> to vector<8x128xf32>
    %161 = arith.subf %157, %160 : vector<8x128xf32>
    %162 = math.exp %161 : vector<8x128xf32>
    %cst_112 = arith.constant dense<0.000000e+00> : vector<8xf32>
    %163 = vector.multi_reduction <add>, %162, %cst_112 [1] : vector<8x128xf32> to vector<8xf32>
    %164 = vector.shape_cast %163 : vector<8xf32> to vector<8x1xf32>
    %165 = tpu.reciprocal %164 {approx = true} : vector<8x1xf32> -> vector<8x1xf32>
    %166 = arith.mulf %164, %165 : vector<8x1xf32>
    %cst_113 = arith.constant 2.000000e+00 : f32
    %167 = vector.broadcast %cst_113 : f32 to vector<8x1xf32>
    %168 = arith.subf %167, %166 : vector<8x1xf32>
    %169 = arith.mulf %165, %168 : vector<8x1xf32>
    %170 = vector.broadcast %169 : vector<8x1xf32> to vector<8x128xf32>
    %171 = arith.mulf %162, %170 : vector<8x128xf32>
    %172 = arith.truncf %171 : vector<8x128xf32> to vector<8x128xbf16>
    %173 = arith.index_cast %c2_i32 : i32 to index
    %c0_114 = arith.constant 0 : index
    %c0_115 = arith.constant 0 : index
    %174 = vector.load %arg10[%173, %c0_114, %c0_115] : memref<3x8x128xbf16, #tpu.memory_space<vmem>>, vector<1x8x128xbf16>
    %175 = vector.shape_cast %174 : vector<1x8x128xbf16> to vector<8x128xbf16>
    %176 = vector.shape_cast %172 : vector<8x128xbf16> to vector<1x8x128xbf16>
    tpu.vector_store %arg10[%173, %c0_114, %c0_115], %176 {strides = array<i32>} : memref<3x8x128xbf16, #tpu.memory_space<vmem>>, vector<1x8x128xbf16>,
    %c3_i32 = arith.constant 3 : i32
    return
  }
  func.func @transform_0(%arg0: i32) -> (i32, i32, i32) {
    %c0_i32 = arith.constant 0 : i32
    %c0_i32_0 = arith.constant 0 : i32
    %c0_i32_1 = arith.constant 0 : i32
    return %arg0, %c0_i32, %c0_i32_0 : i32, i32, i32
  }
  func.func @transform_1(%arg0: i32) -> (i32, i32, i32) {
    %c0_i32 = arith.constant 0 : i32
    %c0_i32_0 = arith.constant 0 : i32
    %c0_i32_1 = arith.constant 0 : i32
    return %arg0, %c0_i32, %c0_i32_0 : i32, i32, i32
  }
  func.func @transform_2(%arg0: i32) -> (i32, i32, i32) {
    %c0_i32 = arith.constant 0 : i32
    %c0_i32_0 = arith.constant 0 : i32
    %c0_i32_1 = arith.constant 0 : i32
    return %arg0, %c0_i32, %c0_i32_0 : i32, i32, i32
  }
  func.func @transform_3(%arg0: i32) -> (i32, i32) {
    %c0_i32 = arith.constant 0 : i32
    %c0_i32_0 = arith.constant 0 : i32
    %c0_i32_1 = arith.constant 0 : i32
    return %c0_i32, %c0_i32_0 : i32, i32
  }
  func.func @transform_4(%arg0: i32) -> (i32, i32) {
    %c0_i32 = arith.constant 0 : i32
    %c0_i32_0 = arith.constant 0 : i32
    %c0_i32_1 = arith.constant 0 : i32
    return %c0_i32, %c0_i32_0 : i32, i32
  }
  func.func @transform_5(%arg0: i32) -> (i32, i32) {
    %c0_i32 = arith.constant 0 : i32
    %c0_i32_0 = arith.constant 0 : i32
    %c0_i32_1 = arith.constant 0 : i32
    return %c0_i32, %c0_i32_0 : i32, i32
  }
  func.func @transform_6(%arg0: i32) -> (i32, i32) {
    %c0_i32 = arith.constant 0 : i32
    %c0_i32_0 = arith.constant 0 : i32
    %c0_i32_1 = arith.constant 0 : i32
    return %c0_i32, %c0_i32_0 : i32, i32
  }
  func.func @transform_7(%arg0: i32) -> (i32, i32) {
    %c0_i32 = arith.constant 0 : i32
    %c0_i32_0 = arith.constant 0 : i32
    %c0_i32_1 = arith.constant 0 : i32
    return %c0_i32, %c0_i32_0 : i32, i32
  }
  func.func @transform_8(%arg0: i32) -> (i32, i32) {
    %c0_i32 = arith.constant 0 : i32
    %c0_i32_0 = arith.constant 0 : i32
    %c0_i32_1 = arith.constant 0 : i32
    return %c0_i32, %c0_i32_0 : i32, i32
  }
  func.func @transform_9(%arg0: i32) -> (i32, i32, i32) {
    %c0_i32 = arith.constant 0 : i32
    %c0_i32_0 = arith.constant 0 : i32
    %c0_i32_1 = arith.constant 0 : i32
    return %arg0, %c0_i32, %c0_i32_0 : i32, i32, i32
  }
}

</mosaic_0001>

<llo_original>
// kernel: tpu_custom_call.1
$region0: #{tpu_custom_call.1}
  #allocation0 [shape = 'u32[]', space=smem, size = 0x4, offset = 0x4, fixed_abs, tag = 'smem constant byte address 0x4 - core index']
  #allocation1 [shape = 'u32[144,128]{1,0:T(1,128)}', space=vmem, size = 0x12000, scoped, tag = 'internal scratch']
  #allocation2 [shape = 'bf16[8,256]{1,0:T(8,128)(2,1)}', space=vmem, size = 0x1000, scoped, tag = 'scratch operand']
  #allocation3 [shape = 'bf16[8,256]{1,0:T(8,128)(2,1)}', space=vmem, size = 0x1000, scoped, tag = 'scratch operand']
  %s0 = inlined_call_operand.vmem [shape: s32[3,8,1], index: 0, kind: input, shape index: {}]
  %s1 = inlined_call_operand.vmem [shape: bf16[3,8,128], index: 1, kind: input, shape index: {}]
  %s2 = inlined_call_operand.vmem [shape: bf16[3,8,128], index: 2, kind: input, shape index: {}]
  %s3 = inlined_call_operand.hbm [shape: bf16[256,128], index: 3, kind: input, shape index: {}]
  %s4 = inlined_call_operand.hbm [shape: bf16[256,128], index: 4, kind: input, shape index: {}]
  %s5 = inlined_call_operand.hbm [shape: bf16[256,128], index: 5, kind: input, shape index: {}]
  %s6 = inlined_call_operand.vmem [shape: f32[1,128], index: 6, kind: input, shape index: {}]
  %s7 = inlined_call_operand.vmem [shape: f32[1,128], index: 7, kind: input, shape index: {}]
  %s8 = inlined_call_operand.vmem [shape: f32[1,128], index: 8, kind: input, shape index: {}]
  %s9 = inlined_call_operand.hbm [shape: bf16[3,8,128], index: 9, kind: output, shape index: {}]
  %s10 = sld [smem:[#allocation0]]
  $region62: #{tpu_custom_call.1} parent=0
    _
  %s12 = ssub.s32 1, %s10
  %s13 = scalar_select 0, %s12, %s10
  $region1: #{tpu_custom_call.1} parent=0
    #allocation4 [shape = 'u8[65536]{0}', space=vmem, size = 0x10000, scoped, tag = 'input window, operand 3, single buffered']
    #allocation5 [shape = 's32[1]{0}', space=sflag, size = 0x4, scoped, tag = 'scoped memory for tpu_custom_call.1']
    #allocation6 [shape = 's32[1]{0}', space=sflag, size = 0x4, scoped, tag = 'scoped memory for tpu_custom_call.1']
    #allocation7 [shape = 'u8[65536]{0}', space=vmem, size = 0x10000, scoped, tag = 'input window, operand 4, single buffered']
    #allocation8 [shape = 's32[1]{0}', space=sflag, size = 0x4, scoped, tag = 'scoped memory for tpu_custom_call.1']
    #allocation9 [shape = 'u8[65536]{0}', space=vmem, size = 0x10000, scoped, tag = 'input window, operand 5, single buffered']
    #allocation10 [shape = 'u8[6144]{0}', space=vmem, size = 0x1800, scoped, tag = 'output window, operand 0, single buffered']
    %14 = vsyncpa [#allocation5], 0
    %15 = vsyncpa [#allocation8], 0
    %16 = vsyncpa [#allocation6], 0
    // Predicated region
    $region2: #{tpu_custom_call.1} parent=1 // pred_check
      _
    $region3: #{tpu_custom_call.1} parent=1 // pred_check_branch
      %18 = sbr.rel (0) target = $region5
    $region4: #{tpu_custom_call.1} parent=1 // pred_region
      _
    $region5: #{tpu_custom_call.1} parent=1 // pred_fallthru
      _
    // Predicated region
    $region6: #{tpu_custom_call.1} parent=1 // pred_check
      _
    $region7: #{tpu_custom_call.1} parent=1 // pred_check_branch
      %20 = sbr.rel (0) target = $region9
    $region8: #{tpu_custom_call.1} parent=1 // pred_region
      _
    $region9: #{tpu_custom_call.1} parent=1 // pred_fallthru
      _
    // Predicated region
    $region10: #{tpu_custom_call.1} parent=1 // pred_check
      _
    $region11: #{tpu_custom_call.1} parent=1 // pred_check_branch
      %22 = sbr.rel (0) target = $region13
    $region12: #{tpu_custom_call.1} parent=1 // pred_region
      _
    $region13: #{tpu_custom_call.1} parent=1 // pred_fallthru
      _
    // Predicated region
    $region14: #{tpu_custom_call.1} parent=1 // pred_check
      _
    $region15: #{tpu_custom_call.1} parent=1 // pred_check_branch
      %24 = sbr.rel (0) target = $region17
    $region16: #{tpu_custom_call.1} parent=1 // pred_region
      %s26 = ssub.s32 2048, 2048
      %27 = vsyncadd [#allocation5], %s26
      %s28 = sshll.u32 [#allocation4], 4
      %s29 = int_to_ptr.vmem [resolvable:$true] %s28
      %34 = dma.hbm_to_vmem [thread:$0]  %s3, 2048, %s29, [#allocation5], 64, 64, 4
    $region17: #{tpu_custom_call.1} parent=1 // pred_fallthru
      _
    // Predicated region
    $region18: #{tpu_custom_call.1} parent=1 // pred_check
      _
    $region19: #{tpu_custom_call.1} parent=1 // pred_check_branch
      %36 = sbr.rel (0) target = $region21
    $region20: #{tpu_custom_call.1} parent=1 // pred_region
      %s38 = ssub.s32 2048, 2048
      %39 = vsyncadd [#allocation8], %s38
      %s40 = sshll.u32 [#allocation7], 4
      %s41 = int_to_ptr.vmem [resolvable:$true] %s40
      %46 = dma.hbm_to_vmem [thread:$0]  %s4, 2048, %s41, [#allocation8], 64, 64, 4
    $region21: #{tpu_custom_call.1} parent=1 // pred_fallthru
      _
    // Predicated region
    $region22: #{tpu_custom_call.1} parent=1 // pred_check
      _
    $region23: #{tpu_custom_call.1} parent=1 // pred_check_branch
      %48 = sbr.rel (0) target = $region25
    $region24: #{tpu_custom_call.1} parent=1 // pred_region
      %s50 = ssub.s32 2048, 2048
      %51 = vsyncadd [#allocation8], %s50
      %s52 = sshll.u32 [#allocation9], 4
      %s53 = int_to_ptr.vmem [resolvable:$true] %s52
      %58 = dma.hbm_to_vmem [thread:$0]  %s5, 2048, %s53, [#allocation8], 64, 64, 4
    $region25: #{tpu_custom_call.1} parent=1 // pred_fallthru
      _
    // Predicated region
    $region26: #{tpu_custom_call.1} parent=1 // pred_check
      _
    $region27: #{tpu_custom_call.1} parent=1 // pred_check_branch
      %60 = sbr.rel (0) target = $region29
    $region28: #{tpu_custom_call.1} parent=1 // pred_region
      _
    $region29: #{tpu_custom_call.1} parent=1 // pred_fallthru
      _
    // Predicated region
    $region30: #{tpu_custom_call.1} parent=1 // pred_check
      _
    $region31: #{tpu_custom_call.1} parent=1 // pred_check_branch
      %62 = sbr.rel (0) target = $region33
    $region32: #{tpu_custom_call.1} parent=1 // pred_region
      _
    $region33: #{tpu_custom_call.1} parent=1 // pred_fallthru
      _
    // Predicated region
    $region34: #{tpu_custom_call.1} parent=1 // pred_check
      _
    $region35: #{tpu_custom_call.1} parent=1 // pred_check_branch
      %64 = sbr.rel (0) target = $region37
    $region36: #{tpu_custom_call.1} parent=1 // pred_region
      _
    $region37: #{tpu_custom_call.1} parent=1 // pred_fallthru
      _
    // Predicated region
    $region38: #{tpu_custom_call.1} parent=1 // pred_check
      _
    $region39: #{tpu_custom_call.1} parent=1 // pred_check_branch
      %66 = sbr.rel (0) target = $region41
    $region40: #{tpu_custom_call.1} parent=1 // pred_region
      %67 = dma.done [#allocation5], 2048
    $region41: #{tpu_custom_call.1} parent=1 // pred_fallthru
      _
    // Predicated region
    $region42: #{tpu_custom_call.1} parent=1 // pred_check
      _
    $region43: #{tpu_custom_call.1} parent=1 // pred_check_branch
      %69 = sbr.rel (0) target = $region45
    $region44: #{tpu_custom_call.1} parent=1 // pred_region
      %70 = dma.done [#allocation8], 2048
    $region45: #{tpu_custom_call.1} parent=1 // pred_fallthru
      _
    // Predicated region
    $region46: #{tpu_custom_call.1} parent=1 // pred_check
      _
    $region47: #{tpu_custom_call.1} parent=1 // pred_check_branch
      %72 = sbr.rel (0) target = $region49
    $region48: #{tpu_custom_call.1} parent=1 // pred_region
      %73 = dma.done [#allocation8], 2048
    $region49: #{tpu_custom_call.1} parent=1 // pred_fallthru
      _
    %p75 = scmp.eq.s32.totalorder 0, 0
    // Predicated region
    $region50: #{tpu_custom_call.1} parent=1 // pred_check
      %p76 = pneg %p75
    $region51: #{tpu_custom_call.1} parent=1 // pred_check_branch
      %78 = sbr.rel (%p76) target = $region53
    $region52: #{tpu_custom_call.1} parent=1 // pred_region
      %v79 = vld [vmem:[%s7] sm:$0x1]
      %v81 = vlaneseq
      %v82 = vshrl.u32 %v81, 7
      %v83 = vsub.s32 0, %v82
      %v84 = vrot.slane %v79, %v83
      %v86 = vpack.c.bf16 %v84, %v84
      %87 = vst [vmem:[#allocation2 + $0x4] sm:$0xf] %v86
      %v88 = vld [vmem:[%s8] sm:$0x1]
      %v90 = vlaneseq
      %v91 = vshrl.u32 %v90, 7
      %v92 = vsub.s32 0, %v91
      %v93 = vrot.slane %v88, %v92
      %v95 = vpack.c.bf16 %v93, %v93
      %96 = vst [vmem:[#allocation3 + $0x4] sm:$0xf] %v95
    $region53: #{tpu_custom_call.1} parent=1 // pred_fallthru
      _
    %v97 = vld [vmem:[%s0] sm:$0xff]
    %vm98 = vcmp.ge.s32.totalorder %v97, 0
    %v99 = vld [vmem:[%s1] sm:$0xf]
    %100 = vst [vmem:[#allocation2] sm:$0xf] %v99
    %v101 = vld [vmem:[%s2] sm:$0xf]
    %102 = vst [vmem:[#allocation3] sm:$0xf] %v101
    %v103 = vld [vmem:[#allocation2 + $0x4] sm:$0xf]
    %v104 = vld [vmem:[#allocation3 + $0x4] sm:$0xf]
    %v105 = vld [vmem:[#allocation2] sm:$0xff]
    %v106 = vld [vmem:[#allocation4] sm:$0xf]
    %v107 = vld [vmem:[#allocation4 + $0x4] sm:$0xf]
    %v108 = vld [vmem:[#allocation4 + $0x8] sm:$0xf]
    %v109 = vld [vmem:[#allocation4 + $0xc] sm:$0xf]
    %v110 = vld [vmem:[#allocation4 + $0x10] sm:$0xf]
    %v111 = vld [vmem:[#allocation4 + $0x14] sm:$0xf]
    %v112 = vld [vmem:[#allocation4 + $0x18] sm:$0xf]
    %v113 = vld [vmem:[#allocation4 + $0x1c] sm:$0xf]
    %v114 = vld [vmem:[#allocation4 + $0x20] sm:$0xf]
    %v115 = vld [vmem:[#allocation4 + $0x24] sm:$0xf]
    %v116 = vld [vmem:[#allocation4 + $0x28] sm:$0xf]
    %v117 = vld [vmem:[#allocation4 + $0x2c] sm:$0xf]
    %v118 = vld [vmem:[#allocation4 + $0x30] sm:$0xf]
    %v119 = vld [vmem:[#allocation4 + $0x34] sm:$0xf]
    %v120 = vld [vmem:[#allocation4 + $0x38] sm:$0xf]
    %v121 = vld [vmem:[#allocation4 + $0x3c] sm:$0xf]
    %v122 = vld [vmem:[#allocation4 + $0x40] sm:$0xf]
    %v123 = vld [vmem:[#allocation4 + $0x44] sm:$0xf]
    %v124 = vld [vmem:[#allocation4 + $0x48] sm:$0xf]
    %v125 = vld [vmem:[#allocation4 + $0x4c] sm:$0xf]
    %v126 = vld [vmem:[#allocation4 + $0x50] sm:$0xf]
    %v127 = vld [vmem:[#allocation4 + $0x54] sm:$0xf]
    %v128 = vld [vmem:[#allocation4 + $0x58] sm:$0xf]
    %v129 = vld [vmem:[#allocation4 + $0x5c] sm:$0xf]
    %v130 = vld [vmem:[#allocation4 + $0x60] sm:$0xf]
    %v131 = vld [vmem:[#allocation4 + $0x64] sm:$0xf]
    %v132 = vld [vmem:[#allocation4 + $0x68] sm:$0xf]
    %v133 = vld [vmem:[#allocation4 + $0x6c] sm:$0xf]
    %v134 = vld [vmem:[#allocation4 + $0x70] sm:$0xf]
    %v135 = vld [vmem:[#allocation4 + $0x74] sm:$0xf]
    %v136 = vld [vmem:[#allocation4 + $0x78] sm:$0xf]
    %v137 = vld [vmem:[#allocation4 + $0x7c] sm:$0xf]
    %v139 = vunpack.c.l.b16 %v105
    %v140 = vunpack.c.h.b16 %v105
    %v141 = vpack.c.b16 %v139, %v139
    %v142 = vpack.c.b16 %v140, %v140
    %v177 = vunpack.c.l.b16 %v106
    %v178 = vunpack.c.l.b16 %v107
    %v179 = vunpack.c.l.b16 %v108
    %v180 = vunpack.c.l.b16 %v109
    %v181 = vunpack.c.l.b16 %v110
    %v182 = vunpack.c.l.b16 %v111
    %v183 = vunpack.c.l.b16 %v112
    %v184 = vunpack.c.l.b16 %v113
    %v185 = vunpack.c.l.b16 %v114
    %v186 = vunpack.c.l.b16 %v115
    %v187 = vunpack.c.l.b16 %v116
    %v188 = vunpack.c.l.b16 %v117
    %v189 = vunpack.c.l.b16 %v118
    %v190 = vunpack.c.l.b16 %v119
    %v191 = vunpack.c.l.b16 %v120
    %v192 = vunpack.c.l.b16 %v121
    %v193 = vunpack.c.l.b16 %v122
    %v194 = vunpack.c.l.b16 %v123
    %v195 = vunpack.c.l.b16 %v124
    %v196 = vunpack.c.l.b16 %v125
    %v197 = vunpack.c.l.b16 %v126
    %v198 = vunpack.c.l.b16 %v127
    %v199 = vunpack.c.l.b16 %v128
    %v200 = vunpack.c.l.b16 %v129
    %v201 = vunpack.c.l.b16 %v130
    %v202 = vunpack.c.l.b16 %v131
    %v203 = vunpack.c.l.b16 %v132
    %v204 = vunpack.c.l.b16 %v133
    %v205 = vunpack.c.l.b16 %v134
    %v206 = vunpack.c.l.b16 %v135
    %v207 = vunpack.c.l.b16 %v136
    %v208 = vunpack.c.l.b16 %v137
    %v209 = vpack.c.b16 %v178, %v177
    %v210 = vpack.c.b16 %v180, %v179
    %v211 = vpack.c.b16 %v182, %v181
    %v212 = vpack.c.b16 %v184, %v183
    %v213 = vpack.c.b16 %v186, %v185
    %v214 = vpack.c.b16 %v188, %v187
    %v215 = vpack.c.b16 %v190, %v189
    %v216 = vpack.c.b16 %v192, %v191
    %v217 = vpack.c.b16 %v194, %v193
    %v218 = vpack.c.b16 %v196, %v195
    %v219 = vpack.c.b16 %v198, %v197
    %v220 = vpack.c.b16 %v200, %v199
    %v221 = vpack.c.b16 %v202, %v201
    %v222 = vpack.c.b16 %v204, %v203
    %v223 = vpack.c.b16 %v206, %v205
    %v224 = vpack.c.b16 %v208, %v207
    %241 = vmatprep.subr.bf16.mxu0 0
    %242 = vmatpush1.bf16.msra.mxu0 %v209
    %243 = vmatprep.subr.bf16.mxu0 0
    %244 = vmatpush1.bf16.msra.mxu0 %v210
    %245 = vmatprep.subr.bf16.mxu0 0
    %246 = vmatpush1.bf16.msra.mxu0 %v211
    %247 = vmatprep.subr.bf16.mxu0 0
    %248 = vmatpush1.bf16.msra.mxu0 %v212
    %249 = vmatprep.subr.bf16.mxu0 0
    %250 = vmatpush1.bf16.msra.mxu0 %v213
    %251 = vmatprep.subr.bf16.mxu0 0
    %252 = vmatpush1.bf16.msra.mxu0 %v214
    %253 = vmatprep.subr.bf16.mxu0 0
    %254 = vmatpush1.bf16.msra.mxu0 %v215
    %255 = vmatprep.subr.bf16.mxu0 0
    %256 = vmatpush1.bf16.msra.mxu0 %v216
    %257 = vmatprep.subr.bf16.mxu0 0
    %258 = vmatpush1.bf16.msra.mxu0 %v217
    %259 = vmatprep.subr.bf16.mxu0 0
    %260 = vmatpush1.bf16.msra.mxu0 %v218
    %261 = vmatprep.subr.bf16.mxu0 0
    %262 = vmatpush1.bf16.msra.mxu0 %v219
    %263 = vmatprep.subr.bf16.mxu0 0
    %264 = vmatpush1.bf16.msra.mxu0 %v220
    %265 = vmatprep.subr.bf16.mxu0 0
    %266 = vmatpush1.bf16.msra.mxu0 %v221
    %267 = vmatprep.subr.bf16.mxu0 0
    %268 = vmatpush1.bf16.msra.mxu0 %v222
    %269 = vmatprep.subr.bf16.mxu0 0
    %270 = vmatpush1.bf16.msra.mxu0 %v223
    %271 = vmatprep.subr.bf16.mxu0 0
    %272 = vmatpush1.bf16.msra.mxu0 %v224
    %273 = vmatprep.mubr.bf16.mxu0 %v142
    %274 = vmatmul.mubr.bf16.gmra.mrb[0].mxu0 %v141
    %v275 = vpop.f32.mrb[0].mxu0
    %v276 = vadd.f32 0.0, %v275
    %v277 = vpop.f32.mrb[0].mxu0
    %v278 = vpop.f32.mrb[0].mxu0
    %v279 = vpop.f32.mrb[0].mxu0
    %280 = vdwg.mxu0
    %v281 = vtanh.pop %v276
    %v282 = vld [vmem:[#allocation3] sm:$0xff]
    %v283 = vld [vmem:[#allocation7] sm:$0xf]
    %v284 = vld [vmem:[#allocation7 + $0x4] sm:$0xf]
    %v285 = vld [vmem:[#allocation7 + $0x8] sm:$0xf]
    %v286 = vld [vmem:[#allocation7 + $0xc] sm:$0xf]
    %v287 = vld [vmem:[#allocation7 + $0x10] sm:$0xf]
    %v288 = vld [vmem:[#allocation7 + $0x14] sm:$0xf]
    %v289 = vld [vmem:[#allocation7 + $0x18] sm:$0xf]
    %v290 = vld [vmem:[#allocation7 + $0x1c] sm:$0xf]
    %v291 = vld [vmem:[#allocation7 + $0x20] sm:$0xf]
    %v292 = vld [vmem:[#allocation7 + $0x24] sm:$0xf]
    %v293 = vld [vmem:[#allocation7 + $0x28] sm:$0xf]
    %v294 = vld [vmem:[#allocation7 + $0x2c] sm:$0xf]
    %v295 = vld [vmem:[#allocation7 + $0x30] sm:$0xf]
    %v296 = vld [vmem:[#allocation7 + $0x34] sm:$0xf]
    %v297 = vld [vmem:[#allocation7 + $0x38] sm:$0xf]
    %v298 = vld [vmem:[#allocation7 + $0x3c] sm:$0xf]
    %v299 = vld [vmem:[#allocation7 + $0x40] sm:$0xf]
    %v300 = vld [vmem:[#allocation7 + $0x44] sm:$0xf]
    %v301 = vld [vmem:[#allocation7 + $0x48] sm:$0xf]
    %v302 = vld [vmem:[#allocation7 + $0x4c] sm:$0xf]
    %v303 = vld [vmem:[#allocation7 + $0x50] sm:$0xf]
    %v304 = vld [vmem:[#allocation7 + $0x54] sm:$0xf]
    %v305 = vld [vmem:[#allocation7 + $0x58] sm:$0xf]
    %v306 = vld [vmem:[#allocation7 + $0x5c] sm:$0xf]
    %v307 = vld [vmem:[#allocation7 + $0x60] sm:$0xf]
    %v308 = vld [vmem:[#allocation7 + $0x64] sm:$0xf]
    %v309 = vld [vmem:[#allocation7 + $0x68] sm:$0xf]
    %v310 = vld [vmem:[#allocation7 + $0x6c] sm:$0xf]
    %v311 = vld [vmem:[#allocation7 + $0x70] sm:$0xf]
    %v312 = vld [vmem:[#allocation7 + $0x74] sm:$0xf]
    %v313 = vld [vmem:[#allocation7 + $0x78] sm:$0xf]
    %v314 = vld [vmem:[#allocation7 + $0x7c] sm:$0xf]
    %v316 = vunpack.c.l.b16 %v282
    %v317 = vunpack.c.h.b16 %v282
    %v318 = vpack.c.b16 %v316, %v316
    %v319 = vpack.c.b16 %v317, %v317
    %v354 = vunpack.c.l.b16 %v283
    %v355 = vunpack.c.l.b16 %v284
    %v356 = vunpack.c.l.b16 %v285
    %v357 = vunpack.c.l.b16 %v286
    %v358 = vunpack.c.l.b16 %v287
    %v359 = vunpack.c.l.b16 %v288
    %v360 = vunpack.c.l.b16 %v289
    %v361 = vunpack.c.l.b16 %v290
    %v362 = vunpack.c.l.b16 %v291
    %v363 = vunpack.c.l.b16 %v292
    %v364 = vunpack.c.l.b16 %v293
    %v365 = vunpack.c.l.b16 %v294
    %v366 = vunpack.c.l.b16 %v295
    %v367 = vunpack.c.l.b16 %v296
    %v368 = vunpack.c.l.b16 %v297
    %v369 = vunpack.c.l.b16 %v298
    %v370 = vunpack.c.l.b16 %v299
    %v371 = vunpack.c.l.b16 %v300
    %v372 = vunpack.c.l.b16 %v301
    %v373 = vunpack.c.l.b16 %v302
    %v374 = vunpack.c.l.b16 %v303
    %v375 = vunpack.c.l.b16 %v304
    %v376 = vunpack.c.l.b16 %v305
    %v377 = vunpack.c.l.b16 %v306
    %v378 = vunpack.c.l.b16 %v307
    %v379 = vunpack.c.l.b16 %v308
    %v380 = vunpack.c.l.b16 %v309
    %v381 = vunpack.c.l.b16 %v310
    %v382 = vunpack.c.l.b16 %v311
    %v383 = vunpack.c.l.b16 %v312
    %v384 = vunpack.c.l.b16 %v313
    %v385 = vunpack.c.l.b16 %v314
    %v386 = vpack.c.b16 %v355, %v354
    %v387 = vpack.c.b16 %v357, %v356
    %v388 = vpack.c.b16 %v359, %v358
    %v389 = vpack.c.b16 %v361, %v360
    %v390 = vpack.c.b16 %v363, %v362
    %v391 = vpack.c.b16 %v365, %v364
    %v392 = vpack.c.b16 %v367, %v366
    %v393 = vpack.c.b16 %v369, %v368
    %v394 = vpack.c.b16 %v371, %v370
    %v395 = vpack.c.b16 %v373, %v372
    %v396 = vpack.c.b16 %v375, %v374
    %v397 = vpack.c.b16 %v377, %v376
    %v398 = vpack.c.b16 %v379, %v378
    %v399 = vpack.c.b16 %v381, %v380
    %v400 = vpack.c.b16 %v383, %v382
    %v401 = vpack.c.b16 %v385, %v384
    %418 = vmatprep.subr.bf16.mxu0 0
    %419 = vmatpush1.bf16.msra.mxu0 %v386
    %420 = vmatprep.subr.bf16.mxu0 0
    %421 = vmatpush1.bf16.msra.mxu0 %v387
    %422 = vmatprep.subr.bf16.mxu0 0
    %423 = vmatpush1.bf16.msra.mxu0 %v388
    %424 = vmatprep.subr.bf16.mxu0 0
    %425 = vmatpush1.bf16.msra.mxu0 %v389
    %426 = vmatprep.subr.bf16.mxu0 0
    %427 = vmatpush1.bf16.msra.mxu0 %v390
    %428 = vmatprep.subr.bf16.mxu0 0
    %429 = vmatpush1.bf16.msra.mxu0 %v391
    %430 = vmatprep.subr.bf16.mxu0 0
    %431 = vmatpush1.bf16.msra.mxu0 %v392
    %432 = vmatprep.subr.bf16.mxu0 0
    %433 = vmatpush1.bf16.msra.mxu0 %v393
    %434 = vmatprep.subr.bf16.mxu0 0
    %435 = vmatpush1.bf16.msra.mxu0 %v394
    %436 = vmatprep.subr.bf16.mxu0 0
    %437 = vmatpush1.bf16.msra.mxu0 %v395
    %438 = vmatprep.subr.bf16.mxu0 0
    %439 = vmatpush1.bf16.msra.mxu0 %v396
    %440 = vmatprep.subr.bf16.mxu0 0
    %441 = vmatpush1.bf16.msra.mxu0 %v397
    %442 = vmatprep.subr.bf16.mxu0 0
    %443 = vmatpush1.bf16.msra.mxu0 %v398
    %444 = vmatprep.subr.bf16.mxu0 0
    %445 = vmatpush1.bf16.msra.mxu0 %v399
    %446 = vmatprep.subr.bf16.mxu0 0
    %447 = vmatpush1.bf16.msra.mxu0 %v400
    %448 = vmatprep.subr.bf16.mxu0 0
    %449 = vmatpush1.bf16.msra.mxu0 %v401
    %450 = vmatprep.mubr.bf16.mxu0 %v319
    %451 = vmatmul.mubr.bf16.gmra.mrb[0].mxu0 %v318
    %v452 = vpop.f32.mrb[0].mxu0
    %v453 = vadd.f32 0.0, %v452
    %v454 = vpop.f32.mrb[0].mxu0
    %v455 = vpop.f32.mrb[0].mxu0
    %v456 = vpop.f32.mrb[0].mxu0
    %457 = vdwg.mxu0
    %v458 = vtanh.pop %v453
    %v459 = vpack.c.bf16 %v281, %v281
    %v460 = vsel %vm98, 1, 0
    %461 = vset.pattern.permute.xlu0 0
    %462 = vperm.xlu0 %461, %v460
    %v463 = vpop.permute.xlu0 %462
    %vm464 = vcmp.eq.s32.totalorder %v463, 1
    %vm465 = vmpackc.low %vm464, %vm464
    %v466 = vsel %vm465, %v459, %v103
    %v467 = vpack.c.bf16 %v458, %v458
    %v468 = vsel %vm465, %v467, %v104
    %469 = vst [vmem:[#allocation2 + $0x4] sm:$0xf] %v466
    %470 = vst [vmem:[#allocation3 + $0x4] sm:$0xf] %v468
    %v471 = vld [vmem:[#allocation9] sm:$0xf]
    %v472 = vld [vmem:[#allocation9 + $0x4] sm:$0xf]
    %v473 = vld [vmem:[#allocation9 + $0x8] sm:$0xf]
    %v474 = vld [vmem:[#allocation9 + $0xc] sm:$0xf]
    %v475 = vld [vmem:[#allocation9 + $0x10] sm:$0xf]
    %v476 = vld [vmem:[#allocation9 + $0x14] sm:$0xf]
    %v477 = vld [vmem:[#allocation9 + $0x18] sm:$0xf]
    %v478 = vld [vmem:[#allocation9 + $0x1c] sm:$0xf]
    %v479 = vld [vmem:[#allocation9 + $0x20] sm:$0xf]
    %v480 = vld [vmem:[#allocation9 + $0x24] sm:$0xf]
    %v481 = vld [vmem:[#allocation9 + $0x28] sm:$0xf]
    %v482 = vld [vmem:[#allocation9 + $0x2c] sm:$0xf]
    %v483 = vld [vmem:[#allocation9 + $0x30] sm:$0xf]
    %v484 = vld [vmem:[#allocation9 + $0x34] sm:$0xf]
    %v485 = vld [vmem:[#allocation9 + $0x38] sm:$0xf]
    %v486 = vld [vmem:[#allocation9 + $0x3c] sm:$0xf]
    %v487 = vld [vmem:[#allocation9 + $0x40] sm:$0xf]
    %v488 = vld [vmem:[#allocation9 + $0x44] sm:$0xf]
    %v489 = vld [vmem:[#allocation9 + $0x48] sm:$0xf]
    %v490 = vld [vmem:[#allocation9 + $0x4c] sm:$0xf]
    %v491 = vld [vmem:[#allocation9 + $0x50] sm:$0xf]
    %v492 = vld [vmem:[#allocation9 + $0x54] sm:$0xf]
    %v493 = vld [vmem:[#allocation9 + $0x58] sm:$0xf]
    %v494 = vld [vmem:[#allocation9 + $0x5c] sm:$0xf]
    %v495 = vld [vmem:[#allocation9 + $0x60] sm:$0xf]
    %v496 = vld [vmem:[#allocation9 + $0x64] sm:$0xf]
    %v497 = vld [vmem:[#allocation9 + $0x68] sm:$0xf]
    %v498 = vld [vmem:[#allocation9 + $0x6c] sm:$0xf]
    %v499 = vld [vmem:[#allocation9 + $0x70] sm:$0xf]
    %v500 = vld [vmem:[#allocation9 + $0x74] sm:$0xf]
    %v501 = vld [vmem:[#allocation9 + $0x78] sm:$0xf]
    %v502 = vld [vmem:[#allocation9 + $0x7c] sm:$0xf]
    %v503 = vld [vmem:[%s6] sm:$0x1]
    %v505 = vlaneseq
    %v506 = vshrl.u32 %v505, 7
    %v507 = vsub.s32 0, %v506
    %v508 = vrot.slane %v503, %v507
    %v542 = vunpack.c.l.b16 %v471
    %v543 = vunpack.c.l.b16 %v472
    %v544 = vunpack.c.l.b16 %v473
    %v545 = vunpack.c.l.b16 %v474
    %v546 = vunpack.c.l.b16 %v475
    %v547 = vunpack.c.l.b16 %v476
    %v548 = vunpack.c.l.b16 %v477
    %v549 = vunpack.c.l.b16 %v478
    %v550 = vunpack.c.l.b16 %v479
    %v551 = vunpack.c.l.b16 %v480
    %v552 = vunpack.c.l.b16 %v481
    %v553 = vunpack.c.l.b16 %v482
    %v554 = vunpack.c.l.b16 %v483
    %v555 = vunpack.c.l.b16 %v484
    %v556 = vunpack.c.l.b16 %v485
    %v557 = vunpack.c.l.b16 %v486
    %v558 = vunpack.c.l.b16 %v487
    %v559 = vunpack.c.l.b16 %v488
    %v560 = vunpack.c.l.b16 %v489
    %v561 = vunpack.c.l.b16 %v490
    %v562 = vunpack.c.l.b16 %v491
    %v563 = vunpack.c.l.b16 %v492
    %v564 = vunpack.c.l.b16 %v493
    %v565 = vunpack.c.l.b16 %v494
    %v566 = vunpack.c.l.b16 %v495
    %v567 = vunpack.c.l.b16 %v496
    %v568 = vunpack.c.l.b16 %v497
    %v569 = vunpack.c.l.b16 %v498
    %v570 = vunpack.c.l.b16 %v499
    %v571 = vunpack.c.l.b16 %v500
    %v572 = vunpack.c.l.b16 %v501
    %v573 = vunpack.c.l.b16 %v502
    %v574 = vpack.c.b16 %v543, %v542
    %v575 = vpack.c.b16 %v545, %v544
    %v576 = vpack.c.b16 %v547, %v546
    %v577 = vpack.c.b16 %v549, %v548
    %v578 = vpack.c.b16 %v551, %v550
    %v579 = vpack.c.b16 %v553, %v552
    %v580 = vpack.c.b16 %v555, %v554
    %v581 = vpack.c.b16 %v557, %v556
    %v582 = vpack.c.b16 %v559, %v558
    %v583 = vpack.c.b16 %v561, %v560
    %v584 = vpack.c.b16 %v563, %v562
    %v585 = vpack.c.b16 %v565, %v564
    %v586 = vpack.c.b16 %v567, %v566
    %v587 = vpack.c.b16 %v569, %v568
    %v588 = vpack.c.b16 %v571, %v570
    %v589 = vpack.c.b16 %v573, %v572
    %606 = vmatprep.subr.bf16.mxu0 0
    %607 = vmatpush1.bf16.msra.mxu0 %v574
    %608 = vmatprep.subr.bf16.mxu0 0
    %609 = vmatpush1.bf16.msra.mxu0 %v575
    %610 = vmatprep.subr.bf16.mxu0 0
    %611 = vmatpush1.bf16.msra.mxu0 %v576
    %612 = vmatprep.subr.bf16.mxu0 0
    %613 = vmatpush1.bf16.msra.mxu0 %v577
    %614 = vmatprep.subr.bf16.mxu0 0
    %615 = vmatpush1.bf16.msra.mxu0 %v578
    %616 = vmatprep.subr.bf16.mxu0 0
    %617 = vmatpush1.bf16.msra.mxu0 %v579
    %618 = vmatprep.subr.bf16.mxu0 0
    %619 = vmatpush1.bf16.msra.mxu0 %v580
    %620 = vmatprep.subr.bf16.mxu0 0
    %621 = vmatpush1.bf16.msra.mxu0 %v581
    %622 = vmatprep.subr.bf16.mxu0 0
    %623 = vmatpush1.bf16.msra.mxu0 %v582
    %624 = vmatprep.subr.bf16.mxu0 0
    %625 = vmatpush1.bf16.msra.mxu0 %v583
    %626 = vmatprep.subr.bf16.mxu0 0
    %627 = vmatpush1.bf16.msra.mxu0 %v584
    %628 = vmatprep.subr.bf16.mxu0 0
    %629 = vmatpush1.bf16.msra.mxu0 %v585
    %630 = vmatprep.subr.bf16.mxu0 0
    %631 = vmatpush1.bf16.msra.mxu0 %v586
    %632 = vmatprep.subr.bf16.mxu0 0
    %633 = vmatpush1.bf16.msra.mxu0 %v587
    %634 = vmatprep.subr.bf16.mxu0 0
    %635 = vmatpush1.bf16.msra.mxu0 %v588
    %636 = vmatprep.subr.bf16.mxu0 0
    %637 = vmatpush1.bf16.msra.mxu0 %v589
    %638 = vmatprep.mubr.bf16.mxu0 %v468
    %639 = vmatmul.mubr.bf16.gmra.mrb[0].mxu0 %v466
    %v640 = vpop.f32.mrb[0].mxu0
    %v641 = vadd.f32 %v508, %v640
    %v642 = vpop.f32.mrb[0].mxu0
    %v643 = vpop.f32.mrb[0].mxu0
    %v644 = vpop.f32.mrb[0].mxu0
    %645 = vdwg.mxu0
    %646 = vmax.xlane.f32.xlu0 %v641
    %v647 = vpop.xlane.xlu0 %646
    %v648 = vsub.f32 %v641, %v647
    %v649 = vmul.f32 %v648, 1.442695
    %v650 = vpow.pop %v649
    %651 = vadd.xlane.f32.xlu0 %v650
    %v652 = vpop.xlane.xlu0 %651
    %v653 = vrcp.pop %v652
    %v654 = vmul.f32 %v652, %v653
    %v655 = vsub.f32 2.0, %v654
    %v656 = vmul.f32 %v653, %v655
    %v657 = vmul.f32 %v650, %v656
    %v658 = vpack.c.bf16 %v657, %v657
    %659 = vst [vmem:[#allocation10] sm:$0xf] %v658
    %s660 = scalar_lea.vmem %s0, 8
    %v661 = vld [vmem:[%s660] sm:$0xff]
    %vm662 = vcmp.ge.s32.totalorder %v661, 0
    %s663 = scalar_lea.vmem %s1, 4
    %v664 = vld [vmem:[%s663] sm:$0xf]
    %665 = vst [vmem:[#allocation2] sm:$0xf] %v664
    %s666 = scalar_lea.vmem %s2, 4
    %v667 = vld [vmem:[%s666] sm:$0xf]
    %668 = vst [vmem:[#allocation3] sm:$0xf] %v667
    %v669 = vld [vmem:[#allocation2 + $0x4] sm:$0xf]
    %v670 = vld [vmem:[#allocation3 + $0x4] sm:$0xf]
    %v671 = vld [vmem:[#allocation2] sm:$0xff]
    %v672 = vld [vmem:[#allocation4] sm:$0xf]
    %v673 = vld [vmem:[#allocation4 + $0x4] sm:$0xf]
    %v674 = vld [vmem:[#allocation4 + $0x8] sm:$0xf]
    %v675 = vld [vmem:[#allocation4 + $0xc] sm:$0xf]
    %v676 = vld [vmem:[#allocation4 + $0x10] sm:$0xf]
    %v677 = vld [vmem:[#allocation4 + $0x14] sm:$0xf]
    %v678 = vld [vmem:[#allocation4 + $0x18] sm:$0xf]
    %v679 = vld [vmem:[#allocation4 + $0x1c] sm:$0xf]
    %v680 = vld [vmem:[#allocation4 + $0x20] sm:$0xf]
    %v681 = vld [vmem:[#allocation4 + $0x24] sm:$0xf]
    %v682 = vld [vmem:[#allocation4 + $0x28] sm:$0xf]
    %v683 = vld [vmem:[#allocation4 + $0x2c] sm:$0xf]
    %v684 = vld [vmem:[#allocation4 + $0x30] sm:$0xf]
    %v685 = vld [vmem:[#allocation4 + $0x34] sm:$0xf]
    %v686 = vld [vmem:[#allocation4 + $0x38] sm:$0xf]
    %v687 = vld [vmem:[#allocation4 + $0x3c] sm:$0xf]
    %v688 = vld [vmem:[#allocation4 + $0x40] sm:$0xf]
    %v689 = vld [vmem:[#allocation4 + $0x44] sm:$0xf]
    %v690 = vld [vmem:[#allocation4 + $0x48] sm:$0xf]
    %v691 = vld [vmem:[#allocation4 + $0x4c] sm:$0xf]
    %v692 = vld [vmem:[#allocation4 + $0x50] sm:$0xf]
    %v693 = vld [vmem:[#allocation4 + $0x54] sm:$0xf]
    %v694 = vld [vmem:[#allocation4 + $0x58] sm:$0xf]
    %v695 = vld [vmem:[#allocation4 + $0x5c] sm:$0xf]
    %v696 = vld [vmem:[#allocation4 + $0x60] sm:$0xf]
    %v697 = vld [vmem:[#allocation4 + $0x64] sm:$0xf]
    %v698 = vld [vmem:[#allocation4 + $0x68] sm:$0xf]
    %v699 = vld [vmem:[#allocation4 + $0x6c] sm:$0xf]
    %v700 = vld [vmem:[#allocation4 + $0x70] sm:$0xf]
    %v701 = vld [vmem:[#allocation4 + $0x74] sm:$0xf]
    %v702 = vld [vmem:[#allocation4 + $0x78] sm:$0xf]
    %v703 = vld [vmem:[#allocation4 + $0x7c] sm:$0xf]
    %v705 = vunpack.c.l.b16 %v671
    %v706 = vunpack.c.h.b16 %v671
    %v707 = vpack.c.b16 %v705, %v705
    %v708 = vpack.c.b16 %v706, %v706
    %v743 = vunpack.c.l.b16 %v672
    %v744 = vunpack.c.l.b16 %v673
    %v745 = vunpack.c.l.b16 %v674
    %v746 = vunpack.c.l.b16 %v675
    %v747 = vunpack.c.l.b16 %v676
    %v748 = vunpack.c.l.b16 %v677
    %v749 = vunpack.c.l.b16 %v678
    %v750 = vunpack.c.l.b16 %v679
    %v751 = vunpack.c.l.b16 %v680
    %v752 = vunpack.c.l.b16 %v681
    %v753 = vunpack.c.l.b16 %v682
    %v754 = vunpack.c.l.b16 %v683
    %v755 = vunpack.c.l.b16 %v684
    %v756 = vunpack.c.l.b16 %v685
    %v757 = vunpack.c.l.b16 %v686
    %v758 = vunpack.c.l.b16 %v687
    %v759 = vunpack.c.l.b16 %v688
    %v760 = vunpack.c.l.b16 %v689
    %v761 = vunpack.c.l.b16 %v690
    %v762 = vunpack.c.l.b16 %v691
    %v763 = vunpack.c.l.b16 %v692
    %v764 = vunpack.c.l.b16 %v693
    %v765 = vunpack.c.l.b16 %v694
    %v766 = vunpack.c.l.b16 %v695
    %v767 = vunpack.c.l.b16 %v696
    %v768 = vunpack.c.l.b16 %v697
    %v769 = vunpack.c.l.b16 %v698
    %v770 = vunpack.c.l.b16 %v699
    %v771 = vunpack.c.l.b16 %v700
    %v772 = vunpack.c.l.b16 %v701
    %v773 = vunpack.c.l.b16 %v702
    %v774 = vunpack.c.l.b16 %v703
    %v775 = vpack.c.b16 %v744, %v743
    %v776 = vpack.c.b16 %v746, %v745
    %v777 = vpack.c.b16 %v748, %v747
    %v778 = vpack.c.b16 %v750, %v749
    %v779 = vpack.c.b16 %v752, %v751
    %v780 = vpack.c.b16 %v754, %v753
    %v781 = vpack.c.b16 %v756, %v755
    %v782 = vpack.c.b16 %v758, %v757
    %v783 = vpack.c.b16 %v760, %v759
    %v784 = vpack.c.b16 %v762, %v761
    %v785 = vpack.c.b16 %v764, %v763
    %v786 = vpack.c.b16 %v766, %v765
    %v787 = vpack.c.b16 %v768, %v767
    %v788 = vpack.c.b16 %v770, %v769
    %v789 = vpack.c.b16 %v772, %v771
    %v790 = vpack.c.b16 %v774, %v773
    %807 = vmatprep.subr.bf16.mxu0 0
    %808 = vmatpush1.bf16.msra.mxu0 %v775
    %809 = vmatprep.subr.bf16.mxu0 0
    %810 = vmatpush1.bf16.msra.mxu0 %v776
    %811 = vmatprep.subr.bf16.mxu0 0
    %812 = vmatpush1.bf16.msra.mxu0 %v777
    %813 = vmatprep.subr.bf16.mxu0 0
    %814 = vmatpush1.bf16.msra.mxu0 %v778
    %815 = vmatprep.subr.bf16.mxu0 0
    %816 = vmatpush1.bf16.msra.mxu0 %v779
    %817 = vmatprep.subr.bf16.mxu0 0
    %818 = vmatpush1.bf16.msra.mxu0 %v780
    %819 = vmatprep.subr.bf16.mxu0 0
    %820 = vmatpush1.bf16.msra.mxu0 %v781
    %821 = vmatprep.subr.bf16.mxu0 0
    %822 = vmatpush1.bf16.msra.mxu0 %v782
    %823 = vmatprep.subr.bf16.mxu0 0
    %824 = vmatpush1.bf16.msra.mxu0 %v783
    %825 = vmatprep.subr.bf16.mxu0 0
    %826 = vmatpush1.bf16.msra.mxu0 %v784
    %827 = vmatprep.subr.bf16.mxu0 0
    %828 = vmatpush1.bf16.msra.mxu0 %v785
    %829 = vmatprep.subr.bf16.mxu0 0
    %830 = vmatpush1.bf16.msra.mxu0 %v786
    %831 = vmatprep.subr.bf16.mxu0 0
    %832 = vmatpush1.bf16.msra.mxu0 %v787
    %833 = vmatprep.subr.bf16.mxu0 0
    %834 = vmatpush1.bf16.msra.mxu0 %v788
    %835 = vmatprep.subr.bf16.mxu0 0
    %836 = vmatpush1.bf16.msra.mxu0 %v789
    %837 = vmatprep.subr.bf16.mxu0 0
    %838 = vmatpush1.bf16.msra.mxu0 %v790
    %839 = vmatprep.mubr.bf16.mxu0 %v708
    %840 = vmatmul.mubr.bf16.gmra.mrb[0].mxu0 %v707
    %v841 = vpop.f32.mrb[0].mxu0
    %v842 = vadd.f32 0.0, %v841
    %v843 = vpop.f32.mrb[0].mxu0
    %v844 = vpop.f32.mrb[0].mxu0
    %v845 = vpop.f32.mrb[0].mxu0
    %846 = vdwg.mxu0
    %v847 = vtanh.pop %v842
    %v848 = vld [vmem:[#allocation3] sm:$0xff]
    %v849 = vld [vmem:[#allocation7] sm:$0xf]
    %v850 = vld [vmem:[#allocation7 + $0x4] sm:$0xf]
    %v851 = vld [vmem:[#allocation7 + $0x8] sm:$0xf]
    %v852 = vld [vmem:[#allocation7 + $0xc] sm:$0xf]
    %v853 = vld [vmem:[#allocation7 + $0x10] sm:$0xf]
    %v854 = vld [vmem:[#allocation7 + $0x14] sm:$0xf]
    %v855 = vld [vmem:[#allocation7 + $0x18] sm:$0xf]
    %v856 = vld [vmem:[#allocation7 + $0x1c] sm:$0xf]
    %v857 = vld [vmem:[#allocation7 + $0x20] sm:$0xf]
    %v858 = vld [vmem:[#allocation7 + $0x24] sm:$0xf]
    %v859 = vld [vmem:[#allocation7 + $0x28] sm:$0xf]
    %v860 = vld [vmem:[#allocation7 + $0x2c] sm:$0xf]
    %v861 = vld [vmem:[#allocation7 + $0x30] sm:$0xf]
    %v862 = vld [vmem:[#allocation7 + $0x34] sm:$0xf]
    %v863 = vld [vmem:[#allocation7 + $0x38] sm:$0xf]
    %v864 = vld [vmem:[#allocation7 + $0x3c] sm:$0xf]
    %v865 = vld [vmem:[#allocation7 + $0x40] sm:$0xf]
    %v866 = vld [vmem:[#allocation7 + $0x44] sm:$0xf]
    %v867 = vld [vmem:[#allocation7 + $0x48] sm:$0xf]
    %v868 = vld [vmem:[#allocation7 + $0x4c] sm:$0xf]
    %v869 = vld [vmem:[#allocation7 + $0x50] sm:$0xf]
    %v870 = vld [vmem:[#allocation7 + $0x54] sm:$0xf]
    %v871 = vld [vmem:[#allocation7 + $0x58] sm:$0xf]
    %v872 = vld [vmem:[#allocation7 + $0x5c] sm:$0xf]
    %v873 = vld [vmem:[#allocation7 + $0x60] sm:$0xf]
    %v874 = vld [vmem:[#allocation7 + $0x64] sm:$0xf]
    %v875 = vld [vmem:[#allocation7 + $0x68] sm:$0xf]
    %v876 = vld [vmem:[#allocation7 + $0x6c] sm:$0xf]
    %v877 = vld [vmem:[#allocation7 + $0x70] sm:$0xf]
    %v878 = vld [vmem:[#allocation7 + $0x74] sm:$0xf]
    %v879 = vld [vmem:[#allocation7 + $0x78] sm:$0xf]
    %v880 = vld [vmem:[#allocation7 + $0x7c] sm:$0xf]
    %v882 = vunpack.c.l.b16 %v848
    %v883 = vunpack.c.h.b16 %v848
    %v884 = vpack.c.b16 %v882, %v882
    %v885 = vpack.c.b16 %v883, %v883
    %v920 = vunpack.c.l.b16 %v849
    %v921 = vunpack.c.l.b16 %v850
    %v922 = vunpack.c.l.b16 %v851
    %v923 = vunpack.c.l.b16 %v852
    %v924 = vunpack.c.l.b16 %v853
    %v925 = vunpack.c.l.b16 %v854
    %v926 = vunpack.c.l.b16 %v855
    %v927 = vunpack.c.l.b16 %v856
    %v928 = vunpack.c.l.b16 %v857
    %v929 = vunpack.c.l.b16 %v858
    %v930 = vunpack.c.l.b16 %v859
    %v931 = vunpack.c.l.b16 %v860
    %v932 = vunpack.c.l.b16 %v861
    %v933 = vunpack.c.l.b16 %v862
    %v934 = vunpack.c.l.b16 %v863
    %v935 = vunpack.c.l.b16 %v864
    %v936 = vunpack.c.l.b16 %v865
    %v937 = vunpack.c.l.b16 %v866
    %v938 = vunpack.c.l.b16 %v867
    %v939 = vunpack.c.l.b16 %v868
    %v940 = vunpack.c.l.b16 %v869
    %v941 = vunpack.c.l.b16 %v870
    %v942 = vunpack.c.l.b16 %v871
    %v943 = vunpack.c.l.b16 %v872
    %v944 = vunpack.c.l.b16 %v873
    %v945 = vunpack.c.l.b16 %v874
    %v946 = vunpack.c.l.b16 %v875
    %v947 = vunpack.c.l.b16 %v876
    %v948 = vunpack.c.l.b16 %v877
    %v949 = vunpack.c.l.b16 %v878
    %v950 = vunpack.c.l.b16 %v879
    %v951 = vunpack.c.l.b16 %v880
    %v952 = vpack.c.b16 %v921, %v920
    %v953 = vpack.c.b16 %v923, %v922
    %v954 = vpack.c.b16 %v925, %v924
    %v955 = vpack.c.b16 %v927, %v926
    %v956 = vpack.c.b16 %v929, %v928
    %v957 = vpack.c.b16 %v931, %v930
    %v958 = vpack.c.b16 %v933, %v932
    %v959 = vpack.c.b16 %v935, %v934
    %v960 = vpack.c.b16 %v937, %v936
    %v961 = vpack.c.b16 %v939, %v938
    %v962 = vpack.c.b16 %v941, %v940
    %v963 = vpack.c.b16 %v943, %v942
    %v964 = vpack.c.b16 %v945, %v944
    %v965 = vpack.c.b16 %v947, %v946
    %v966 = vpack.c.b16 %v949, %v948
    %v967 = vpack.c.b16 %v951, %v950
    %984 = vmatprep.subr.bf16.mxu0 0
    %985 = vmatpush1.bf16.msra.mxu0 %v952
    %986 = vmatprep.subr.bf16.mxu0 0
    %987 = vmatpush1.bf16.msra.mxu0 %v953
    %988 = vmatprep.subr.bf16.mxu0 0
    %989 = vmatpush1.bf16.msra.mxu0 %v954
    %990 = vmatprep.subr.bf16.mxu0 0
    %991 = vmatpush1.bf16.msra.mxu0 %v955
    %992 = vmatprep.subr.bf16.mxu0 0
    %993 = vmatpush1.bf16.msra.mxu0 %v956
    %994 = vmatprep.subr.bf16.mxu0 0
    %995 = vmatpush1.bf16.msra.mxu0 %v957
    %996 = vmatprep.subr.bf16.mxu0 0
    %997 = vmatpush1.bf16.msra.mxu0 %v958
    %998 = vmatprep.subr.bf16.mxu0 0
    %999 = vmatpush1.bf16.msra.mxu0 %v959
    %1000 = vmatprep.subr.bf16.mxu0 0
    %1001 = vmatpush1.bf16.msra.mxu0 %v960
    %1002 = vmatprep.subr.bf16.mxu0 0
    %1003 = vmatpush1.bf16.msra.mxu0 %v961
    %1004 = vmatprep.subr.bf16.mxu0 0
    %1005 = vmatpush1.bf16.msra.mxu0 %v962
    %1006 = vmatprep.subr.bf16.mxu0 0
    %1007 = vmatpush1.bf16.msra.mxu0 %v963
    %1008 = vmatprep.subr.bf16.mxu0 0
    %1009 = vmatpush1.bf16.msra.mxu0 %v964
    %1010 = vmatprep.subr.bf16.mxu0 0
    %1011 = vmatpush1.bf16.msra.mxu0 %v965
    %1012 = vmatprep.subr.bf16.mxu0 0
    %1013 = vmatpush1.bf16.msra.mxu0 %v966
    %1014 = vmatprep.subr.bf16.mxu0 0
    %1015 = vmatpush1.bf16.msra.mxu0 %v967
    %1016 = vmatprep.mubr.bf16.mxu0 %v885
    %1017 = vmatmul.mubr.bf16.gmra.mrb[0].mxu0 %v884
    %v1018 = vpop.f32.mrb[0].mxu0
    %v1019 = vadd.f32 0.0, %v1018
    %v1020 = vpop.f32.mrb[0].mxu0
    %v1021 = vpop.f32.mrb[0].mxu0
    %v1022 = vpop.f32.mrb[0].mxu0
    %1023 = vdwg.mxu0
    %v1024 = vtanh.pop %v1019
    %v1025 = vpack.c.bf16 %v847, %v847
    %v1026 = vsel %vm662, 1, 0
    %1027 = vset.pattern.permute.xlu0 0
    %1028 = vperm.xlu0 %1027, %v1026
    %v1029 = vpop.permute.xlu0 %1028
    %vm1030 = vcmp.eq.s32.totalorder %v1029, 1
    %vm1031 = vmpackc.low %vm1030, %vm1030
    %v1032 = vsel %vm1031, %v1025, %v669
    %v1033 = vpack.c.bf16 %v1024, %v1024
    %v1034 = vsel %vm1031, %v1033, %v670
    %1035 = vst [vmem:[#allocation2 + $0x4] sm:$0xf] %v1032
    %1036 = vst [vmem:[#allocation3 + $0x4] sm:$0xf] %v1034
    %v1037 = vld [vmem:[#allocation9] sm:$0xf]
    %v1038 = vld [vmem:[#allocation9 + $0x4] sm:$0xf]
    %v1039 = vld [vmem:[#allocation9 + $0x8] sm:$0xf]
    %v1040 = vld [vmem:[#allocation9 + $0xc] sm:$0xf]
    %v1041 = vld [vmem:[#allocation9 + $0x10] sm:$0xf]
    %v1042 = vld [vmem:[#allocation9 + $0x14] sm:$0xf]
    %v1043 = vld [vmem:[#allocation9 + $0x18] sm:$0xf]
    %v1044 = vld [vmem:[#allocation9 + $0x1c] sm:$0xf]
    %v1045 = vld [vmem:[#allocation9 + $0x20] sm:$0xf]
    %v1046 = vld [vmem:[#allocation9 + $0x24] sm:$0xf]
    %v1047 = vld [vmem:[#allocation9 + $0x28] sm:$0xf]
    %v1048 = vld [vmem:[#allocation9 + $0x2c] sm:$0xf]
    %v1049 = vld [vmem:[#allocation9 + $0x30] sm:$0xf]
    %v1050 = vld [vmem:[#allocation9 + $0x34] sm:$0xf]
    %v1051 = vld [vmem:[#allocation9 + $0x38] sm:$0xf]
    %v1052 = vld [vmem:[#allocation9 + $0x3c] sm:$0xf]
    %v1053 = vld [vmem:[#allocation9 + $0x40] sm:$0xf]
    %v1054 = vld [vmem:[#allocation9 + $0x44] sm:$0xf]
    %v1055 = vld [vmem:[#allocation9 + $0x48] sm:$0xf]
    %v1056 = vld [vmem:[#allocation9 + $0x4c] sm:$0xf]
    %v1057 = vld [vmem:[#allocation9 + $0x50] sm:$0xf]
    %v1058 = vld [vmem:[#allocation9 + $0x54] sm:$0xf]
    %v1059 = vld [vmem:[#allocation9 + $0x58] sm:$0xf]
    %v1060 = vld [vmem:[#allocation9 + $0x5c] sm:$0xf]
    %v1061 = vld [vmem:[#allocation9 + $0x60] sm:$0xf]
    %v1062 = vld [vmem:[#allocation9 + $0x64] sm:$0xf]
    %v1063 = vld [vmem:[#allocation9 + $0x68] sm:$0xf]
    %v1064 = vld [vmem:[#allocation9 + $0x6c] sm:$0xf]
    %v1065 = vld [vmem:[#allocation9 + $0x70] sm:$0xf]
    %v1066 = vld [vmem:[#allocation9 + $0x74] sm:$0xf]
    %v1067 = vld [vmem:[#allocation9 + $0x78] sm:$0xf]
    %v1068 = vld [vmem:[#allocation9 + $0x7c] sm:$0xf]
    %v1069 = vld [vmem:[%s6] sm:$0x1]
    %v1071 = vlaneseq
    %v1072 = vshrl.u32 %v1071, 7
    %v1073 = vsub.s32 0, %v1072
    %v1074 = vrot.slane %v1069, %v1073
    %v1108 = vunpack.c.l.b16 %v1037
    %v1109 = vunpack.c.l.b16 %v1038
    %v1110 = vunpack.c.l.b16 %v1039
    %v1111 = vunpack.c.l.b16 %v1040
    %v1112 = vunpack.c.l.b16 %v1041
    %v1113 = vunpack.c.l.b16 %v1042
    %v1114 = vunpack.c.l.b16 %v1043
    %v1115 = vunpack.c.l.b16 %v1044
    %v1116 = vunpack.c.l.b16 %v1045
    %v1117 = vunpack.c.l.b16 %v1046
    %v1118 = vunpack.c.l.b16 %v1047
    %v1119 = vunpack.c.l.b16 %v1048
    %v1120 = vunpack.c.l.b16 %v1049
    %v1121 = vunpack.c.l.b16 %v1050
    %v1122 = vunpack.c.l.b16 %v1051
    %v1123 = vunpack.c.l.b16 %v1052
    %v1124 = vunpack.c.l.b16 %v1053
    %v1125 = vunpack.c.l.b16 %v1054
    %v1126 = vunpack.c.l.b16 %v1055
    %v1127 = vunpack.c.l.b16 %v1056
    %v1128 = vunpack.c.l.b16 %v1057
    %v1129 = vunpack.c.l.b16 %v1058
    %v1130 = vunpack.c.l.b16 %v1059
    %v1131 = vunpack.c.l.b16 %v1060
    %v1132 = vunpack.c.l.b16 %v1061
    %v1133 = vunpack.c.l.b16 %v1062
    %v1134 = vunpack.c.l.b16 %v1063
    %v1135 = vunpack.c.l.b16 %v1064
    %v1136 = vunpack.c.l.b16 %v1065
    %v1137 = vunpack.c.l.b16 %v1066
    %v1138 = vunpack.c.l.b16 %v1067
    %v1139 = vunpack.c.l.b16 %v1068
    %v1140 = vpack.c.b16 %v1109, %v1108
    %v1141 = vpack.c.b16 %v1111, %v1110
    %v1142 = vpack.c.b16 %v1113, %v1112
    %v1143 = vpack.c.b16 %v1115, %v1114
    %v1144 = vpack.c.b16 %v1117, %v1116
    %v1145 = vpack.c.b16 %v1119, %v1118
    %v1146 = vpack.c.b16 %v1121, %v1120
    %v1147 = vpack.c.b16 %v1123, %v1122
    %v1148 = vpack.c.b16 %v1125, %v1124
    %v1149 = vpack.c.b16 %v1127, %v1126
    %v1150 = vpack.c.b16 %v1129, %v1128
    %v1151 = vpack.c.b16 %v1131, %v1130
    %v1152 = vpack.c.b16 %v1133, %v1132
    %v1153 = vpack.c.b16 %v1135, %v1134
    %v1154 = vpack.c.b16 %v1137, %v1136
    %v1155 = vpack.c.b16 %v1139, %v1138
    %1172 = vmatprep.subr.bf16.mxu0 0
    %1173 = vmatpush1.bf16.msra.mxu0 %v1140
    %1174 = vmatprep.subr.bf16.mxu0 0
    %1175 = vmatpush1.bf16.msra.mxu0 %v1141
    %1176 = vmatprep.subr.bf16.mxu0 0
    %1177 = vmatpush1.bf16.msra.mxu0 %v1142
    %1178 = vmatprep.subr.bf16.mxu0 0
    %1179 = vmatpush1.bf16.msra.mxu0 %v1143
    %1180 = vmatprep.subr.bf16.mxu0 0
    %1181 = vmatpush1.bf16.msra.mxu0 %v1144
    %1182 = vmatprep.subr.bf16.mxu0 0
    %1183 = vmatpush1.bf16.msra.mxu0 %v1145
    %1184 = vmatprep.subr.bf16.mxu0 0
    %1185 = vmatpush1.bf16.msra.mxu0 %v1146
    %1186 = vmatprep.subr.bf16.mxu0 0
    %1187 = vmatpush1.bf16.msra.mxu0 %v1147
    %1188 = vmatprep.subr.bf16.mxu0 0
    %1189 = vmatpush1.bf16.msra.mxu0 %v1148
    %1190 = vmatprep.subr.bf16.mxu0 0
    %1191 = vmatpush1.bf16.msra.mxu0 %v1149
    %1192 = vmatprep.subr.bf16.mxu0 0
    %1193 = vmatpush1.bf16.msra.mxu0 %v1150
    %1194 = vmatprep.subr.bf16.mxu0 0
    %1195 = vmatpush1.bf16.msra.mxu0 %v1151
    %1196 = vmatprep.subr.bf16.mxu0 0
    %1197 = vmatpush1.bf16.msra.mxu0 %v1152
    %1198 = vmatprep.subr.bf16.mxu0 0
    %1199 = vmatpush1.bf16.msra.mxu0 %v1153
    %1200 = vmatprep.subr.bf16.mxu0 0
    %1201 = vmatpush1.bf16.msra.mxu0 %v1154
    %1202 = vmatprep.subr.bf16.mxu0 0
    %1203 = vmatpush1.bf16.msra.mxu0 %v1155
    %1204 = vmatprep.mubr.bf16.mxu0 %v1034
    %1205 = vmatmul.mubr.bf16.gmra.mrb[0].mxu0 %v1032
    %v1206 = vpop.f32.mrb[0].mxu0
    %v1207 = vadd.f32 %v1074, %v1206
    %v1208 = vpop.f32.mrb[0].mxu0
    %v1209 = vpop.f32.mrb[0].mxu0
    %v1210 = vpop.f32.mrb[0].mxu0
    %1211 = vdwg.mxu0
    %1212 = vmax.xlane.f32.xlu0 %v1207
    %v1213 = vpop.xlane.xlu0 %1212
    %v1214 = vsub.f32 %v1207, %v1213
    %v1215 = vmul.f32 %v1214, 1.442695
    %v1216 = vpow.pop %v1215
    %1217 = vadd.xlane.f32.xlu0 %v1216
    %v1218 = vpop.xlane.xlu0 %1217
    %v1219 = vrcp.pop %v1218
    %v1220 = vmul.f32 %v1218, %v1219
    %v1221 = vsub.f32 2.0, %v1220
    %v1222 = vmul.f32 %v1219, %v1221
    %v1223 = vmul.f32 %v1216, %v1222
    %v1224 = vpack.c.bf16 %v1223, %v1223
    %s1225 = scalar_lea.vmem [#allocation10], 4
    %1226 = vst [vmem:[%s1225] sm:$0xf] %v1224
    %s1227 = scalar_lea.vmem %s0, 16
    %v1228 = vld [vmem:[%s1227] sm:$0xff]
    %vm1229 = vcmp.ge.s32.totalorder %v1228, 0
    %s1230 = scalar_lea.vmem %s1, 8
    %v1231 = vld [vmem:[%s1230] sm:$0xf]
    %1232 = vst [vmem:[#allocation2] sm:$0xf] %v1231
    %s1233 = scalar_lea.vmem %s2, 8
    %v1234 = vld [vmem:[%s1233] sm:$0xf]
    %1235 = vst [vmem:[#allocation3] sm:$0xf] %v1234
    %v1236 = vld [vmem:[#allocation2 + $0x4] sm:$0xf]
    %v1237 = vld [vmem:[#allocation3 + $0x4] sm:$0xf]
    %v1238 = vld [vmem:[#allocation2] sm:$0xff]
    %v1239 = vld [vmem:[#allocation4] sm:$0xf]
    %v1240 = vld [vmem:[#allocation4 + $0x4] sm:$0xf]
    %v1241 = vld [vmem:[#allocation4 + $0x8] sm:$0xf]
    %v1242 = vld [vmem:[#allocation4 + $0xc] sm:$0xf]
    %v1243 = vld [vmem:[#allocation4 + $0x10] sm:$0xf]
    %v1244 = vld [vmem:[#allocation4 + $0x14] sm:$0xf]
    %v1245 = vld [vmem:[#allocation4 + $0x18] sm:$0xf]
    %v1246 = vld [vmem:[#allocation4 + $0x1c] sm:$0xf]
    %v1247 = vld [vmem:[#allocation4 + $0x20] sm:$0xf]
    %v1248 = vld [vmem:[#allocation4 + $0x24] sm:$0xf]
    %v1249 = vld [vmem:[#allocation4 + $0x28] sm:$0xf]
    %v1250 = vld [vmem:[#allocation4 + $0x2c] sm:$0xf]
    %v1251 = vld [vmem:[#allocation4 + $0x30] sm:$0xf]
    %v1252 = vld [vmem:[#allocation4 + $0x34] sm:$0xf]
    %v1253 = vld [vmem:[#allocation4 + $0x38] sm:$0xf]
    %v1254 = vld [vmem:[#allocation4 + $0x3c] sm:$0xf]
    %v1255 = vld [vmem:[#allocation4 + $0x40] sm:$0xf]
    %v1256 = vld [vmem:[#allocation4 + $0x44] sm:$0xf]
    %v1257 = vld [vmem:[#allocation4 + $0x48] sm:$0xf]
    %v1258 = vld [vmem:[#allocation4 + $0x4c] sm:$0xf]
    %v1259 = vld [vmem:[#allocation4 + $0x50] sm:$0xf]
    %v1260 = vld [vmem:[#allocation4 + $0x54] sm:$0xf]
    %v1261 = vld [vmem:[#allocation4 + $0x58] sm:$0xf]
    %v1262 = vld [vmem:[#allocation4 + $0x5c] sm:$0xf]
    %v1263 = vld [vmem:[#allocation4 + $0x60] sm:$0xf]
    %v1264 = vld [vmem:[#allocation4 + $0x64] sm:$0xf]
    %v1265 = vld [vmem:[#allocation4 + $0x68] sm:$0xf]
    %v1266 = vld [vmem:[#allocation4 + $0x6c] sm:$0xf]
    %v1267 = vld [vmem:[#allocation4 + $0x70] sm:$0xf]
    %v1268 = vld [vmem:[#allocation4 + $0x74] sm:$0xf]
    %v1269 = vld [vmem:[#allocation4 + $0x78] sm:$0xf]
    %v1270 = vld [vmem:[#allocation4 + $0x7c] sm:$0xf]
    %v1272 = vunpack.c.l.b16 %v1238
    %v1273 = vunpack.c.h.b16 %v1238
    %v1274 = vpack.c.b16 %v1272, %v1272
    %v1275 = vpack.c.b16 %v1273, %v1273
    %v1310 = vunpack.c.l.b16 %v1239
    %v1311 = vunpack.c.l.b16 %v1240
    %v1312 = vunpack.c.l.b16 %v1241
    %v1313 = vunpack.c.l.b16 %v1242
    %v1314 = vunpack.c.l.b16 %v1243
    %v1315 = vunpack.c.l.b16 %v1244
    %v1316 = vunpack.c.l.b16 %v1245
    %v1317 = vunpack.c.l.b16 %v1246
    %v1318 = vunpack.c.l.b16 %v1247
    %v1319 = vunpack.c.l.b16 %v1248
    %v1320 = vunpack.c.l.b16 %v1249
    %v1321 = vunpack.c.l.b16 %v1250
    %v1322 = vunpack.c.l.b16 %v1251
    %v1323 = vunpack.c.l.b16 %v1252
    %v1324 = vunpack.c.l.b16 %v1253
    %v1325 = vunpack.c.l.b16 %v1254
    %v1326 = vunpack.c.l.b16 %v1255
    %v1327 = vunpack.c.l.b16 %v1256
    %v1328 = vunpack.c.l.b16 %v1257
    %v1329 = vunpack.c.l.b16 %v1258
    %v1330 = vunpack.c.l.b16 %v1259
    %v1331 = vunpack.c.l.b16 %v1260
    %v1332 = vunpack.c.l.b16 %v1261
    %v1333 = vunpack.c.l.b16 %v1262
    %v1334 = vunpack.c.l.b16 %v1263
    %v1335 = vunpack.c.l.b16 %v1264
    %v1336 = vunpack.c.l.b16 %v1265
    %v1337 = vunpack.c.l.b16 %v1266
    %v1338 = vunpack.c.l.b16 %v1267
    %v1339 = vunpack.c.l.b16 %v1268
    %v1340 = vunpack.c.l.b16 %v1269
    %v1341 = vunpack.c.l.b16 %v1270
    %v1342 = vpack.c.b16 %v1311, %v1310
    %v1343 = vpack.c.b16 %v1313, %v1312
    %v1344 = vpack.c.b16 %v1315, %v1314
    %v1345 = vpack.c.b16 %v1317, %v1316
    %v1346 = vpack.c.b16 %v1319, %v1318
    %v1347 = vpack.c.b16 %v1321, %v1320
    %v1348 = vpack.c.b16 %v1323, %v1322
    %v1349 = vpack.c.b16 %v1325, %v1324
    %v1350 = vpack.c.b16 %v1327, %v1326
    %v1351 = vpack.c.b16 %v1329, %v1328
    %v1352 = vpack.c.b16 %v1331, %v1330
    %v1353 = vpack.c.b16 %v1333, %v1332
    %v1354 = vpack.c.b16 %v1335, %v1334
    %v1355 = vpack.c.b16 %v1337, %v1336
    %v1356 = vpack.c.b16 %v1339, %v1338
    %v1357 = vpack.c.b16 %v1341, %v1340
    %1374 = vmatprep.subr.bf16.mxu0 0
    %1375 = vmatpush1.bf16.msra.mxu0 %v1342
    %1376 = vmatprep.subr.bf16.mxu0 0
    %1377 = vmatpush1.bf16.msra.mxu0 %v1343
    %1378 = vmatprep.subr.bf16.mxu0 0
    %1379 = vmatpush1.bf16.msra.mxu0 %v1344
    %1380 = vmatprep.subr.bf16.mxu0 0
    %1381 = vmatpush1.bf16.msra.mxu0 %v1345
    %1382 = vmatprep.subr.bf16.mxu0 0
    %1383 = vmatpush1.bf16.msra.mxu0 %v1346
    %1384 = vmatprep.subr.bf16.mxu0 0
    %1385 = vmatpush1.bf16.msra.mxu0 %v1347
    %1386 = vmatprep.subr.bf16.mxu0 0
    %1387 = vmatpush1.bf16.msra.mxu0 %v1348
    %1388 = vmatprep.subr.bf16.mxu0 0
    %1389 = vmatpush1.bf16.msra.mxu0 %v1349
    %1390 = vmatprep.subr.bf16.mxu0 0
    %1391 = vmatpush1.bf16.msra.mxu0 %v1350
    %1392 = vmatprep.subr.bf16.mxu0 0
    %1393 = vmatpush1.bf16.msra.mxu0 %v1351
    %1394 = vmatprep.subr.bf16.mxu0 0
    %1395 = vmatpush1.bf16.msra.mxu0 %v1352
    %1396 = vmatprep.subr.bf16.mxu0 0
    %1397 = vmatpush1.bf16.msra.mxu0 %v1353
    %1398 = vmatprep.subr.bf16.mxu0 0
    %1399 = vmatpush1.bf16.msra.mxu0 %v1354
    %1400 = vmatprep.subr.bf16.mxu0 0
    %1401 = vmatpush1.bf16.msra.mxu0 %v1355
    %1402 = vmatprep.subr.bf16.mxu0 0
    %1403 = vmatpush1.bf16.msra.mxu0 %v1356
    %1404 = vmatprep.subr.bf16.mxu0 0
    %1405 = vmatpush1.bf16.msra.mxu0 %v1357
    %1406 = vmatprep.mubr.bf16.mxu0 %v1275
    %1407 = vmatmul.mubr.bf16.gmra.mrb[0].mxu0 %v1274
    %v1408 = vpop.f32.mrb[0].mxu0
    %v1409 = vadd.f32 0.0, %v1408
    %v1410 = vpop.f32.mrb[0].mxu0
    %v1411 = vpop.f32.mrb[0].mxu0
    %v1412 = vpop.f32.mrb[0].mxu0
    %1413 = vdwg.mxu0
    %v1414 = vtanh.pop %v1409
    %v1415 = vld [vmem:[#allocation3] sm:$0xff]
    %v1416 = vld [vmem:[#allocation7] sm:$0xf]
    %v1417 = vld [vmem:[#allocation7 + $0x4] sm:$0xf]
    %v1418 = vld [vmem:[#allocation7 + $0x8] sm:$0xf]
    %v1419 = vld [vmem:[#allocation7 + $0xc] sm:$0xf]
    %v1420 = vld [vmem:[#allocation7 + $0x10] sm:$0xf]
    %v1421 = vld [vmem:[#allocation7 + $0x14] sm:$0xf]
    %v1422 = vld [vmem:[#allocation7 + $0x18] sm:$0xf]
    %v1423 = vld [vmem:[#allocation7 + $0x1c] sm:$0xf]
    %v1424 = vld [vmem:[#allocation7 + $0x20] sm:$0xf]
    %v1425 = vld [vmem:[#allocation7 + $0x24] sm:$0xf]
    %v1426 = vld [vmem:[#allocation7 + $0x28] sm:$0xf]
    %v1427 = vld [vmem:[#allocation7 + $0x2c] sm:$0xf]
    %v1428 = vld [vmem:[#allocation7 + $0x30] sm:$0xf]
    %v1429 = vld [vmem:[#allocation7 + $0x34] sm:$0xf]
    %v1430 = vld [vmem:[#allocation7 + $0x38] sm:$0xf]
    %v1431 = vld [vmem:[#allocation7 + $0x3c] sm:$0xf]
    %v1432 = vld [vmem:[#allocation7 + $0x40] sm:$0xf]
    %v1433 = vld [vmem:[#allocation7 + $0x44] sm:$0xf]
    %v1434 = vld [vmem:[#allocation7 + $0x48] sm:$0xf]
    %v1435 = vld [vmem:[#allocation7 + $0x4c] sm:$0xf]
    %v1436 = vld [vmem:[#allocation7 + $0x50] sm:$0xf]
    %v1437 = vld [vmem:[#allocation7 + $0x54] sm:$0xf]
    %v1438 = vld [vmem:[#allocation7 + $0x58] sm:$0xf]
    %v1439 = vld [vmem:[#allocation7 + $0x5c] sm:$0xf]
    %v1440 = vld [vmem:[#allocation7 + $0x60] sm:$0xf]
    %v1441 = vld [vmem:[#allocation7 + $0x64] sm:$0xf]
    %v1442 = vld [vmem:[#allocation7 + $0x68] sm:$0xf]
    %v1443 = vld [vmem:[#allocation7 + $0x6c] sm:$0xf]
    %v1444 = vld [vmem:[#allocation7 + $0x70] sm:$0xf]
    %v1445 = vld [vmem:[#allocation7 + $0x74] sm:$0xf]
    %v1446 = vld [vmem:[#allocation7 + $0x78] sm:$0xf]
    %v1447 = vld [vmem:[#allocation7 + $0x7c] sm:$0xf]
    %v1449 = vunpack.c.l.b16 %v1415
    %v1450 = vunpack.c.h.b16 %v1415
    %v1451 = vpack.c.b16 %v1449, %v1449
    %v1452 = vpack.c.b16 %v1450, %v1450
    %v1487 = vunpack.c.l.b16 %v1416
    %v1488 = vunpack.c.l.b16 %v1417
    %v1489 = vunpack.c.l.b16 %v1418
    %v1490 = vunpack.c.l.b16 %v1419
    %v1491 = vunpack.c.l.b16 %v1420
    %v1492 = vunpack.c.l.b16 %v1421
    %v1493 = vunpack.c.l.b16 %v1422
    %v1494 = vunpack.c.l.b16 %v1423
    %v1495 = vunpack.c.l.b16 %v1424
    %v1496 = vunpack.c.l.b16 %v1425
    %v1497 = vunpack.c.l.b16 %v1426
    %v1498 = vunpack.c.l.b16 %v1427
    %v1499 = vunpack.c.l.b16 %v1428
    %v1500 = vunpack.c.l.b16 %v1429
    %v1501 = vunpack.c.l.b16 %v1430
    %v1502 = vunpack.c.l.b16 %v1431
    %v1503 = vunpack.c.l.b16 %v1432
    %v1504 = vunpack.c.l.b16 %v1433
    %v1505 = vunpack.c.l.b16 %v1434
    %v1506 = vunpack.c.l.b16 %v1435
    %v1507 = vunpack.c.l.b16 %v1436
    %v1508 = vunpack.c.l.b16 %v1437
    %v1509 = vunpack.c.l.b16 %v1438
    %v1510 = vunpack.c.l.b16 %v1439
    %v1511 = vunpack.c.l.b16 %v1440
    %v1512 = vunpack.c.l.b16 %v1441
    %v1513 = vunpack.c.l.b16 %v1442
    %v1514 = vunpack.c.l.b16 %v1443
    %v1515 = vunpack.c.l.b16 %v1444
    %v1516 = vunpack.c.l.b16 %v1445
    %v1517 = vunpack.c.l.b16 %v1446
    %v1518 = vunpack.c.l.b16 %v1447
    %v1519 = vpack.c.b16 %v1488, %v1487
    %v1520 = vpack.c.b16 %v1490, %v1489
    %v1521 = vpack.c.b16 %v1492, %v1491
    %v1522 = vpack.c.b16 %v1494, %v1493
    %v1523 = vpack.c.b16 %v1496, %v1495
    %v1524 = vpack.c.b16 %v1498, %v1497
    %v1525 = vpack.c.b16 %v1500, %v1499
    %v1526 = vpack.c.b16 %v1502, %v1501
    %v1527 = vpack.c.b16 %v1504, %v1503
    %v1528 = vpack.c.b16 %v1506, %v1505
    %v1529 = vpack.c.b16 %v1508, %v1507
    %v1530 = vpack.c.b16 %v1510, %v1509
    %v1531 = vpack.c.b16 %v1512, %v1511
    %v1532 = vpack.c.b16 %v1514, %v1513
    %v1533 = vpack.c.b16 %v1516, %v1515
    %v1534 = vpack.c.b16 %v1518, %v1517
    %1551 = vmatprep.subr.bf16.mxu0 0
    %1552 = vmatpush1.bf16.msra.mxu0 %v1519
    %1553 = vmatprep.subr.bf16.mxu0 0
    %1554 = vmatpush1.bf16.msra.mxu0 %v1520
    %1555 = vmatprep.subr.bf16.mxu0 0
    %1556 = vmatpush1.bf16.msra.mxu0 %v1521
    %1557 = vmatprep.subr.bf16.mxu0 0
    %1558 = vmatpush1.bf16.msra.mxu0 %v1522
    %1559 = vmatprep.subr.bf16.mxu0 0
    %1560 = vmatpush1.bf16.msra.mxu0 %v1523
    %1561 = vmatprep.subr.bf16.mxu0 0
    %1562 = vmatpush1.bf16.msra.mxu0 %v1524
    %1563 = vmatprep.subr.bf16.mxu0 0
    %1564 = vmatpush1.bf16.msra.mxu0 %v1525
    %1565 = vmatprep.subr.bf16.mxu0 0
    %1566 = vmatpush1.bf16.msra.mxu0 %v1526
    %1567 = vmatprep.subr.bf16.mxu0 0
    %1568 = vmatpush1.bf16.msra.mxu0 %v1527
    %1569 = vmatprep.subr.bf16.mxu0 0
    %1570 = vmatpush1.bf16.msra.mxu0 %v1528
    %1571 = vmatprep.subr.bf16.mxu0 0
    %1572 = vmatpush1.bf16.msra.mxu0 %v1529
    %1573 = vmatprep.subr.bf16.mxu0 0
    %1574 = vmatpush1.bf16.msra.mxu0 %v1530
    %1575 = vmatprep.subr.bf16.mxu0 0
    %1576 = vmatpush1.bf16.msra.mxu0 %v1531
    %1577 = vmatprep.subr.bf16.mxu0 0
    %1578 = vmatpush1.bf16.msra.mxu0 %v1532
    %1579 = vmatprep.subr.bf16.mxu0 0
    %1580 = vmatpush1.bf16.msra.mxu0 %v1533
    %1581 = vmatprep.subr.bf16.mxu0 0
    %1582 = vmatpush1.bf16.msra.mxu0 %v1534
    %1583 = vmatprep.mubr.bf16.mxu0 %v1452
    %1584 = vmatmul.mubr.bf16.gmra.mrb[0].mxu0 %v1451
    %v1585 = vpop.f32.mrb[0].mxu0
    %v1586 = vadd.f32 0.0, %v1585
    %v1587 = vpop.f32.mrb[0].mxu0
    %v1588 = vpop.f32.mrb[0].mxu0
    %v1589 = vpop.f32.mrb[0].mxu0
    %1590 = vdwg.mxu0
    %v1591 = vtanh.pop %v1586
    %v1592 = vpack.c.bf16 %v1414, %v1414
    %v1593 = vsel %vm1229, 1, 0
    %1594 = vset.pattern.permute.xlu0 0
    %1595 = vperm.xlu0 %1594, %v1593
    %v1596 = vpop.permute.xlu0 %1595
    %vm1597 = vcmp.eq.s32.totalorder %v1596, 1
    %vm1598 = vmpackc.low %vm1597, %vm1597
    %v1599 = vsel %vm1598, %v1592, %v1236
    %v1600 = vpack.c.bf16 %v1591, %v1591
    %v1601 = vsel %vm1598, %v1600, %v1237
    %1602 = vst [vmem:[#allocation2 + $0x4] sm:$0xf] %v1599
    %1603 = vst [vmem:[#allocation3 + $0x4] sm:$0xf] %v1601
    %v1604 = vld [vmem:[#allocation9] sm:$0xf]
    %v1605 = vld [vmem:[#allocation9 + $0x4] sm:$0xf]
    %v1606 = vld [vmem:[#allocation9 + $0x8] sm:$0xf]
    %v1607 = vld [vmem:[#allocation9 + $0xc] sm:$0xf]
    %v1608 = vld [vmem:[#allocation9 + $0x10] sm:$0xf]
    %v1609 = vld [vmem:[#allocation9 + $0x14] sm:$0xf]
    %v1610 = vld [vmem:[#allocation9 + $0x18] sm:$0xf]
    %v1611 = vld [vmem:[#allocation9 + $0x1c] sm:$0xf]
    %v1612 = vld [vmem:[#allocation9 + $0x20] sm:$0xf]
    %v1613 = vld [vmem:[#allocation9 + $0x24] sm:$0xf]
    %v1614 = vld [vmem:[#allocation9 + $0x28] sm:$0xf]
    %v1615 = vld [vmem:[#allocation9 + $0x2c] sm:$0xf]
    %v1616 = vld [vmem:[#allocation9 + $0x30] sm:$0xf]
    %v1617 = vld [vmem:[#allocation9 + $0x34] sm:$0xf]
    %v1618 = vld [vmem:[#allocation9 + $0x38] sm:$0xf]
    %v1619 = vld [vmem:[#allocation9 + $0x3c] sm:$0xf]
    %v1620 = vld [vmem:[#allocation9 + $0x40] sm:$0xf]
    %v1621 = vld [vmem:[#allocation9 + $0x44] sm:$0xf]
    %v1622 = vld [vmem:[#allocation9 + $0x48] sm:$0xf]
    %v1623 = vld [vmem:[#allocation9 + $0x4c] sm:$0xf]
    %v1624 = vld [vmem:[#allocation9 + $0x50] sm:$0xf]
    %v1625 = vld [vmem:[#allocation9 + $0x54] sm:$0xf]
    %v1626 = vld [vmem:[#allocation9 + $0x58] sm:$0xf]
    %v1627 = vld [vmem:[#allocation9 + $0x5c] sm:$0xf]
    %v1628 = vld [vmem:[#allocation9 + $0x60] sm:$0xf]
    %v1629 = vld [vmem:[#allocation9 + $0x64] sm:$0xf]
    %v1630 = vld [vmem:[#allocation9 + $0x68] sm:$0xf]
    %v1631 = vld [vmem:[#allocation9 + $0x6c] sm:$0xf]
    %v1632 = vld [vmem:[#allocation9 + $0x70] sm:$0xf]
    %v1633 = vld [vmem:[#allocation9 + $0x74] sm:$0xf]
    %v1634 = vld [vmem:[#allocation9 + $0x78] sm:$0xf]
    %v1635 = vld [vmem:[#allocation9 + $0x7c] sm:$0xf]
    %v1636 = vld [vmem:[%s6] sm:$0x1]
    %v1638 = vlaneseq
    %v1639 = vshrl.u32 %v1638, 7
    %v1640 = vsub.s32 0, %v1639
    %v1641 = vrot.slane %v1636, %v1640
    %v1675 = vunpack.c.l.b16 %v1604
    %v1676 = vunpack.c.l.b16 %v1605
    %v1677 = vunpack.c.l.b16 %v1606
    %v1678 = vunpack.c.l.b16 %v1607
    %v1679 = vunpack.c.l.b16 %v1608
    %v1680 = vunpack.c.l.b16 %v1609
    %v1681 = vunpack.c.l.b16 %v1610
    %v1682 = vunpack.c.l.b16 %v1611
    %v1683 = vunpack.c.l.b16 %v1612
    %v1684 = vunpack.c.l.b16 %v1613
    %v1685 = vunpack.c.l.b16 %v1614
    %v1686 = vunpack.c.l.b16 %v1615
    %v1687 = vunpack.c.l.b16 %v1616
    %v1688 = vunpack.c.l.b16 %v1617
    %v1689 = vunpack.c.l.b16 %v1618
    %v1690 = vunpack.c.l.b16 %v1619
    %v1691 = vunpack.c.l.b16 %v1620
    %v1692 = vunpack.c.l.b16 %v1621
    %v1693 = vunpack.c.l.b16 %v1622
    %v1694 = vunpack.c.l.b16 %v1623
    %v1695 = vunpack.c.l.b16 %v1624
    %v1696 = vunpack.c.l.b16 %v1625
    %v1697 = vunpack.c.l.b16 %v1626
    %v1698 = vunpack.c.l.b16 %v1627
    %v1699 = vunpack.c.l.b16 %v1628
    %v1700 = vunpack.c.l.b16 %v1629
    %v1701 = vunpack.c.l.b16 %v1630
    %v1702 = vunpack.c.l.b16 %v1631
    %v1703 = vunpack.c.l.b16 %v1632
    %v1704 = vunpack.c.l.b16 %v1633
    %v1705 = vunpack.c.l.b16 %v1634
    %v1706 = vunpack.c.l.b16 %v1635
    %v1707 = vpack.c.b16 %v1676, %v1675
    %v1708 = vpack.c.b16 %v1678, %v1677
    %v1709 = vpack.c.b16 %v1680, %v1679
    %v1710 = vpack.c.b16 %v1682, %v1681
    %v1711 = vpack.c.b16 %v1684, %v1683
    %v1712 = vpack.c.b16 %v1686, %v1685
    %v1713 = vpack.c.b16 %v1688, %v1687
    %v1714 = vpack.c.b16 %v1690, %v1689
    %v1715 = vpack.c.b16 %v1692, %v1691
    %v1716 = vpack.c.b16 %v1694, %v1693
    %v1717 = vpack.c.b16 %v1696, %v1695
    %v1718 = vpack.c.b16 %v1698, %v1697
    %v1719 = vpack.c.b16 %v1700, %v1699
    %v1720 = vpack.c.b16 %v1702, %v1701
    %v1721 = vpack.c.b16 %v1704, %v1703
    %v1722 = vpack.c.b16 %v1706, %v1705
    %1739 = vmatprep.subr.bf16.mxu0 0
    %1740 = vmatpush1.bf16.msra.mxu0 %v1707
    %1741 = vmatprep.subr.bf16.mxu0 0
    %1742 = vmatpush1.bf16.msra.mxu0 %v1708
    %1743 = vmatprep.subr.bf16.mxu0 0
    %1744 = vmatpush1.bf16.msra.mxu0 %v1709
    %1745 = vmatprep.subr.bf16.mxu0 0
    %1746 = vmatpush1.bf16.msra.mxu0 %v1710
    %1747 = vmatprep.subr.bf16.mxu0 0
    %1748 = vmatpush1.bf16.msra.mxu0 %v1711
    %1749 = vmatprep.subr.bf16.mxu0 0
    %1750 = vmatpush1.bf16.msra.mxu0 %v1712
    %1751 = vmatprep.subr.bf16.mxu0 0
    %1752 = vmatpush1.bf16.msra.mxu0 %v1713
    %1753 = vmatprep.subr.bf16.mxu0 0
    %1754 = vmatpush1.bf16.msra.mxu0 %v1714
    %1755 = vmatprep.subr.bf16.mxu0 0
    %1756 = vmatpush1.bf16.msra.mxu0 %v1715
    %1757 = vmatprep.subr.bf16.mxu0 0
    %1758 = vmatpush1.bf16.msra.mxu0 %v1716
    %1759 = vmatprep.subr.bf16.mxu0 0
    %1760 = vmatpush1.bf16.msra.mxu0 %v1717
    %1761 = vmatprep.subr.bf16.mxu0 0
    %1762 = vmatpush1.bf16.msra.mxu0 %v1718
    %1763 = vmatprep.subr.bf16.mxu0 0
    %1764 = vmatpush1.bf16.msra.mxu0 %v1719
    %1765 = vmatprep.subr.bf16.mxu0 0
    %1766 = vmatpush1.bf16.msra.mxu0 %v1720
    %1767 = vmatprep.subr.bf16.mxu0 0
    %1768 = vmatpush1.bf16.msra.mxu0 %v1721
    %1769 = vmatprep.subr.bf16.mxu0 0
    %1770 = vmatpush1.bf16.msra.mxu0 %v1722
    %1771 = vmatprep.mubr.bf16.mxu0 %v1601
    %1772 = vmatmul.mubr.bf16.gmra.mrb[0].mxu0 %v1599
    %v1773 = vpop.f32.mrb[0].mxu0
    %v1774 = vadd.f32 %v1641, %v1773
    %v1775 = vpop.f32.mrb[0].mxu0
    %v1776 = vpop.f32.mrb[0].mxu0
    %v1777 = vpop.f32.mrb[0].mxu0
    %1778 = vdwg.mxu0
    %1779 = vmax.xlane.f32.xlu0 %v1774
    %v1780 = vpop.xlane.xlu0 %1779
    %v1781 = vsub.f32 %v1774, %v1780
    %v1782 = vmul.f32 %v1781, 1.442695
    %v1783 = vpow.pop %v1782
    %1784 = vadd.xlane.f32.xlu0 %v1783
    %v1785 = vpop.xlane.xlu0 %1784
    %v1786 = vrcp.pop %v1785
    %v1787 = vmul.f32 %v1785, %v1786
    %v1788 = vsub.f32 2.0, %v1787
    %v1789 = vmul.f32 %v1786, %v1788
    %v1790 = vmul.f32 %v1783, %v1789
    %v1791 = vpack.c.bf16 %v1790, %v1790
    %s1792 = scalar_lea.vmem [#allocation10], 8
    %1793 = vst [vmem:[%s1792] sm:$0xf] %v1791
    // Predicated region
    $region54: #{tpu_custom_call.1} parent=1 // pred_check
      _
    $region55: #{tpu_custom_call.1} parent=1 // pred_check_branch
      %1795 = sbr.rel (0) target = $region57
    $region56: #{tpu_custom_call.1} parent=1 // pred_region
      %s1797 = ssub.s32 192, 192
      %1798 = vsyncadd [#allocation6], %s1797
      %s1799 = sshll.u32 [#allocation10], 4
      %s1800 = int_to_ptr.vmem [resolvable:$true] %s1799
      %1805 = dma.vmem_to_hbm [thread:$0]  %s1800, 192, %s9, [#allocation6], 64, 64, 4
    $region57: #{tpu_custom_call.1} parent=1 // pred_fallthru
      _
    // Predicated region
    $region58: #{tpu_custom_call.1} parent=1 // pred_check
      _
    $region59: #{tpu_custom_call.1} parent=1 // pred_check_branch
      %1807 = sbr.rel (0) target = $region61
    $region60: #{tpu_custom_call.1} parent=1 // pred_region
      %1808 = dma.done [#allocation6], 192
    $region61: #{tpu_custom_call.1} parent=1 // pred_fallthru
      _
    %1809 = vsyncpa [#allocation5], 1
    %1810 = vsyncpa [#allocation8], 1
    %1811 = vsyncpa [#allocation6], 1

// kernel: tpu_custom_call.1
$region0: #{tpu_custom_call.1}
  #allocation0 [shape = 'u32[]', space=smem, size = 0x4, offset = 0x4, fixed_abs, tag = 'smem constant byte address 0x4 - core index']
  #allocation1 [shape = 'u32[144,128]{1,0:T(1,128)}', space=vmem, size = 0x12000, scoped, tag = 'internal scratch']
  #allocation2 [shape = 'bf16[8,256]{1,0:T(8,128)(2,1)}', space=vmem, size = 0x1000, scoped, tag = 'scratch operand']
  #allocation3 [shape = 'bf16[8,256]{1,0:T(8,128)(2,1)}', space=vmem, size = 0x1000, scoped, tag = 'scratch operand']
  %s0 = inlined_call_operand.vmem [shape: s32[3,8,1], index: 0, kind: input, shape index: {}]
  %s1 = inlined_call_operand.vmem [shape: bf16[3,8,128], index: 1, kind: input, shape index: {}]
  %s2 = inlined_call_operand.vmem [shape: bf16[3,8,128], index: 2, kind: input, shape index: {}]
  %s3 = inlined_call_operand.hbm [shape: bf16[256,128], index: 3, kind: input, shape index: {}]
  %s4 = inlined_call_operand.hbm [shape: bf16[256,128], index: 4, kind: input, shape index: {}]
  %s5 = inlined_call_operand.hbm [shape: bf16[256,128], index: 5, kind: input, shape index: {}]
  %s6 = inlined_call_operand.vmem [shape: f32[1,128], index: 6, kind: input, shape index: {}]
  %s7 = inlined_call_operand.vmem [shape: f32[1,128], index: 7, kind: input, shape index: {}]
  %s8 = inlined_call_operand.vmem [shape: f32[1,128], index: 8, kind: input, shape index: {}]
  %s9 = inlined_call_operand.hbm [shape: bf16[3,8,128], index: 9, kind: output, shape index: {}]
  %s10 = sld [smem:[#allocation0]]
  $region62: #{tpu_custom_call.1} parent=0
    _
  %s12 = ssub.s32 1, %s10
  %s13 = scalar_select 0, %s12, %s10
  $region1: #{tpu_custom_call.1} parent=0
    #allocation4 [shape = 'u8[65536]{0}', space=vmem, size = 0x10000, scoped, tag = 'input window, operand 3, single buffered']
    #allocation5 [shape = 's32[1]{0}', space=sflag, size = 0x4, scoped, tag = 'scoped memory for tpu_custom_call.1']
    #allocation6 [shape = 's32[1]{0}', space=sflag, size = 0x4, scoped, tag = 'scoped memory for tpu_custom_call.1']
    #allocation7 [shape = 'u8[65536]{0}', space=vmem, size = 0x10000, scoped, tag = 'input window, operand 4, single buffered']
    #allocation8 [shape = 's32[1]{0}', space=sflag, size = 0x4, scoped, tag = 'scoped memory for tpu_custom_call.1']
    #allocation9 [shape = 'u8[65536]{0}', space=vmem, size = 0x10000, scoped, tag = 'input window, operand 5, single buffered']
    #allocation10 [shape = 'u8[6144]{0}', space=vmem, size = 0x1800, scoped, tag = 'output window, operand 0, single buffered']
    %14 = vsyncpa [#allocation5], 0
    %15 = vsyncpa [#allocation8], 0
    %16 = vsyncpa [#allocation6], 0
    // Predicated region
    $region2: #{tpu_custom_call.1} parent=1 // pred_check
      _
    $region3: #{tpu_custom_call.1} parent=1 // pred_check_branch
      %18 = sbr.rel (0) target = $region5
    $region4: #{tpu_custom_call.1} parent=1 // pred_region
      _
    $region5: #{tpu_custom_call.1} parent=1 // pred_fallthru
      _
    // Predicated region
    $region6: #{tpu_custom_call.1} parent=1 // pred_check
      _
    $region7: #{tpu_custom_call.1} parent=1 // pred_check_branch
      %20 = sbr.rel (0) target = $region9
    $region8: #{tpu_custom_call.1} parent=1 // pred_region
      _
    $region9: #{tpu_custom_call.1} parent=1 // pred_fallthru
      _
    // Predicated region
    $region10: #{tpu_custom_call.1} parent=1 // pred_check
      _
    $region11: #{tpu_custom_call.1} parent=1 // pred_check_branch
      %22 = sbr.rel (0) target = $region13
    $region12: #{tpu_custom_call.1} parent=1 // pred_region
      _
    $region13: #{tpu_custom_call.1} parent=1 // pred_fallthru
      _
    // Predicated region
    $region14: #{tpu_custom_call.1} parent=1 // pred_check
      _
    $region15: #{tpu_custom_call.1} parent=1 // pred_check_branch
      %24 = sbr.rel (0) target = $region17
    $region16: #{tpu_custom_call.1} parent=1 // pred_region
      %s26 = ssub.s32 2048, 2048
      %27 = vsyncadd [#allocation5], %s26
      %s28 = sshll.u32 [#allocation4], 4
      %s29 = int_to_ptr.vmem [resolvable:$true] %s28
      %34 = dma.hbm_to_vmem [thread:$0]  %s3, 2048, %s29, [#allocation5], 64, 64, 4
    $region17: #{tpu_custom_call.1} parent=1 // pred_fallthru
      _
    // Predicated region
    $region18: #{tpu_custom_call.1} parent=1 // pred_check
      _
    $region19: #{tpu_custom_call.1} parent=1 // pred_check_branch
      %36 = sbr.rel (0) target = $region21
    $region20: #{tpu_custom_call.1} parent=1 // pred_region
      %s38 = ssub.s32 2048, 2048
      %39 = vsyncadd [#allocation8], %s38
      %s40 = sshll.u32 [#allocation7], 4
      %s41 = int_to_ptr.vmem [resolvable:$true] %s40
      %46 = dma.hbm_to_vmem [thread:$0]  %s4, 2048, %s41, [#allocation8], 64, 64, 4
    $region21: #{tpu_custom_call.1} parent=1 // pred_fallthru
      _
    // Predicated region
    $region22: #{tpu_custom_call.1} parent=1 // pred_check
      _
    $region23: #{tpu_custom_call.1} parent=1 // pred_check_branch
      %48 = sbr.rel (0) target = $region25
    $region24: #{tpu_custom_call.1} parent=1 // pred_region
      %s50 = ssub.s32 2048, 2048
      %51 = vsyncadd [#allocation8], %s50
      %s52 = sshll.u32 [#allocation9], 4
      %s53 = int_to_ptr.vmem [resolvable:$true] %s52
      %58 = dma.hbm_to_vmem [thread:$0]  %s5, 2048, %s53, [#allocation8], 64, 64, 4
    $region25: #{tpu_custom_call.1} parent=1 // pred_fallthru
      _
    // Predicated region
    $region26: #{tpu_custom_call.1} parent=1 // pred_check
      _
    $region27: #{tpu_custom_call.1} parent=1 // pred_check_branch
      %60 = sbr.rel (0) target = $region29
    $region28: #{tpu_custom_call.1} parent=1 // pred_region
      _
    $region29: #{tpu_custom_call.1} parent=1 // pred_fallthru
      _
    // Predicated region
    $region30: #{tpu_custom_call.1} parent=1 // pred_check
      _
    $region31: #{tpu_custom_call.1} parent=1 // pred_check_branch
      %62 = sbr.rel (0) target = $region33
    $region32: #{tpu_custom_call.1} parent=1 // pred_region
      _
    $region33: #{tpu_custom_call.1} parent=1 // pred_fallthru
      _
    // Predicated region
    $region34: #{tpu_custom_call.1} parent=1 // pred_check
      _
    $region35: #{tpu_custom_call.1} parent=1 // pred_check_branch
      %64 = sbr.rel (0) target = $region37
    $region36: #{tpu_custom_call.1} parent=1 // pred_region
      _
    $region37: #{tpu_custom_call.1} parent=1 // pred_fallthru
      _
    // Predicated region
    $region38: #{tpu_custom_call.1} parent=1 // pred_check
      _
    $region39: #{tpu_custom_call.1} parent=1 // pred_check_branch
      %66 = sbr.rel (0) target = $region41
    $region40: #{tpu_custom_call.1} parent=1 // pred_region
      %67 = dma.done [#allocation5], 2048
    $region41: #{tpu_custom_call.1} parent=1 // pred_fallthru
      _
    // Predicated region
    $region42: #{tpu_custom_call.1} parent=1 // pred_check
      _
    $region43: #{tpu_custom_call.1} parent=1 // pred_check_branch
      %69 = sbr.rel (0) target = $region45
    $region44: #{tpu_custom_call.1} parent=1 // pred_region
      %70 = dma.done [#allocation8], 2048
    $region45: #{tpu_custom_call.1} parent=1 // pred_fallthru
      _
    // Predicated region
    $region46: #{tpu_custom_call.1} parent=1 // pred_check
      _
    $region47: #{tpu_custom_call.1} parent=1 // pred_check_branch
      %72 = sbr.rel (0) target = $region49
    $region48: #{tpu_custom_call.1} parent=1 // pred_region
      %73 = dma.done [#allocation8], 2048
    $region49: #{tpu_custom_call.1} parent=1 // pred_fallthru
      _
    %p75 = scmp.eq.s32.totalorder 0, 0
    // Predicated region
    $region50: #{tpu_custom_call.1} parent=1 // pred_check
      %p76 = pneg %p75
    $region51: #{tpu_custom_call.1} parent=1 // pred_check_branch
      %78 = sbr.rel (%p76) target = $region53
    $region52: #{tpu_custom_call.1} parent=1 // pred_region
      %v79 = vld [vmem:[%s7] sm:$0x1]
      %v81 = vlaneseq
      %v82 = vshrl.u32 %v81, 7
      %v83 = vsub.s32 0, %v82
      %v84 = vrot.slane %v79, %v83
      %v86 = vpack.c.bf16 %v84, %v84
      %87 = vst [vmem:[#allocation2 + $0x4] sm:$0xf] %v86
      %v88 = vld [vmem:[%s8] sm:$0x1]
      %v90 = vlaneseq
      %v91 = vshrl.u32 %v90, 7
      %v92 = vsub.s32 0, %v91
      %v93 = vrot.slane %v88, %v92
      %v95 = vpack.c.bf16 %v93, %v93
      %96 = vst [vmem:[#allocation3 + $0x4] sm:$0xf] %v95
    $region53: #{tpu_custom_call.1} parent=1 // pred_fallthru
      _
    %v97 = vld [vmem:[%s0] sm:$0xff]
    %vm98 = vcmp.ge.s32.totalorder %v97, 0
    %v99 = vld [vmem:[%s1] sm:$0xf]
    %100 = vst [vmem:[#allocation2] sm:$0xf] %v99
    %v101 = vld [vmem:[%s2] sm:$0xf]
    %102 = vst [vmem:[#allocation3] sm:$0xf] %v101
    %v103 = vld [vmem:[#allocation2 + $0x4] sm:$0xf]
    %v104 = vld [vmem:[#allocation3 + $0x4] sm:$0xf]
    %v105 = vld [vmem:[#allocation2] sm:$0xff]
    %v106 = vld [vmem:[#allocation4] sm:$0xf]
    %v107 = vld [vmem:[#allocation4 + $0x4] sm:$0xf]
    %v108 = vld [vmem:[#allocation4 + $0x8] sm:$0xf]
    %v109 = vld [vmem:[#allocation4 + $0xc] sm:$0xf]
    %v110 = vld [vmem:[#allocation4 + $0x10] sm:$0xf]
    %v111 = vld [vmem:[#allocation4 + $0x14] sm:$0xf]
    %v112 = vld [vmem:[#allocation4 + $0x18] sm:$0xf]
    %v113 = vld [vmem:[#allocation4 + $0x1c] sm:$0xf]
    %v114 = vld [vmem:[#allocation4 + $0x20] sm:$0xf]
    %v115 = vld [vmem:[#allocation4 + $0x24] sm:$0xf]
    %v116 = vld [vmem:[#allocation4 + $0x28] sm:$0xf]
    %v117 = vld [vmem:[#allocation4 + $0x2c] sm:$0xf]
    %v118 = vld [vmem:[#allocation4 + $0x30] sm:$0xf]
    %v119 = vld [vmem:[#allocation4 + $0x34] sm:$0xf]
    %v120 = vld [vmem:[#allocation4 + $0x38] sm:$0xf]
    %v121 = vld [vmem:[#allocation4 + $0x3c] sm:$0xf]
    %v122 = vld [vmem:[#allocation4 + $0x40] sm:$0xf]
    %v123 = vld [vmem:[#allocation4 + $0x44] sm:$0xf]
    %v124 = vld [vmem:[#allocation4 + $0x48] sm:$0xf]
    %v125 = vld [vmem:[#allocation4 + $0x4c] sm:$0xf]
    %v126 = vld [vmem:[#allocation4 + $0x50] sm:$0xf]
    %v127 = vld [vmem:[#allocation4 + $0x54] sm:$0xf]
    %v128 = vld [vmem:[#allocation4 + $0x58] sm:$0xf]
    %v129 = vld [vmem:[#allocation4 + $0x5c] sm:$0xf]
    %v130 = vld [vmem:[#allocation4 + $0x60] sm:$0xf]
    %v131 = vld [vmem:[#allocation4 + $0x64] sm:$0xf]
    %v132 = vld [vmem:[#allocation4 + $0x68] sm:$0xf]
    %v133 = vld [vmem:[#allocation4 + $0x6c] sm:$0xf]
    %v134 = vld [vmem:[#allocation4 + $0x70] sm:$0xf]
    %v135 = vld [vmem:[#allocation4 + $0x74] sm:$0xf]
    %v136 = vld [vmem:[#allocation4 + $0x78] sm:$0xf]
    %v137 = vld [vmem:[#allocation4 + $0x7c] sm:$0xf]
    %v139 = vunpack.c.l.b16 %v105
    %v140 = vunpack.c.h.b16 %v105
    %v141 = vpack.c.b16 %v139, %v139
    %v142 = vpack.c.b16 %v140, %v140
    %v177 = vunpack.c.l.b16 %v106
    %v178 = vunpack.c.l.b16 %v107
    %v179 = vunpack.c.l.b16 %v108
    %v180 = vunpack.c.l.b16 %v109
    %v181 = vunpack.c.l.b16 %v110
    %v182 = vunpack.c.l.b16 %v111
    %v183 = vunpack.c.l.b16 %v112
    %v184 = vunpack.c.l.b16 %v113
    %v185 = vunpack.c.l.b16 %v114
    %v186 = vunpack.c.l.b16 %v115
    %v187 = vunpack.c.l.b16 %v116
    %v188 = vunpack.c.l.b16 %v117
    %v189 = vunpack.c.l.b16 %v118
    %v190 = vunpack.c.l.b16 %v119
    %v191 = vunpack.c.l.b16 %v120
    %v192 = vunpack.c.l.b16 %v121
    %v193 = vunpack.c.l.b16 %v122
    %v194 = vunpack.c.l.b16 %v123
    %v195 = vunpack.c.l.b16 %v124
    %v196 = vunpack.c.l.b16 %v125
    %v197 = vunpack.c.l.b16 %v126
    %v198 = vunpack.c.l.b16 %v127
    %v199 = vunpack.c.l.b16 %v128
    %v200 = vunpack.c.l.b16 %v129
    %v201 = vunpack.c.l.b16 %v130
    %v202 = vunpack.c.l.b16 %v131
    %v203 = vunpack.c.l.b16 %v132
    %v204 = vunpack.c.l.b16 %v133
    %v205 = vunpack.c.l.b16 %v134
    %v206 = vunpack.c.l.b16 %v135
    %v207 = vunpack.c.l.b16 %v136
    %v208 = vunpack.c.l.b16 %v137
    %v209 = vpack.c.b16 %v178, %v177
    %v210 = vpack.c.b16 %v180, %v179
    %v211 = vpack.c.b16 %v182, %v181
    %v212 = vpack.c.b16 %v184, %v183
    %v213 = vpack.c.b16 %v186, %v185
    %v214 = vpack.c.b16 %v188, %v187
    %v215 = vpack.c.b16 %v190, %v189
    %v216 = vpack.c.b16 %v192, %v191
    %v217 = vpack.c.b16 %v194, %v193
    %v218 = vpack.c.b16 %v196, %v195
    %v219 = vpack.c.b16 %v198, %v197
    %v220 = vpack.c.b16 %v200, %v199
    %v221 = vpack.c.b16 %v202, %v201
    %v222 = vpack.c.b16 %v204, %v203
    %v223 = vpack.c.b16 %v206, %v205
    %v224 = vpack.c.b16 %v208, %v207
    %241 = vmatprep.subr.bf16.mxu0 0
    %242 = vmatpush1.bf16.msra.mxu0 %v209
    %243 = vmatprep.subr.bf16.mxu0 0
    %244 = vmatpush1.bf16.msra.mxu0 %v210
    %245 = vmatprep.subr.bf16.mxu0 0
    %246 = vmatpush1.bf16.msra.mxu0 %v211
    %247 = vmatprep.subr.bf16.mxu0 0
    %248 = vmatpush1.bf16.msra.mxu0 %v212
    %249 = vmatprep.subr.bf16.mxu0 0
    %250 = vmatpush1.bf16.msra.mxu0 %v213
    %251 = vmatprep.subr.bf16.mxu0 0
    %252 = vmatpush1.bf16.msra.mxu0 %v214
    %253 = vmatprep.subr.bf16.mxu0 0
    %254 = vmatpush1.bf16.msra.mxu0 %v215
    %255 = vmatprep.subr.bf16.mxu0 0
    %256 = vmatpush1.bf16.msra.mxu0 %v216
    %257 = vmatprep.subr.bf16.mxu0 0
    %258 = vmatpush1.bf16.msra.mxu0 %v217
    %259 = vmatprep.subr.bf16.mxu0 0
    %260 = vmatpush1.bf16.msra.mxu0 %v218
    %261 = vmatprep.subr.bf16.mxu0 0
    %262 = vmatpush1.bf16.msra.mxu0 %v219
    %263 = vmatprep.subr.bf16.mxu0 0
    %264 = vmatpush1.bf16.msra.mxu0 %v220
    %265 = vmatprep.subr.bf16.mxu0 0
    %266 = vmatpush1.bf16.msra.mxu0 %v221
    %267 = vmatprep.subr.bf16.mxu0 0
    %268 = vmatpush1.bf16.msra.mxu0 %v222
    %269 = vmatprep.subr.bf16.mxu0 0
    %270 = vmatpush1.bf16.msra.mxu0 %v223
    %271 = vmatprep.subr.bf16.mxu0 0
    %272 = vmatpush1.bf16.msra.mxu0 %v224
    %273 = vmatprep.mubr.bf16.mxu0 %v142
    %274 = vmatmul.mubr.bf16.gmra.mrb[0].mxu0 %v141
    %v275 = vpop.f32.mrb[0].mxu0
    %v276 = vadd.f32 0.0, %v275
    %v277 = vpop.f32.mrb[0].mxu0
    %v278 = vpop.f32.mrb[0].mxu0
    %v279 = vpop.f32.mrb[0].mxu0
    %280 = vdwg.mxu0
    %v281 = vtanh.pop %v276
    %v282 = vld [vmem:[#allocation3] sm:$0xff]
    %v283 = vld [vmem:[#allocation7] sm:$0xf]
    %v284 = vld [vmem:[#allocation7 + $0x4] sm:$0xf]
    %v285 = vld [vmem:[#allocation7 + $0x8] sm:$0xf]
    %v286 = vld [vmem:[#allocation7 + $0xc] sm:$0xf]
    %v287 = vld [vmem:[#allocation7 + $0x10] sm:$0xf]
    %v288 = vld [vmem:[#allocation7 + $0x14] sm:$0xf]
    %v289 = vld [vmem:[#allocation7 + $0x18] sm:$0xf]
    %v290 = vld [vmem:[#allocation7 + $0x1c] sm:$0xf]
    %v291 = vld [vmem:[#allocation7 + $0x20] sm:$0xf]
    %v292 = vld [vmem:[#allocation7 + $0x24] sm:$0xf]
    %v293 = vld [vmem:[#allocation7 + $0x28] sm:$0xf]
    %v294 = vld [vmem:[#allocation7 + $0x2c] sm:$0xf]
    %v295 = vld [vmem:[#allocation7 + $0x30] sm:$0xf]
    %v296 = vld [vmem:[#allocation7 + $0x34] sm:$0xf]
    %v297 = vld [vmem:[#allocation7 + $0x38] sm:$0xf]
    %v298 = vld [vmem:[#allocation7 + $0x3c] sm:$0xf]
    %v299 = vld [vmem:[#allocation7 + $0x40] sm:$0xf]
    %v300 = vld [vmem:[#allocation7 + $0x44] sm:$0xf]
    %v301 = vld [vmem:[#allocation7 + $0x48] sm:$0xf]
    %v302 = vld [vmem:[#allocation7 + $0x4c] sm:$0xf]
    %v303 = vld [vmem:[#allocation7 + $0x50] sm:$0xf]
    %v304 = vld [vmem:[#allocation7 + $0x54] sm:$0xf]
    %v305 = vld [vmem:[#allocation7 + $0x58] sm:$0xf]
    %v306 = vld [vmem:[#allocation7 + $0x5c] sm:$0xf]
    %v307 = vld [vmem:[#allocation7 + $0x60] sm:$0xf]
    %v308 = vld [vmem:[#allocation7 + $0x64] sm:$0xf]
    %v309 = vld [vmem:[#allocation7 + $0x68] sm:$0xf]
    %v310 = vld [vmem:[#allocation7 + $0x6c] sm:$0xf]
    %v311 = vld [vmem:[#allocation7 + $0x70] sm:$0xf]
    %v312 = vld [vmem:[#allocation7 + $0x74] sm:$0xf]
    %v313 = vld [vmem:[#allocation7 + $0x78] sm:$0xf]
    %v314 = vld [vmem:[#allocation7 + $0x7c] sm:$0xf]
    %v316 = vunpack.c.l.b16 %v282
    %v317 = vunpack.c.h.b16 %v282
    %v318 = vpack.c.b16 %v316, %v316
    %v319 = vpack.c.b16 %v317, %v317
    %v354 = vunpack.c.l.b16 %v283
    %v355 = vunpack.c.l.b16 %v284
    %v356 = vunpack.c.l.b16 %v285
    %v357 = vunpack.c.l.b16 %v286
    %v358 = vunpack.c.l.b16 %v287
    %v359 = vunpack.c.l.b16 %v288
    %v360 = vunpack.c.l.b16 %v289
    %v361 = vunpack.c.l.b16 %v290
    %v362 = vunpack.c.l.b16 %v291
    %v363 = vunpack.c.l.b16 %v292
    %v364 = vunpack.c.l.b16 %v293
    %v365 = vunpack.c.l.b16 %v294
    %v366 = vunpack.c.l.b16 %v295
    %v367 = vunpack.c.l.b16 %v296
    %v368 = vunpack.c.l.b16 %v297
    %v369 = vunpack.c.l.b16 %v298
    %v370 = vunpack.c.l.b16 %v299
    %v371 = vunpack.c.l.b16 %v300
    %v372 = vunpack.c.l.b16 %v301
    %v373 = vunpack.c.l.b16 %v302
    %v374 = vunpack.c.l.b16 %v303
    %v375 = vunpack.c.l.b16 %v304
    %v376 = vunpack.c.l.b16 %v305
    %v377 = vunpack.c.l.b16 %v306
    %v378 = vunpack.c.l.b16 %v307
    %v379 = vunpack.c.l.b16 %v308
    %v380 = vunpack.c.l.b16 %v309
    %v381 = vunpack.c.l.b16 %v310
    %v382 = vunpack.c.l.b16 %v311
    %v383 = vunpack.c.l.b16 %v312
    %v384 = vunpack.c.l.b16 %v313
    %v385 = vunpack.c.l.b16 %v314
    %v386 = vpack.c.b16 %v355, %v354
    %v387 = vpack.c.b16 %v357, %v356
    %v388 = vpack.c.b16 %v359, %v358
    %v389 = vpack.c.b16 %v361, %v360
    %v390 = vpack.c.b16 %v363, %v362
    %v391 = vpack.c.b16 %v365, %v364
    %v392 = vpack.c.b16 %v367, %v366
    %v393 = vpack.c.b16 %v369, %v368
    %v394 = vpack.c.b16 %v371, %v370
    %v395 = vpack.c.b16 %v373, %v372
    %v396 = vpack.c.b16 %v375, %v374
    %v397 = vpack.c.b16 %v377, %v376
    %v398 = vpack.c.b16 %v379, %v378
    %v399 = vpack.c.b16 %v381, %v380
    %v400 = vpack.c.b16 %v383, %v382
    %v401 = vpack.c.b16 %v385, %v384
    %418 = vmatprep.subr.bf16.mxu0 0
    %419 = vmatpush1.bf16.msra.mxu0 %v386
    %420 = vmatprep.subr.bf16.mxu0 0
    %421 = vmatpush1.bf16.msra.mxu0 %v387
    %422 = vmatprep.subr.bf16.mxu0 0
    %423 = vmatpush1.bf16.msra.mxu0 %v388
    %424 = vmatprep.subr.bf16.mxu0 0
    %425 = vmatpush1.bf16.msra.mxu0 %v389
    %426 = vmatprep.subr.bf16.mxu0 0
    %427 = vmatpush1.bf16.msra.mxu0 %v390
    %428 = vmatprep.subr.bf16.mxu0 0
    %429 = vmatpush1.bf16.msra.mxu0 %v391
    %430 = vmatprep.subr.bf16.mxu0 0
    %431 = vmatpush1.bf16.msra.mxu0 %v392
    %432 = vmatprep.subr.bf16.mxu0 0
    %433 = vmatpush1.bf16.msra.mxu0 %v393
    %434 = vmatprep.subr.bf16.mxu0 0
    %435 = vmatpush1.bf16.msra.mxu0 %v394
    %436 = vmatprep.subr.bf16.mxu0 0
    %437 = vmatpush1.bf16.msra.mxu0 %v395
    %438 = vmatprep.subr.bf16.mxu0 0
    %439 = vmatpush1.bf16.msra.mxu0 %v396
    %440 = vmatprep.subr.bf16.mxu0 0
    %441 = vmatpush1.bf16.msra.mxu0 %v397
    %442 = vmatprep.subr.bf16.mxu0 0
    %443 = vmatpush1.bf16.msra.mxu0 %v398
    %444 = vmatprep.subr.bf16.mxu0 0
    %445 = vmatpush1.bf16.msra.mxu0 %v399
    %446 = vmatprep.subr.bf16.mxu0 0
    %447 = vmatpush1.bf16.msra.mxu0 %v400
    %448 = vmatprep.subr.bf16.mxu0 0
    %449 = vmatpush1.bf16.msra.mxu0 %v401
    %450 = vmatprep.mubr.bf16.mxu0 %v319
    %451 = vmatmul.mubr.bf16.gmra.mrb[0].mxu0 %v318
    %v452 = vpop.f32.mrb[0].mxu0
    %v453 = vadd.f32 0.0, %v452
    %v454 = vpop.f32.mrb[0].mxu0
    %v455 = vpop.f32.mrb[0].mxu0
    %v456 = vpop.f32.mrb[0].mxu0
    %457 = vdwg.mxu0
    %v458 = vtanh.pop %v453
    %v459 = vpack.c.bf16 %v281, %v281
    %v460 = vsel %vm98, 1, 0
    %461 = vset.pattern.permute.xlu0 0
    %462 = vperm.xlu0 %461, %v460
    %v463 = vpop.permute.xlu0 %462
    %vm464 = vcmp.eq.s32.totalorder %v463, 1
    %vm465 = vmpackc.low %vm464, %vm464
    %v466 = vsel %vm465, %v459, %v103
    %v467 = vpack.c.bf16 %v458, %v458
    %v468 = vsel %vm465, %v467, %v104
    %469 = vst [vmem:[#allocation2 + $0x4] sm:$0xf] %v466
    %470 = vst [vmem:[#allocation3 + $0x4] sm:$0xf] %v468
    %v471 = vld [vmem:[#allocation9] sm:$0xf]
    %v472 = vld [vmem:[#allocation9 + $0x4] sm:$0xf]
    %v473 = vld [vmem:[#allocation9 + $0x8] sm:$0xf]
    %v474 = vld [vmem:[#allocation9 + $0xc] sm:$0xf]
    %v475 = vld [vmem:[#allocation9 + $0x10] sm:$0xf]
    %v476 = vld [vmem:[#allocation9 + $0x14] sm:$0xf]
    %v477 = vld [vmem:[#allocation9 + $0x18] sm:$0xf]
    %v478 = vld [vmem:[#allocation9 + $0x1c] sm:$0xf]
    %v479 = vld [vmem:[#allocation9 + $0x20] sm:$0xf]
    %v480 = vld [vmem:[#allocation9 + $0x24] sm:$0xf]
    %v481 = vld [vmem:[#allocation9 + $0x28] sm:$0xf]
    %v482 = vld [vmem:[#allocation9 + $0x2c] sm:$0xf]
    %v483 = vld [vmem:[#allocation9 + $0x30] sm:$0xf]
    %v484 = vld [vmem:[#allocation9 + $0x34] sm:$0xf]
    %v485 = vld [vmem:[#allocation9 + $0x38] sm:$0xf]
    %v486 = vld [vmem:[#allocation9 + $0x3c] sm:$0xf]
    %v487 = vld [vmem:[#allocation9 + $0x40] sm:$0xf]
    %v488 = vld [vmem:[#allocation9 + $0x44] sm:$0xf]
    %v489 = vld [vmem:[#allocation9 + $0x48] sm:$0xf]
    %v490 = vld [vmem:[#allocation9 + $0x4c] sm:$0xf]
    %v491 = vld [vmem:[#allocation9 + $0x50] sm:$0xf]
    %v492 = vld [vmem:[#allocation9 + $0x54] sm:$0xf]
    %v493 = vld [vmem:[#allocation9 + $0x58] sm:$0xf]
    %v494 = vld [vmem:[#allocation9 + $0x5c] sm:$0xf]
    %v495 = vld [vmem:[#allocation9 + $0x60] sm:$0xf]
    %v496 = vld [vmem:[#allocation9 + $0x64] sm:$0xf]
    %v497 = vld [vmem:[#allocation9 + $0x68] sm:$0xf]
    %v498 = vld [vmem:[#allocation9 + $0x6c] sm:$0xf]
    %v499 = vld [vmem:[#allocation9 + $0x70] sm:$0xf]
    %v500 = vld [vmem:[#allocation9 + $0x74] sm:$0xf]
    %v501 = vld [vmem:[#allocation9 + $0x78] sm:$0xf]
    %v502 = vld [vmem:[#allocation9 + $0x7c] sm:$0xf]
    %v503 = vld [vmem:[%s6] sm:$0x1]
    %v505 = vlaneseq
    %v506 = vshrl.u32 %v505, 7
    %v507 = vsub.s32 0, %v506
    %v508 = vrot.slane %v503, %v507
    %v542 = vunpack.c.l.b16 %v471
    %v543 = vunpack.c.l.b16 %v472
    %v544 = vunpack.c.l.b16 %v473
    %v545 = vunpack.c.l.b16 %v474
    %v546 = vunpack.c.l.b16 %v475
    %v547 = vunpack.c.l.b16 %v476
    %v548 = vunpack.c.l.b16 %v477
    %v549 = vunpack.c.l.b16 %v478
    %v550 = vunpack.c.l.b16 %v479
    %v551 = vunpack.c.l.b16 %v480
    %v552 = vunpack.c.l.b16 %v481
    %v553 = vunpack.c.l.b16 %v482
    %v554 = vunpack.c.l.b16 %v483
    %v555 = vunpack.c.l.b16 %v484
    %v556 = vunpack.c.l.b16 %v485
    %v557 = vunpack.c.l.b16 %v486
    %v558 = vunpack.c.l.b16 %v487
    %v559 = vunpack.c.l.b16 %v488
    %v560 = vunpack.c.l.b16 %v489
    %v561 = vunpack.c.l.b16 %v490
    %v562 = vunpack.c.l.b16 %v491
    %v563 = vunpack.c.l.b16 %v492
    %v564 = vunpack.c.l.b16 %v493
    %v565 = vunpack.c.l.b16 %v494
    %v566 = vunpack.c.l.b16 %v495
    %v567 = vunpack.c.l.b16 %v496
    %v568 = vunpack.c.l.b16 %v497
    %v569 = vunpack.c.l.b16 %v498
    %v570 = vunpack.c.l.b16 %v499
    %v571 = vunpack.c.l.b16 %v500
    %v572 = vunpack.c.l.b16 %v501
    %v573 = vunpack.c.l.b16 %v502
    %v574 = vpack.c.b16 %v543, %v542
    %v575 = vpack.c.b16 %v545, %v544
    %v576 = vpack.c.b16 %v547, %v546
    %v577 = vpack.c.b16 %v549, %v548
    %v578 = vpack.c.b16 %v551, %v550
    %v579 = vpack.c.b16 %v553, %v552
    %v580 = vpack.c.b16 %v555, %v554
    %v581 = vpack.c.b16 %v557, %v556
    %v582 = vpack.c.b16 %v559, %v558
    %v583 = vpack.c.b16 %v561, %v560
    %v584 = vpack.c.b16 %v563, %v562
    %v585 = vpack.c.b16 %v565, %v564
    %v586 = vpack.c.b16 %v567, %v566
    %v587 = vpack.c.b16 %v569, %v568
    %v588 = vpack.c.b16 %v571, %v570
    %v589 = vpack.c.b16 %v573, %v572
    %606 = vmatprep.subr.bf16.mxu0 0
    %607 = vmatpush1.bf16.msra.mxu0 %v574
    %608 = vmatprep.subr.bf16.mxu0 0
    %609 = vmatpush1.bf16.msra.mxu0 %v575
    %610 = vmatprep.subr.bf16.mxu0 0
    %611 = vmatpush1.bf16.msra.mxu0 %v576
    %612 = vmatprep.subr.bf16.mxu0 0
    %613 = vmatpush1.bf16.msra.mxu0 %v577
    %614 = vmatprep.subr.bf16.mxu0 0
    %615 = vmatpush1.bf16.msra.mxu0 %v578
    %616 = vmatprep.subr.bf16.mxu0 0
    %617 = vmatpush1.bf16.msra.mxu0 %v579
    %618 = vmatprep.subr.bf16.mxu0 0
    %619 = vmatpush1.bf16.msra.mxu0 %v580
    %620 = vmatprep.subr.bf16.mxu0 0
    %621 = vmatpush1.bf16.msra.mxu0 %v581
    %622 = vmatprep.subr.bf16.mxu0 0
    %623 = vmatpush1.bf16.msra.mxu0 %v582
    %624 = vmatprep.subr.bf16.mxu0 0
    %625 = vmatpush1.bf16.msra.mxu0 %v583
    %626 = vmatprep.subr.bf16.mxu0 0
    %627 = vmatpush1.bf16.msra.mxu0 %v584
    %628 = vmatprep.subr.bf16.mxu0 0
    %629 = vmatpush1.bf16.msra.mxu0 %v585
    %630 = vmatprep.subr.bf16.mxu0 0
    %631 = vmatpush1.bf16.msra.mxu0 %v586
    %632 = vmatprep.subr.bf16.mxu0 0
    %633 = vmatpush1.bf16.msra.mxu0 %v587
    %634 = vmatprep.subr.bf16.mxu0 0
    %635 = vmatpush1.bf16.msra.mxu0 %v588
    %636 = vmatprep.subr.bf16.mxu0 0
    %637 = vmatpush1.bf16.msra.mxu0 %v589
    %638 = vmatprep.mubr.bf16.mxu0 %v468
    %639 = vmatmul.mubr.bf16.gmra.mrb[0].mxu0 %v466
    %v640 = vpop.f32.mrb[0].mxu0
    %v641 = vadd.f32 %v508, %v640
    %v642 = vpop.f32.mrb[0].mxu0
    %v643 = vpop.f32.mrb[0].mxu0
    %v644 = vpop.f32.mrb[0].mxu0
    %645 = vdwg.mxu0
    %646 = vmax.xlane.f32.xlu0 %v641
    %v647 = vpop.xlane.xlu0 %646
    %v648 = vsub.f32 %v641, %v647
    %v649 = vmul.f32 %v648, 1.442695
    %v650 = vpow.pop %v649
    %651 = vadd.xlane.f32.xlu0 %v650
    %v652 = vpop.xlane.xlu0 %651
    %v653 = vrcp.pop %v652
    %v654 = vmul.f32 %v652, %v653
    %v655 = vsub.f32 2.0, %v654
    %v656 = vmul.f32 %v653, %v655
    %v657 = vmul.f32 %v650, %v656
    %v658 = vpack.c.bf16 %v657, %v657
    %659 = vst [vmem:[#allocation10] sm:$0xf] %v658
    %s660 = scalar_lea.vmem %s0, 8
    %v661 = vld [vmem:[%s660] sm:$0xff]
    %vm662 = vcmp.ge.s32.totalorder %v661, 0
    %s663 = scalar_lea.vmem %s1, 4
    %v664 = vld [vmem:[%s663] sm:$0xf]
    %665 = vst [vmem:[#allocation2] sm:$0xf] %v664
    %s666 = scalar_lea.vmem %s2, 4
    %v667 = vld [vmem:[%s666] sm:$0xf]
    %668 = vst [vmem:[#allocation3] sm:$0xf] %v667
    %v669 = vld [vmem:[#allocation2 + $0x4] sm:$0xf]
    %v670 = vld [vmem:[#allocation3 + $0x4] sm:$0xf]
    %v671 = vld [vmem:[#allocation2] sm:$0xff]
    %v672 = vld [vmem:[#allocation4] sm:$0xf]
    %v673 = vld [vmem:[#allocation4 + $0x4] sm:$0xf]
    %v674 = vld [vmem:[#allocation4 + $0x8] sm:$0xf]
    %v675 = vld [vmem:[#allocation4 + $0xc] sm:$0xf]
    %v676 = vld [vmem:[#allocation4 + $0x10] sm:$0xf]
    %v677 = vld [vmem:[#allocation4 + $0x14] sm:$0xf]
    %v678 = vld [vmem:[#allocation4 + $0x18] sm:$0xf]
    %v679 = vld [vmem:[#allocation4 + $0x1c] sm:$0xf]
    %v680 = vld [vmem:[#allocation4 + $0x20] sm:$0xf]
    %v681 = vld [vmem:[#allocation4 + $0x24] sm:$0xf]
    %v682 = vld [vmem:[#allocation4 + $0x28] sm:$0xf]
    %v683 = vld [vmem:[#allocation4 + $0x2c] sm:$0xf]
    %v684 = vld [vmem:[#allocation4 + $0x30] sm:$0xf]
    %v685 = vld [vmem:[#allocation4 + $0x34] sm:$0xf]
    %v686 = vld [vmem:[#allocation4 + $0x38] sm:$0xf]
    %v687 = vld [vmem:[#allocation4 + $0x3c] sm:$0xf]
    %v688 = vld [vmem:[#allocation4 + $0x40] sm:$0xf]
    %v689 = vld [vmem:[#allocation4 + $0x44] sm:$0xf]
    %v690 = vld [vmem:[#allocation4 + $0x48] sm:$0xf]
    %v691 = vld [vmem:[#allocation4 + $0x4c] sm:$0xf]
    %v692 = vld [vmem:[#allocation4 + $0x50] sm:$0xf]
    %v693 = vld [vmem:[#allocation4 + $0x54] sm:$0xf]
    %v694 = vld [vmem:[#allocation4 + $0x58] sm:$0xf]
    %v695 = vld [vmem:[#allocation4 + $0x5c] sm:$0xf]
    %v696 = vld [vmem:[#allocation4 + $0x60] sm:$0xf]
    %v697 = vld [vmem:[#allocation4 + $0x64] sm:$0xf]
    %v698 = vld [vmem:[#allocation4 + $0x68] sm:$0xf]
    %v699 = vld [vmem:[#allocation4 + $0x6c] sm:$0xf]
    %v700 = vld [vmem:[#allocation4 + $0x70] sm:$0xf]
    %v701 = vld [vmem:[#allocation4 + $0x74] sm:$0xf]
    %v702 = vld [vmem:[#allocation4 + $0x78] sm:$0xf]
    %v703 = vld [vmem:[#allocation4 + $0x7c] sm:$0xf]
    %v705 = vunpack.c.l.b16 %v671
    %v706 = vunpack.c.h.b16 %v671
    %v707 = vpack.c.b16 %v705, %v705
    %v708 = vpack.c.b16 %v706, %v706
    %v743 = vunpack.c.l.b16 %v672
    %v744 = vunpack.c.l.b16 %v673
    %v745 = vunpack.c.l.b16 %v674
    %v746 = vunpack.c.l.b16 %v675
    %v747 = vunpack.c.l.b16 %v676
    %v748 = vunpack.c.l.b16 %v677
    %v749 = vunpack.c.l.b16 %v678
    %v750 = vunpack.c.l.b16 %v679
    %v751 = vunpack.c.l.b16 %v680
    %v752 = vunpack.c.l.b16 %v681
    %v753 = vunpack.c.l.b16 %v682
    %v754 = vunpack.c.l.b16 %v683
    %v755 = vunpack.c.l.b16 %v684
    %v756 = vunpack.c.l.b16 %v685
    %v757 = vunpack.c.l.b16 %v686
    %v758 = vunpack.c.l.b16 %v687
    %v759 = vunpack.c.l.b16 %v688
    %v760 = vunpack.c.l.b16 %v689
    %v761 = vunpack.c.l.b16 %v690
    %v762 = vunpack.c.l.b16 %v691
    %v763 = vunpack.c.l.b16 %v692
    %v764 = vunpack.c.l.b16 %v693
    %v765 = vunpack.c.l.b16 %v694
    %v766 = vunpack.c.l.b16 %v695
    %v767 = vunpack.c.l.b16 %v696
    %v768 = vunpack.c.l.b16 %v697
    %v769 = vunpack.c.l.b16 %v698
    %v770 = vunpack.c.l.b16 %v699
    %v771 = vunpack.c.l.b16 %v700
    %v772 = vunpack.c.l.b16 %v701
    %v773 = vunpack.c.l.b16 %v702
    %v774 = vunpack.c.l.b16 %v703
    %v775 = vpack.c.b16 %v744, %v743
    %v776 = vpack.c.b16 %v746, %v745
    %v777 = vpack.c.b16 %v748, %v747
    %v778 = vpack.c.b16 %v750, %v749
    %v779 = vpack.c.b16 %v752, %v751
    %v780 = vpack.c.b16 %v754, %v753
    %v781 = vpack.c.b16 %v756, %v755
    %v782 = vpack.c.b16 %v758, %v757
    %v783 = vpack.c.b16 %v760, %v759
    %v784 = vpack.c.b16 %v762, %v761
    %v785 = vpack.c.b16 %v764, %v763
    %v786 = vpack.c.b16 %v766, %v765
    %v787 = vpack.c.b16 %v768, %v767
    %v788 = vpack.c.b16 %v770, %v769
    %v789 = vpack.c.b16 %v772, %v771
    %v790 = vpack.c.b16 %v774, %v773
    %807 = vmatprep.subr.bf16.mxu0 0
    %808 = vmatpush1.bf16.msra.mxu0 %v775
    %809 = vmatprep.subr.bf16.mxu0 0
    %810 = vmatpush1.bf16.msra.mxu0 %v776
    %811 = vmatprep.subr.bf16.mxu0 0
    %812 = vmatpush1.bf16.msra.mxu0 %v777
    %813 = vmatprep.subr.bf16.mxu0 0
    %814 = vmatpush1.bf16.msra.mxu0 %v778
    %815 = vmatprep.subr.bf16.mxu0 0
    %816 = vmatpush1.bf16.msra.mxu0 %v779
    %817 = vmatprep.subr.bf16.mxu0 0
    %818 = vmatpush1.bf16.msra.mxu0 %v780
    %819 = vmatprep.subr.bf16.mxu0 0
    %820 = vmatpush1.bf16.msra.mxu0 %v781
    %821 = vmatprep.subr.bf16.mxu0 0
    %822 = vmatpush1.bf16.msra.mxu0 %v782
    %823 = vmatprep.subr.bf16.mxu0 0
    %824 = vmatpush1.bf16.msra.mxu0 %v783
    %825 = vmatprep.subr.bf16.mxu0 0
    %826 = vmatpush1.bf16.msra.mxu0 %v784
    %827 = vmatprep.subr.bf16.mxu0 0
    %828 = vmatpush1.bf16.msra.mxu0 %v785
    %829 = vmatprep.subr.bf16.mxu0 0
    %830 = vmatpush1.bf16.msra.mxu0 %v786
    %831 = vmatprep.subr.bf16.mxu0 0
    %832 = vmatpush1.bf16.msra.mxu0 %v787
    %833 = vmatprep.subr.bf16.mxu0 0
    %834 = vmatpush1.bf16.msra.mxu0 %v788
    %835 = vmatprep.subr.bf16.mxu0 0
    %836 = vmatpush1.bf16.msra.mxu0 %v789
    %837 = vmatprep.subr.bf16.mxu0 0
    %838 = vmatpush1.bf16.msra.mxu0 %v790
    %839 = vmatprep.mubr.bf16.mxu0 %v708
    %840 = vmatmul.mubr.bf16.gmra.mrb[0].mxu0 %v707
    %v841 = vpop.f32.mrb[0].mxu0
    %v842 = vadd.f32 0.0, %v841
    %v843 = vpop.f32.mrb[0].mxu0
    %v844 = vpop.f32.mrb[0].mxu0
    %v845 = vpop.f32.mrb[0].mxu0
    %846 = vdwg.mxu0
    %v847 = vtanh.pop %v842
    %v848 = vld [vmem:[#allocation3] sm:$0xff]
    %v849 = vld [vmem:[#allocation7] sm:$0xf]
    %v850 = vld [vmem:[#allocation7 + $0x4] sm:$0xf]
    %v851 = vld [vmem:[#allocation7 + $0x8] sm:$0xf]
    %v852 = vld [vmem:[#allocation7 + $0xc] sm:$0xf]
    %v853 = vld [vmem:[#allocation7 + $0x10] sm:$0xf]
    %v854 = vld [vmem:[#allocation7 + $0x14] sm:$0xf]
    %v855 = vld [vmem:[#allocation7 + $0x18] sm:$0xf]
    %v856 = vld [vmem:[#allocation7 + $0x1c] sm:$0xf]
    %v857 = vld [vmem:[#allocation7 + $0x20] sm:$0xf]
    %v858 = vld [vmem:[#allocation7 + $0x24] sm:$0xf]
    %v859 = vld [vmem:[#allocation7 + $0x28] sm:$0xf]
    %v860 = vld [vmem:[#allocation7 + $0x2c] sm:$0xf]
    %v861 = vld [vmem:[#allocation7 + $0x30] sm:$0xf]
    %v862 = vld [vmem:[#allocation7 + $0x34] sm:$0xf]
    %v863 = vld [vmem:[#allocation7 + $0x38] sm:$0xf]
    %v864 = vld [vmem:[#allocation7 + $0x3c] sm:$0xf]
    %v865 = vld [vmem:[#allocation7 + $0x40] sm:$0xf]
    %v866 = vld [vmem:[#allocation7 + $0x44] sm:$0xf]
    %v867 = vld [vmem:[#allocation7 + $0x48] sm:$0xf]
    %v868 = vld [vmem:[#allocation7 + $0x4c] sm:$0xf]
    %v869 = vld [vmem:[#allocation7 + $0x50] sm:$0xf]
    %v870 = vld [vmem:[#allocation7 + $0x54] sm:$0xf]
    %v871 = vld [vmem:[#allocation7 + $0x58] sm:$0xf]
    %v872 = vld [vmem:[#allocation7 + $0x5c] sm:$0xf]
    %v873 = vld [vmem:[#allocation7 + $0x60] sm:$0xf]
    %v874 = vld [vmem:[#allocation7 + $0x64] sm:$0xf]
    %v875 = vld [vmem:[#allocation7 + $0x68] sm:$0xf]
    %v876 = vld [vmem:[#allocation7 + $0x6c] sm:$0xf]
    %v877 = vld [vmem:[#allocation7 + $0x70] sm:$0xf]
    %v878 = vld [vmem:[#allocation7 + $0x74] sm:$0xf]
    %v879 = vld [vmem:[#allocation7 + $0x78] sm:$0xf]
    %v880 = vld [vmem:[#allocation7 + $0x7c] sm:$0xf]
    %v882 = vunpack.c.l.b16 %v848
    %v883 = vunpack.c.h.b16 %v848
    %v884 = vpack.c.b16 %v882, %v882
    %v885 = vpack.c.b16 %v883, %v883
    %v920 = vunpack.c.l.b16 %v849
    %v921 = vunpack.c.l.b16 %v850
    %v922 = vunpack.c.l.b16 %v851
    %v923 = vunpack.c.l.b16 %v852
    %v924 = vunpack.c.l.b16 %v853
    %v925 = vunpack.c.l.b16 %v854
    %v926 = vunpack.c.l.b16 %v855
    %v927 = vunpack.c.l.b16 %v856
    %v928 = vunpack.c.l.b16 %v857
    %v929 = vunpack.c.l.b16 %v858
    %v930 = vunpack.c.l.b16 %v859
    %v931 = vunpack.c.l.b16 %v860
    %v932 = vunpack.c.l.b16 %v861
    %v933 = vunpack.c.l.b16 %v862
    %v934 = vunpack.c.l.b16 %v863
    %v935 = vunpack.c.l.b16 %v864
    %v936 = vunpack.c.l.b16 %v865
    %v937 = vunpack.c.l.b16 %v866
    %v938 = vunpack.c.l.b16 %v867
    %v939 = vunpack.c.l.b16 %v868
    %v940 = vunpack.c.l.b16 %v869
    %v941 = vunpack.c.l.b16 %v870
    %v942 = vunpack.c.l.b16 %v871
    %v943 = vunpack.c.l.b16 %v872
    %v944 = vunpack.c.l.b16 %v873
    %v945 = vunpack.c.l.b16 %v874
    %v946 = vunpack.c.l.b16 %v875
    %v947 = vunpack.c.l.b16 %v876
    %v948 = vunpack.c.l.b16 %v877
    %v949 = vunpack.c.l.b16 %v878
    %v950 = vunpack.c.l.b16 %v879
    %v951 = vunpack.c.l.b16 %v880
    %v952 = vpack.c.b16 %v921, %v920
    %v953 = vpack.c.b16 %v923, %v922
    %v954 = vpack.c.b16 %v925, %v924
    %v955 = vpack.c.b16 %v927, %v926
    %v956 = vpack.c.b16 %v929, %v928
    %v957 = vpack.c.b16 %v931, %v930
    %v958 = vpack.c.b16 %v933, %v932
    %v959 = vpack.c.b16 %v935, %v934
    %v960 = vpack.c.b16 %v937, %v936
    %v961 = vpack.c.b16 %v939, %v938
    %v962 = vpack.c.b16 %v941, %v940
    %v963 = vpack.c.b16 %v943, %v942
    %v964 = vpack.c.b16 %v945, %v944
    %v965 = vpack.c.b16 %v947, %v946
    %v966 = vpack.c.b16 %v949, %v948
    %v967 = vpack.c.b16 %v951, %v950
    %984 = vmatprep.subr.bf16.mxu0 0
    %985 = vmatpush1.bf16.msra.mxu0 %v952
    %986 = vmatprep.subr.bf16.mxu0 0
    %987 = vmatpush1.bf16.msra.mxu0 %v953
    %988 = vmatprep.subr.bf16.mxu0 0
    %989 = vmatpush1.bf16.msra.mxu0 %v954
    %990 = vmatprep.subr.bf16.mxu0 0
    %991 = vmatpush1.bf16.msra.mxu0 %v955
    %992 = vmatprep.subr.bf16.mxu0 0
    %993 = vmatpush1.bf16.msra.mxu0 %v956
    %994 = vmatprep.subr.bf16.mxu0 0
    %995 = vmatpush1.bf16.msra.mxu0 %v957
    %996 = vmatprep.subr.bf16.mxu0 0
    %997 = vmatpush1.bf16.msra.mxu0 %v958
    %998 = vmatprep.subr.bf16.mxu0 0
    %999 = vmatpush1.bf16.msra.mxu0 %v959
    %1000 = vmatprep.subr.bf16.mxu0 0
    %1001 = vmatpush1.bf16.msra.mxu0 %v960
    %1002 = vmatprep.subr.bf16.mxu0 0
    %1003 = vmatpush1.bf16.msra.mxu0 %v961
    %1004 = vmatprep.subr.bf16.mxu0 0
    %1005 = vmatpush1.bf16.msra.mxu0 %v962
    %1006 = vmatprep.subr.bf16.mxu0 0
    %1007 = vmatpush1.bf16.msra.mxu0 %v963
    %1008 = vmatprep.subr.bf16.mxu0 0
    %1009 = vmatpush1.bf16.msra.mxu0 %v964
    %1010 = vmatprep.subr.bf16.mxu0 0
    %1011 = vmatpush1.bf16.msra.mxu0 %v965
    %1012 = vmatprep.subr.bf16.mxu0 0
    %1013 = vmatpush1.bf16.msra.mxu0 %v966
    %1014 = vmatprep.subr.bf16.mxu0 0
    %1015 = vmatpush1.bf16.msra.mxu0 %v967
    %1016 = vmatprep.mubr.bf16.mxu0 %v885
    %1017 = vmatmul.mubr.bf16.gmra.mrb[0].mxu0 %v884
    %v1018 = vpop.f32.mrb[0].mxu0
    %v1019 = vadd.f32 0.0, %v1018
    %v1020 = vpop.f32.mrb[0].mxu0
    %v1021 = vpop.f32.mrb[0].mxu0
    %v1022 = vpop.f32.mrb[0].mxu0
    %1023 = vdwg.mxu0
    %v1024 = vtanh.pop %v1019
    %v1025 = vpack.c.bf16 %v847, %v847
    %v1026 = vsel %vm662, 1, 0
    %1027 = vset.pattern.permute.xlu0 0
    %1028 = vperm.xlu0 %1027, %v1026
    %v1029 = vpop.permute.xlu0 %1028
    %vm1030 = vcmp.eq.s32.totalorder %v1029, 1
    %vm1031 = vmpackc.low %vm1030, %vm1030
    %v1032 = vsel %vm1031, %v1025, %v669
    %v1033 = vpack.c.bf16 %v1024, %v1024
    %v1034 = vsel %vm1031, %v1033, %v670
    %1035 = vst [vmem:[#allocation2 + $0x4] sm:$0xf] %v1032
    %1036 = vst [vmem:[#allocation3 + $0x4] sm:$0xf] %v1034
    %v1037 = vld [vmem:[#allocation9] sm:$0xf]
    %v1038 = vld [vmem:[#allocation9 + $0x4] sm:$0xf]
    %v1039 = vld [vmem:[#allocation9 + $0x8] sm:$0xf]
    %v1040 = vld [vmem:[#allocation9 + $0xc] sm:$0xf]
    %v1041 = vld [vmem:[#allocation9 + $0x10] sm:$0xf]
    %v1042 = vld [vmem:[#allocation9 + $0x14] sm:$0xf]
    %v1043 = vld [vmem:[#allocation9 + $0x18] sm:$0xf]
    %v1044 = vld [vmem:[#allocation9 + $0x1c] sm:$0xf]
    %v1045 = vld [vmem:[#allocation9 + $0x20] sm:$0xf]
    %v1046 = vld [vmem:[#allocation9 + $0x24] sm:$0xf]
    %v1047 = vld [vmem:[#allocation9 + $0x28] sm:$0xf]
    %v1048 = vld [vmem:[#allocation9 + $0x2c] sm:$0xf]
    %v1049 = vld [vmem:[#allocation9 + $0x30] sm:$0xf]
    %v1050 = vld [vmem:[#allocation9 + $0x34] sm:$0xf]
    %v1051 = vld [vmem:[#allocation9 + $0x38] sm:$0xf]
    %v1052 = vld [vmem:[#allocation9 + $0x3c] sm:$0xf]
    %v1053 = vld [vmem:[#allocation9 + $0x40] sm:$0xf]
    %v1054 = vld [vmem:[#allocation9 + $0x44] sm:$0xf]
    %v1055 = vld [vmem:[#allocation9 + $0x48] sm:$0xf]
    %v1056 = vld [vmem:[#allocation9 + $0x4c] sm:$0xf]
    %v1057 = vld [vmem:[#allocation9 + $0x50] sm:$0xf]
    %v1058 = vld [vmem:[#allocation9 + $0x54] sm:$0xf]
    %v1059 = vld [vmem:[#allocation9 + $0x58] sm:$0xf]
    %v1060 = vld [vmem:[#allocation9 + $0x5c] sm:$0xf]
    %v1061 = vld [vmem:[#allocation9 + $0x60] sm:$0xf]
    %v1062 = vld [vmem:[#allocation9 + $0x64] sm:$0xf]
    %v1063 = vld [vmem:[#allocation9 + $0x68] sm:$0xf]
    %v1064 = vld [vmem:[#allocation9 + $0x6c] sm:$0xf]
    %v1065 = vld [vmem:[#allocation9 + $0x70] sm:$0xf]
    %v1066 = vld [vmem:[#allocation9 + $0x74] sm:$0xf]
    %v1067 = vld [vmem:[#allocation9 + $0x78] sm:$0xf]
    %v1068 = vld [vmem:[#allocation9 + $0x7c] sm:$0xf]
    %v1069 = vld [vmem:[%s6] sm:$0x1]
    %v1071 = vlaneseq
    %v1072 = vshrl.u32 %v1071, 7
    %v1073 = vsub.s32 0, %v1072
    %v1074 = vrot.slane %v1069, %v1073
    %v1108 = vunpack.c.l.b16 %v1037
    %v1109 = vunpack.c.l.b16 %v1038
    %v1110 = vunpack.c.l.b16 %v1039
    %v1111 = vunpack.c.l.b16 %v1040
    %v1112 = vunpack.c.l.b16 %v1041
    %v1113 = vunpack.c.l.b16 %v1042
    %v1114 = vunpack.c.l.b16 %v1043
    %v1115 = vunpack.c.l.b16 %v1044
    %v1116 = vunpack.c.l.b16 %v1045
    %v1117 = vunpack.c.l.b16 %v1046
    %v1118 = vunpack.c.l.b16 %v1047
    %v1119 = vunpack.c.l.b16 %v1048
    %v1120 = vunpack.c.l.b16 %v1049
    %v1121 = vunpack.c.l.b16 %v1050
    %v1122 = vunpack.c.l.b16 %v1051
    %v1123 = vunpack.c.l.b16 %v1052
    %v1124 = vunpack.c.l.b16 %v1053
    %v1125 = vunpack.c.l.b16 %v1054
    %v1126 = vunpack.c.l.b16 %v1055
    %v1127 = vunpack.c.l.b16 %v1056
    %v1128 = vunpack.c.l.b16 %v1057
    %v1129 = vunpack.c.l.b16 %v1058
    %v1130 = vunpack.c.l.b16 %v1059
    %v1131 = vunpack.c.l.b16 %v1060
    %v1132 = vunpack.c.l.b16 %v1061
    %v1133 = vunpack.c.l.b16 %v1062
    %v1134 = vunpack.c.l.b16 %v1063
    %v1135 = vunpack.c.l.b16 %v1064
    %v1136 = vunpack.c.l.b16 %v1065
    %v1137 = vunpack.c.l.b16 %v1066
    %v1138 = vunpack.c.l.b16 %v1067
    %v1139 = vunpack.c.l.b16 %v1068
    %v1140 = vpack.c.b16 %v1109, %v1108
    %v1141 = vpack.c.b16 %v1111, %v1110
    %v1142 = vpack.c.b16 %v1113, %v1112
    %v1143 = vpack.c.b16 %v1115, %v1114
    %v1144 = vpack.c.b16 %v1117, %v1116
    %v1145 = vpack.c.b16 %v1119, %v1118
    %v1146 = vpack.c.b16 %v1121, %v1120
    %v1147 = vpack.c.b16 %v1123, %v1122
    %v1148 = vpack.c.b16 %v1125, %v1124
    %v1149 = vpack.c.b16 %v1127, %v1126
    %v1150 = vpack.c.b16 %v1129, %v1128
    %v1151 = vpack.c.b16 %v1131, %v1130
    %v1152 = vpack.c.b16 %v1133, %v1132
    %v1153 = vpack.c.b16 %v1135, %v1134
    %v1154 = vpack.c.b16 %v1137, %v1136
    %v1155 = vpack.c.b16 %v1139, %v1138
    %1172 = vmatprep.subr.bf16.mxu0 0
    %1173 = vmatpush1.bf16.msra.mxu0 %v1140
    %1174 = vmatprep.subr.bf16.mxu0 0
    %1175 = vmatpush1.bf16.msra.mxu0 %v1141
    %1176 = vmatprep.subr.bf16.mxu0 0
    %1177 = vmatpush1.bf16.msra.mxu0 %v1142
    %1178 = vmatprep.subr.bf16.mxu0 0
    %1179 = vmatpush1.bf16.msra.mxu0 %v1143
    %1180 = vmatprep.subr.bf16.mxu0 0
    %1181 = vmatpush1.bf16.msra.mxu0 %v1144
    %1182 = vmatprep.subr.bf16.mxu0 0
    %1183 = vmatpush1.bf16.msra.mxu0 %v1145
    %1184 = vmatprep.subr.bf16.mxu0 0
    %1185 = vmatpush1.bf16.msra.mxu0 %v1146
    %1186 = vmatprep.subr.bf16.mxu0 0
    %1187 = vmatpush1.bf16.msra.mxu0 %v1147
    %1188 = vmatprep.subr.bf16.mxu0 0
    %1189 = vmatpush1.bf16.msra.mxu0 %v1148
    %1190 = vmatprep.subr.bf16.mxu0 0
    %1191 = vmatpush1.bf16.msra.mxu0 %v1149
    %1192 = vmatprep.subr.bf16.mxu0 0
    %1193 = vmatpush1.bf16.msra.mxu0 %v1150
    %1194 = vmatprep.subr.bf16.mxu0 0
    %1195 = vmatpush1.bf16.msra.mxu0 %v1151
    %1196 = vmatprep.subr.bf16.mxu0 0
    %1197 = vmatpush1.bf16.msra.mxu0 %v1152
    %1198 = vmatprep.subr.bf16.mxu0 0
    %1199 = vmatpush1.bf16.msra.mxu0 %v1153
    %1200 = vmatprep.subr.bf16.mxu0 0
    %1201 = vmatpush1.bf16.msra.mxu0 %v1154
    %1202 = vmatprep.subr.bf16.mxu0 0
    %1203 = vmatpush1.bf16.msra.mxu0 %v1155
    %1204 = vmatprep.mubr.bf16.mxu0 %v1034
    %1205 = vmatmul.mubr.bf16.gmra.mrb[0].mxu0 %v1032
    %v1206 = vpop.f32.mrb[0].mxu0
    %v1207 = vadd.f32 %v1074, %v1206
    %v1208 = vpop.f32.mrb[0].mxu0
    %v1209 = vpop.f32.mrb[0].mxu0
    %v1210 = vpop.f32.mrb[0].mxu0
    %1211 = vdwg.mxu0
    %1212 = vmax.xlane.f32.xlu0 %v1207
    %v1213 = vpop.xlane.xlu0 %1212
    %v1214 = vsub.f32 %v1207, %v1213
    %v1215 = vmul.f32 %v1214, 1.442695
    %v1216 = vpow.pop %v1215
    %1217 = vadd.xlane.f32.xlu0 %v1216
    %v1218 = vpop.xlane.xlu0 %1217
    %v1219 = vrcp.pop %v1218
    %v1220 = vmul.f32 %v1218, %v1219
    %v1221 = vsub.f32 2.0, %v1220
    %v1222 = vmul.f32 %v1219, %v1221
    %v1223 = vmul.f32 %v1216, %v1222
    %v1224 = vpack.c.bf16 %v1223, %v1223
    %s1225 = scalar_lea.vmem [#allocation10], 4
    %1226 = vst [vmem:[%s1225] sm:$0xf] %v1224
    %s1227 = scalar_lea.vmem %s0, 16
    %v1228 = vld [vmem:[%s1227] sm:$0xff]
    %vm1229 = vcmp.ge.s32.totalorder %v1228, 0
    %s1230 = scalar_lea.vmem %s1, 8
    %v1231 = vld [vmem:[%s1230] sm:$0xf]
    %1232 = vst [vmem:[#allocation2] sm:$0xf] %v1231
    %s1233 = scalar_lea.vmem %s2, 8
    %v1234 = vld [vmem:[%s1233] sm:$0xf]
    %1235 = vst [vmem:[#allocation3] sm:$0xf] %v1234
    %v1236 = vld [vmem:[#allocation2 + $0x4] sm:$0xf]
    %v1237 = vld [vmem:[#allocation3 + $0x4] sm:$0xf]
    %v1238 = vld [vmem:[#allocation2] sm:$0xff]
    %v1239 = vld [vmem:[#allocation4] sm:$0xf]
    %v1240 = vld [vmem:[#allocation4 + $0x4] sm:$0xf]
    %v1241 = vld [vmem:[#allocation4 + $0x8] sm:$0xf]
    %v1242 = vld [vmem:[#allocation4 + $0xc] sm:$0xf]
    %v1243 = vld [vmem:[#allocation4 + $0x10] sm:$0xf]
    %v1244 = vld [vmem:[#allocation4 + $0x14] sm:$0xf]
    %v1245 = vld [vmem:[#allocation4 + $0x18] sm:$0xf]
    %v1246 = vld [vmem:[#allocation4 + $0x1c] sm:$0xf]
    %v1247 = vld [vmem:[#allocation4 + $0x20] sm:$0xf]
    %v1248 = vld [vmem:[#allocation4 + $0x24] sm:$0xf]
    %v1249 = vld [vmem:[#allocation4 + $0x28] sm:$0xf]
    %v1250 = vld [vmem:[#allocation4 + $0x2c] sm:$0xf]
    %v1251 = vld [vmem:[#allocation4 + $0x30] sm:$0xf]
    %v1252 = vld [vmem:[#allocation4 + $0x34] sm:$0xf]
    %v1253 = vld [vmem:[#allocation4 + $0x38] sm:$0xf]
    %v1254 = vld [vmem:[#allocation4 + $0x3c] sm:$0xf]
    %v1255 = vld [vmem:[#allocation4 + $0x40] sm:$0xf]
    %v1256 = vld [vmem:[#allocation4 + $0x44] sm:$0xf]
    %v1257 = vld [vmem:[#allocation4 + $0x48] sm:$0xf]
    %v1258 = vld [vmem:[#allocation4 + $0x4c] sm:$0xf]
    %v1259 = vld [vmem:[#allocation4 + $0x50] sm:$0xf]
    %v1260 = vld [vmem:[#allocation4 + $0x54] sm:$0xf]
    %v1261 = vld [vmem:[#allocation4 + $0x58] sm:$0xf]
    %v1262 = vld [vmem:[#allocation4 + $0x5c] sm:$0xf]
    %v1263 = vld [vmem:[#allocation4 + $0x60] sm:$0xf]
    %v1264 = vld [vmem:[#allocation4 + $0x64] sm:$0xf]
    %v1265 = vld [vmem:[#allocation4 + $0x68] sm:$0xf]
    %v1266 = vld [vmem:[#allocation4 + $0x6c] sm:$0xf]
    %v1267 = vld [vmem:[#allocation4 + $0x70] sm:$0xf]
    %v1268 = vld [vmem:[#allocation4 + $0x74] sm:$0xf]
    %v1269 = vld [vmem:[#allocation4 + $0x78] sm:$0xf]
    %v1270 = vld [vmem:[#allocation4 + $0x7c] sm:$0xf]
    %v1272 = vunpack.c.l.b16 %v1238
    %v1273 = vunpack.c.h.b16 %v1238
    %v1274 = vpack.c.b16 %v1272, %v1272
    %v1275 = vpack.c.b16 %v1273, %v1273
    %v1310 = vunpack.c.l.b16 %v1239
    %v1311 = vunpack.c.l.b16 %v1240
    %v1312 = vunpack.c.l.b16 %v1241
    %v1313 = vunpack.c.l.b16 %v1242
    %v1314 = vunpack.c.l.b16 %v1243
    %v1315 = vunpack.c.l.b16 %v1244
    %v1316 = vunpack.c.l.b16 %v1245
    %v1317 = vunpack.c.l.b16 %v1246
    %v1318 = vunpack.c.l.b16 %v1247
    %v1319 = vunpack.c.l.b16 %v1248
    %v1320 = vunpack.c.l.b16 %v1249
    %v1321 = vunpack.c.l.b16 %v1250
    %v1322 = vunpack.c.l.b16 %v1251
    %v1323 = vunpack.c.l.b16 %v1252
    %v1324 = vunpack.c.l.b16 %v1253
    %v1325 = vunpack.c.l.b16 %v1254
    %v1326 = vunpack.c.l.b16 %v1255
    %v1327 = vunpack.c.l.b16 %v1256
    %v1328 = vunpack.c.l.b16 %v1257
    %v1329 = vunpack.c.l.b16 %v1258
    %v1330 = vunpack.c.l.b16 %v1259
    %v1331 = vunpack.c.l.b16 %v1260
    %v1332 = vunpack.c.l.b16 %v1261
    %v1333 = vunpack.c.l.b16 %v1262
    %v1334 = vunpack.c.l.b16 %v1263
    %v1335 = vunpack.c.l.b16 %v1264
    %v1336 = vunpack.c.l.b16 %v1265
    %v1337 = vunpack.c.l.b16 %v1266
    %v1338 = vunpack.c.l.b16 %v1267
    %v1339 = vunpack.c.l.b16 %v1268
    %v1340 = vunpack.c.l.b16 %v1269
    %v1341 = vunpack.c.l.b16 %v1270
    %v1342 = vpack.c.b16 %v1311, %v1310
    %v1343 = vpack.c.b16 %v1313, %v1312
    %v1344 = vpack.c.b16 %v1315, %v1314
    %v1345 = vpack.c.b16 %v1317, %v1316
    %v1346 = vpack.c.b16 %v1319, %v1318
    %v1347 = vpack.c.b16 %v1321, %v1320
    %v1348 = vpack.c.b16 %v1323, %v1322
    %v1349 = vpack.c.b16 %v1325, %v1324
    %v1350 = vpack.c.b16 %v1327, %v1326
    %v1351 = vpack.c.b16 %v1329, %v1328
    %v1352 = vpack.c.b16 %v1331, %v1330
    %v1353 = vpack.c.b16 %v1333, %v1332
    %v1354 = vpack.c.b16 %v1335, %v1334
    %v1355 = vpack.c.b16 %v1337, %v1336
    %v1356 = vpack.c.b16 %v1339, %v1338
    %v1357 = vpack.c.b16 %v1341, %v1340
    %1374 = vmatprep.subr.bf16.mxu0 0
    %1375 = vmatpush1.bf16.msra.mxu0 %v1342
    %1376 = vmatprep.subr.bf16.mxu0 0
    %1377 = vmatpush1.bf16.msra.mxu0 %v1343
    %1378 = vmatprep.subr.bf16.mxu0 0
    %1379 = vmatpush1.bf16.msra.mxu0 %v1344
    %1380 = vmatprep.subr.bf16.mxu0 0
    %1381 = vmatpush1.bf16.msra.mxu0 %v1345
    %1382 = vmatprep.subr.bf16.mxu0 0
    %1383 = vmatpush1.bf16.msra.mxu0 %v1346
    %1384 = vmatprep.subr.bf16.mxu0 0
    %1385 = vmatpush1.bf16.msra.mxu0 %v1347
    %1386 = vmatprep.subr.bf16.mxu0 0
    %1387 = vmatpush1.bf16.msra.mxu0 %v1348
    %1388 = vmatprep.subr.bf16.mxu0 0
    %1389 = vmatpush1.bf16.msra.mxu0 %v1349
    %1390 = vmatprep.subr.bf16.mxu0 0
    %1391 = vmatpush1.bf16.msra.mxu0 %v1350
    %1392 = vmatprep.subr.bf16.mxu0 0
    %1393 = vmatpush1.bf16.msra.mxu0 %v1351
    %1394 = vmatprep.subr.bf16.mxu0 0
    %1395 = vmatpush1.bf16.msra.mxu0 %v1352
    %1396 = vmatprep.subr.bf16.mxu0 0
    %1397 = vmatpush1.bf16.msra.mxu0 %v1353
    %1398 = vmatprep.subr.bf16.mxu0 0
    %1399 = vmatpush1.bf16.msra.mxu0 %v1354
    %1400 = vmatprep.subr.bf16.mxu0 0
    %1401 = vmatpush1.bf16.msra.mxu0 %v1355
    %1402 = vmatprep.subr.bf16.mxu0 0
    %1403 = vmatpush1.bf16.msra.mxu0 %v1356
    %1404 = vmatprep.subr.bf16.mxu0 0
    %1405 = vmatpush1.bf16.msra.mxu0 %v1357
    %1406 = vmatprep.mubr.bf16.mxu0 %v1275
    %1407 = vmatmul.mubr.bf16.gmra.mrb[0].mxu0 %v1274
    %v1408 = vpop.f32.mrb[0].mxu0
    %v1409 = vadd.f32 0.0, %v1408
    %v1410 = vpop.f32.mrb[0].mxu0
    %v1411 = vpop.f32.mrb[0].mxu0
    %v1412 = vpop.f32.mrb[0].mxu0
    %1413 = vdwg.mxu0
    %v1414 = vtanh.pop %v1409
    %v1415 = vld [vmem:[#allocation3] sm:$0xff]
    %v1416 = vld [vmem:[#allocation7] sm:$0xf]
    %v1417 = vld [vmem:[#allocation7 + $0x4] sm:$0xf]
    %v1418 = vld [vmem:[#allocation7 + $0x8] sm:$0xf]
    %v1419 = vld [vmem:[#allocation7 + $0xc] sm:$0xf]
    %v1420 = vld [vmem:[#allocation7 + $0x10] sm:$0xf]
    %v1421 = vld [vmem:[#allocation7 + $0x14] sm:$0xf]
    %v1422 = vld [vmem:[#allocation7 + $0x18] sm:$0xf]
    %v1423 = vld [vmem:[#allocation7 + $0x1c] sm:$0xf]
    %v1424 = vld [vmem:[#allocation7 + $0x20] sm:$0xf]
    %v1425 = vld [vmem:[#allocation7 + $0x24] sm:$0xf]
    %v1426 = vld [vmem:[#allocation7 + $0x28] sm:$0xf]
    %v1427 = vld [vmem:[#allocation7 + $0x2c] sm:$0xf]
    %v1428 = vld [vmem:[#allocation7 + $0x30] sm:$0xf]
    %v1429 = vld [vmem:[#allocation7 + $0x34] sm:$0xf]
    %v1430 = vld [vmem:[#allocation7 + $0x38] sm:$0xf]
    %v1431 = vld [vmem:[#allocation7 + $0x3c] sm:$0xf]
    %v1432 = vld [vmem:[#allocation7 + $0x40] sm:$0xf]
    %v1433 = vld [vmem:[#allocation7 + $0x44] sm:$0xf]
    %v1434 = vld [vmem:[#allocation7 + $0x48] sm:$0xf]
    %v1435 = vld [vmem:[#allocation7 + $0x4c] sm:$0xf]
    %v1436 = vld [vmem:[#allocation7 + $0x50] sm:$0xf]
    %v1437 = vld [vmem:[#allocation7 + $0x54] sm:$0xf]
    %v1438 = vld [vmem:[#allocation7 + $0x58] sm:$0xf]
    %v1439 = vld [vmem:[#allocation7 + $0x5c] sm:$0xf]
    %v1440 = vld [vmem:[#allocation7 + $0x60] sm:$0xf]
    %v1441 = vld [vmem:[#allocation7 + $0x64] sm:$0xf]
    %v1442 = vld [vmem:[#allocation7 + $0x68] sm:$0xf]
    %v1443 = vld [vmem:[#allocation7 + $0x6c] sm:$0xf]
    %v1444 = vld [vmem:[#allocation7 + $0x70] sm:$0xf]
    %v1445 = vld [vmem:[#allocation7 + $0x74] sm:$0xf]
    %v1446 = vld [vmem:[#allocation7 + $0x78] sm:$0xf]
    %v1447 = vld [vmem:[#allocation7 + $0x7c] sm:$0xf]
    %v1449 = vunpack.c.l.b16 %v1415
    %v1450 = vunpack.c.h.b16 %v1415
    %v1451 = vpack.c.b16 %v1449, %v1449
    %v1452 = vpack.c.b16 %v1450, %v1450
    %v1487 = vunpack.c.l.b16 %v1416
    %v1488 = vunpack.c.l.b16 %v1417
    %v1489 = vunpack.c.l.b16 %v1418
    %v1490 = vunpack.c.l.b16 %v1419
    %v1491 = vunpack.c.l.b16 %v1420
    %v1492 = vunpack.c.l.b16 %v1421
    %v1493 = vunpack.c.l.b16 %v1422
    %v1494 = vunpack.c.l.b16 %v1423
    %v1495 = vunpack.c.l.b16 %v1424
    %v1496 = vunpack.c.l.b16 %v1425
    %v1497 = vunpack.c.l.b16 %v1426
    %v1498 = vunpack.c.l.b16 %v1427
    %v1499 = vunpack.c.l.b16 %v1428
    %v1500 = vunpack.c.l.b16 %v1429
    %v1501 = vunpack.c.l.b16 %v1430
    %v1502 = vunpack.c.l.b16 %v1431
    %v1503 = vunpack.c.l.b16 %v1432
    %v1504 = vunpack.c.l.b16 %v1433
    %v1505 = vunpack.c.l.b16 %v1434
    %v1506 = vunpack.c.l.b16 %v1435
    %v1507 = vunpack.c.l.b16 %v1436
    %v1508 = vunpack.c.l.b16 %v1437
    %v1509 = vunpack.c.l.b16 %v1438
    %v1510 = vunpack.c.l.b16 %v1439
    %v1511 = vunpack.c.l.b16 %v1440
    %v1512 = vunpack.c.l.b16 %v1441
    %v1513 = vunpack.c.l.b16 %v1442
    %v1514 = vunpack.c.l.b16 %v1443
    %v1515 = vunpack.c.l.b16 %v1444
    %v1516 = vunpack.c.l.b16 %v1445
    %v1517 = vunpack.c.l.b16 %v1446
    %v1518 = vunpack.c.l.b16 %v1447
    %v1519 = vpack.c.b16 %v1488, %v1487
    %v1520 = vpack.c.b16 %v1490, %v1489
    %v1521 = vpack.c.b16 %v1492, %v1491
    %v1522 = vpack.c.b16 %v1494, %v1493
    %v1523 = vpack.c.b16 %v1496, %v1495
    %v1524 = vpack.c.b16 %v1498, %v1497
    %v1525 = vpack.c.b16 %v1500, %v1499
    %v1526 = vpack.c.b16 %v1502, %v1501
    %v1527 = vpack.c.b16 %v1504, %v1503
    %v1528 = vpack.c.b16 %v1506, %v1505
    %v1529 = vpack.c.b16 %v1508, %v1507
    %v1530 = vpack.c.b16 %v1510, %v1509
    %v1531 = vpack.c.b16 %v1512, %v1511
    %v1532 = vpack.c.b16 %v1514, %v1513
    %v1533 = vpack.c.b16 %v1516, %v1515
    %v1534 = vpack.c.b16 %v1518, %v1517
    %1551 = vmatprep.subr.bf16.mxu0 0
    %1552 = vmatpush1.bf16.msra.mxu0 %v1519
    %1553 = vmatprep.subr.bf16.mxu0 0
    %1554 = vmatpush1.bf16.msra.mxu0 %v1520
    %1555 = vmatprep.subr.bf16.mxu0 0
    %1556 = vmatpush1.bf16.msra.mxu0 %v1521
    %1557 = vmatprep.subr.bf16.mxu0 0
    %1558 = vmatpush1.bf16.msra.mxu0 %v1522
    %1559 = vmatprep.subr.bf16.mxu0 0
    %1560 = vmatpush1.bf16.msra.mxu0 %v1523
    %1561 = vmatprep.subr.bf16.mxu0 0
    %1562 = vmatpush1.bf16.msra.mxu0 %v1524
    %1563 = vmatprep.subr.bf16.mxu0 0
    %1564 = vmatpush1.bf16.msra.mxu0 %v1525
    %1565 = vmatprep.subr.bf16.mxu0 0
    %1566 = vmatpush1.bf16.msra.mxu0 %v1526
    %1567 = vmatprep.subr.bf16.mxu0 0
    %1568 = vmatpush1.bf16.msra.mxu0 %v1527
    %1569 = vmatprep.subr.bf16.mxu0 0
    %1570 = vmatpush1.bf16.msra.mxu0 %v1528
    %1571 = vmatprep.subr.bf16.mxu0 0
    %1572 = vmatpush1.bf16.msra.mxu0 %v1529
    %1573 = vmatprep.subr.bf16.mxu0 0
    %1574 = vmatpush1.bf16.msra.mxu0 %v1530
    %1575 = vmatprep.subr.bf16.mxu0 0
    %1576 = vmatpush1.bf16.msra.mxu0 %v1531
    %1577 = vmatprep.subr.bf16.mxu0 0
    %1578 = vmatpush1.bf16.msra.mxu0 %v1532
    %1579 = vmatprep.subr.bf16.mxu0 0
    %1580 = vmatpush1.bf16.msra.mxu0 %v1533
    %1581 = vmatprep.subr.bf16.mxu0 0
    %1582 = vmatpush1.bf16.msra.mxu0 %v1534
    %1583 = vmatprep.mubr.bf16.mxu0 %v1452
    %1584 = vmatmul.mubr.bf16.gmra.mrb[0].mxu0 %v1451
    %v1585 = vpop.f32.mrb[0].mxu0
    %v1586 = vadd.f32 0.0, %v1585
    %v1587 = vpop.f32.mrb[0].mxu0
    %v1588 = vpop.f32.mrb[0].mxu0
    %v1589 = vpop.f32.mrb[0].mxu0
    %1590 = vdwg.mxu0
    %v1591 = vtanh.pop %v1586
    %v1592 = vpack.c.bf16 %v1414, %v1414
    %v1593 = vsel %vm1229, 1, 0
    %1594 = vset.pattern.permute.xlu0 0
    %1595 = vperm.xlu0 %1594, %v1593
    %v1596 = vpop.permute.xlu0 %1595
    %vm1597 = vcmp.eq.s32.totalorder %v1596, 1
    %vm1598 = vmpackc.low %vm1597, %vm1597
    %v1599 = vsel %vm1598, %v1592, %v1236
    %v1600 = vpack.c.bf16 %v1591, %v1591
    %v1601 = vsel %vm1598, %v1600, %v1237
    %1602 = vst [vmem:[#allocation2 + $0x4] sm:$0xf] %v1599
    %1603 = vst [vmem:[#allocation3 + $0x4] sm:$0xf] %v1601
    %v1604 = vld [vmem:[#allocation9] sm:$0xf]
    %v1605 = vld [vmem:[#allocation9 + $0x4] sm:$0xf]
    %v1606 = vld [vmem:[#allocation9 + $0x8] sm:$0xf]
    %v1607 = vld [vmem:[#allocation9 + $0xc] sm:$0xf]
    %v1608 = vld [vmem:[#allocation9 + $0x10] sm:$0xf]
    %v1609 = vld [vmem:[#allocation9 + $0x14] sm:$0xf]
    %v1610 = vld [vmem:[#allocation9 + $0x18] sm:$0xf]
    %v1611 = vld [vmem:[#allocation9 + $0x1c] sm:$0xf]
    %v1612 = vld [vmem:[#allocation9 + $0x20] sm:$0xf]
    %v1613 = vld [vmem:[#allocation9 + $0x24] sm:$0xf]
    %v1614 = vld [vmem:[#allocation9 + $0x28] sm:$0xf]
    %v1615 = vld [vmem:[#allocation9 + $0x2c] sm:$0xf]
    %v1616 = vld [vmem:[#allocation9 + $0x30] sm:$0xf]
    %v1617 = vld [vmem:[#allocation9 + $0x34] sm:$0xf]
    %v1618 = vld [vmem:[#allocation9 + $0x38] sm:$0xf]
    %v1619 = vld [vmem:[#allocation9 + $0x3c] sm:$0xf]
    %v1620 = vld [vmem:[#allocation9 + $0x40] sm:$0xf]
    %v1621 = vld [vmem:[#allocation9 + $0x44] sm:$0xf]
    %v1622 = vld [vmem:[#allocation9 + $0x48] sm:$0xf]
    %v1623 = vld [vmem:[#allocation9 + $0x4c] sm:$0xf]
    %v1624 = vld [vmem:[#allocation9 + $0x50] sm:$0xf]
    %v1625 = vld [vmem:[#allocation9 + $0x54] sm:$0xf]
    %v1626 = vld [vmem:[#allocation9 + $0x58] sm:$0xf]
    %v1627 = vld [vmem:[#allocation9 + $0x5c] sm:$0xf]
    %v1628 = vld [vmem:[#allocation9 + $0x60] sm:$0xf]
    %v1629 = vld [vmem:[#allocation9 + $0x64] sm:$0xf]
    %v1630 = vld [vmem:[#allocation9 + $0x68] sm:$0xf]
    %v1631 = vld [vmem:[#allocation9 + $0x6c] sm:$0xf]
    %v1632 = vld [vmem:[#allocation9 + $0x70] sm:$0xf]
    %v1633 = vld [vmem:[#allocation9 + $0x74] sm:$0xf]
    %v1634 = vld [vmem:[#allocation9 + $0x78] sm:$0xf]
    %v1635 = vld [vmem:[#allocation9 + $0x7c] sm:$0xf]
    %v1636 = vld [vmem:[%s6] sm:$0x1]
    %v1638 = vlaneseq
    %v1639 = vshrl.u32 %v1638, 7
    %v1640 = vsub.s32 0, %v1639
    %v1641 = vrot.slane %v1636, %v1640
    %v1675 = vunpack.c.l.b16 %v1604
    %v1676 = vunpack.c.l.b16 %v1605
    %v1677 = vunpack.c.l.b16 %v1606
    %v1678 = vunpack.c.l.b16 %v1607
    %v1679 = vunpack.c.l.b16 %v1608
    %v1680 = vunpack.c.l.b16 %v1609
    %v1681 = vunpack.c.l.b16 %v1610
    %v1682 = vunpack.c.l.b16 %v1611
    %v1683 = vunpack.c.l.b16 %v1612
    %v1684 = vunpack.c.l.b16 %v1613
    %v1685 = vunpack.c.l.b16 %v1614
    %v1686 = vunpack.c.l.b16 %v1615
    %v1687 = vunpack.c.l.b16 %v1616
    %v1688 = vunpack.c.l.b16 %v1617
    %v1689 = vunpack.c.l.b16 %v1618
    %v1690 = vunpack.c.l.b16 %v1619
    %v1691 = vunpack.c.l.b16 %v1620
    %v1692 = vunpack.c.l.b16 %v1621
    %v1693 = vunpack.c.l.b16 %v1622
    %v1694 = vunpack.c.l.b16 %v1623
    %v1695 = vunpack.c.l.b16 %v1624
    %v1696 = vunpack.c.l.b16 %v1625
    %v1697 = vunpack.c.l.b16 %v1626
    %v1698 = vunpack.c.l.b16 %v1627
    %v1699 = vunpack.c.l.b16 %v1628
    %v1700 = vunpack.c.l.b16 %v1629
    %v1701 = vunpack.c.l.b16 %v1630
    %v1702 = vunpack.c.l.b16 %v1631
    %v1703 = vunpack.c.l.b16 %v1632
    %v1704 = vunpack.c.l.b16 %v1633
    %v1705 = vunpack.c.l.b16 %v1634
    %v1706 = vunpack.c.l.b16 %v1635
    %v1707 = vpack.c.b16 %v1676, %v1675
    %v1708 = vpack.c.b16 %v1678, %v1677
    %v1709 = vpack.c.b16 %v1680, %v1679
    %v1710 = vpack.c.b16 %v1682, %v1681
    %v1711 = vpack.c.b16 %v1684, %v1683
    %v1712 = vpack.c.b16 %v1686, %v1685
    %v1713 = vpack.c.b16 %v1688, %v1687
    %v1714 = vpack.c.b16 %v1690, %v1689
    %v1715 = vpack.c.b16 %v1692, %v1691
    %v1716 = vpack.c.b16 %v1694, %v1693
    %v1717 = vpack.c.b16 %v1696, %v1695
    %v1718 = vpack.c.b16 %v1698, %v1697
    %v1719 = vpack.c.b16 %v1700, %v1699
    %v1720 = vpack.c.b16 %v1702, %v1701
    %v1721 = vpack.c.b16 %v1704, %v1703
    %v1722 = vpack.c.b16 %v1706, %v1705
    %1739 = vmatprep.subr.bf16.mxu0 0
    %1740 = vmatpush1.bf16.msra.mxu0 %v1707
    %1741 = vmatprep.subr.bf16.mxu0 0
    %1742 = vmatpush1.bf16.msra.mxu0 %v1708
    %1743 = vmatprep.subr.bf16.mxu0 0
    %1744 = vmatpush1.bf16.msra.mxu0 %v1709
    %1745 = vmatprep.subr.bf16.mxu0 0
    %1746 = vmatpush1.bf16.msra.mxu0 %v1710
    %1747 = vmatprep.subr.bf16.mxu0 0
    %1748 = vmatpush1.bf16.msra.mxu0 %v1711
    %1749 = vmatprep.subr.bf16.mxu0 0
    %1750 = vmatpush1.bf16.msra.mxu0 %v1712
    %1751 = vmatprep.subr.bf16.mxu0 0
    %1752 = vmatpush1.bf16.msra.mxu0 %v1713
    %1753 = vmatprep.subr.bf16.mxu0 0
    %1754 = vmatpush1.bf16.msra.mxu0 %v1714
    %1755 = vmatprep.subr.bf16.mxu0 0
    %1756 = vmatpush1.bf16.msra.mxu0 %v1715
    %1757 = vmatprep.subr.bf16.mxu0 0
    %1758 = vmatpush1.bf16.msra.mxu0 %v1716
    %1759 = vmatprep.subr.bf16.mxu0 0
    %1760 = vmatpush1.bf16.msra.mxu0 %v1717
    %1761 = vmatprep.subr.bf16.mxu0 0
    %1762 = vmatpush1.bf16.msra.mxu0 %v1718
    %1763 = vmatprep.subr.bf16.mxu0 0
    %1764 = vmatpush1.bf16.msra.mxu0 %v1719
    %1765 = vmatprep.subr.bf16.mxu0 0
    %1766 = vmatpush1.bf16.msra.mxu0 %v1720
    %1767 = vmatprep.subr.bf16.mxu0 0
    %1768 = vmatpush1.bf16.msra.mxu0 %v1721
    %1769 = vmatprep.subr.bf16.mxu0 0
    %1770 = vmatpush1.bf16.msra.mxu0 %v1722
    %1771 = vmatprep.mubr.bf16.mxu0 %v1601
    %1772 = vmatmul.mubr.bf16.gmra.mrb[0].mxu0 %v1599
    %v1773 = vpop.f32.mrb[0].mxu0
    %v1774 = vadd.f32 %v1641, %v1773
    %v1775 = vpop.f32.mrb[0].mxu0
    %v1776 = vpop.f32.mrb[0].mxu0
    %v1777 = vpop.f32.mrb[0].mxu0
    %1778 = vdwg.mxu0
    %1779 = vmax.xlane.f32.xlu0 %v1774
    %v1780 = vpop.xlane.xlu0 %1779
    %v1781 = vsub.f32 %v1774, %v1780
    %v1782 = vmul.f32 %v1781, 1.442695
    %v1783 = vpow.pop %v1782
    %1784 = vadd.xlane.f32.xlu0 %v1783
    %v1785 = vpop.xlane.xlu0 %1784
    %v1786 = vrcp.pop %v1785
    %v1787 = vmul.f32 %v1785, %v1786
    %v1788 = vsub.f32 2.0, %v1787
    %v1789 = vmul.f32 %v1786, %v1788
    %v1790 = vmul.f32 %v1783, %v1789
    %v1791 = vpack.c.bf16 %v1790, %v1790
    %s1792 = scalar_lea.vmem [#allocation10], 8
    %1793 = vst [vmem:[%s1792] sm:$0xf] %v1791
    // Predicated region
    $region54: #{tpu_custom_call.1} parent=1 // pred_check
      _
    $region55: #{tpu_custom_call.1} parent=1 // pred_check_branch
      %1795 = sbr.rel (0) target = $region57
    $region56: #{tpu_custom_call.1} parent=1 // pred_region
      %s1797 = ssub.s32 192, 192
      %1798 = vsyncadd [#allocation6], %s1797
      %s1799 = sshll.u32 [#allocation10], 4
      %s1800 = int_to_ptr.vmem [resolvable:$true] %s1799
      %1805 = dma.vmem_to_hbm [thread:$0]  %s1800, 192, %s9, [#allocation6], 64, 64, 4
    $region57: #{tpu_custom_call.1} parent=1 // pred_fallthru
      _
    // Predicated region
    $region58: #{tpu_custom_call.1} parent=1 // pred_check
      _
    $region59: #{tpu_custom_call.1} parent=1 // pred_check_branch
      %1807 = sbr.rel (0) target = $region61
    $region60: #{tpu_custom_call.1} parent=1 // pred_region
      %1808 = dma.done [#allocation6], 192
    $region61: #{tpu_custom_call.1} parent=1 // pred_fallthru
      _
    %1809 = vsyncpa [#allocation5], 1
    %1810 = vsyncpa [#allocation8], 1
    %1811 = vsyncpa [#allocation6], 1

</llo_original>
